<compile_context>
chip_gen: v7x
topology: tpu7x:2x2x1
jax: 0.10.0
libtpu: 0.0.40
codegen_flags: <defaults>
</compile_context>

<pallas_src>
import math

import jax
import jax.numpy as jnp
from jax.experimental import pallas as pl
from jax.experimental.pallas import tpu as pltpu  # noqa: F401  (TPU backend)

# ---- small config consistent with the module (scaled down) -----------------
B = 2
T = 8               # window_size
DYN_IN = 4          # dynamic_input_size
META_IN = 2         # metadata_input_size
D_MODEL = 32        # d_model
META_FEAT = 8       # metadata_n_features
DYN_FEAT = D_MODEL - META_FEAT
H = 4               # attention heads
DH = D_MODEL // H
FF = 64             # dim_feedforward
N_LAYERS = 2        # num_encoder_layers
EPS = 1e-5

BT = B * T
N_IN = DYN_IN + META_IN
EMB_K = 8           # padded contraction dim for the embedding matmul
SCALE = 1.0 / math.sqrt(DH)
NEG = -1e30

# econst slab row layout (all rows are D_MODEL lanes wide)
_EC_WEMB = 0                    # rows [0, 8)  : block-diagonal embedding weight (padded)
_EC_BEMB = EMB_K                # row 8        : embedding bias
_EC_FLOOR = EMB_K + 1           # row 9        : ReLU floor row (-1e30 dyn lanes, 0 meta lanes)
_EC_PE = 16                     # rows [16,32) : positional encoding tiled over batch
_EC_MASK = 32                   # rows [32,48) : block-diagonal attention mask (lanes 0:BT)
_EC_ROWS = _EC_MASK + BT        # 48


# ---------------------------------------------------------------------------
# Fused kernel: input embedding + PE + N post-LN encoder layers (single step)
# ---------------------------------------------------------------------------
def fused_forward_kernel(xin_ref, econst_ref, w_attn_ref, vec_ref,
                         w1_ref, w2_ref, out_ref):
    f32 = jnp.float32
    ec = econst_ref[...]                                   # (48, 32)
    w_emb = ec[_EC_WEMB:_EC_WEMB + EMB_K, :]               # (8, 32)
    b_emb = ec[_EC_BEMB:_EC_BEMB + 1, :]                   # (1, 32)
    floor = ec[_EC_FLOOR:_EC_FLOOR + 1, :]                 # (1, 32)
    pe = ec[_EC_PE:_EC_PE + BT, :]                         # (16, 32)
    mask = ec[_EC_MASK:_EC_MASK + BT, 0:BT]                # (16, 16)

    # ---- input embedding (block-diagonal) + metadata ReLU via floor + PE ----
    emb = jnp.dot(xin_ref[...], w_emb, preferred_element_type=f32) + b_emb   # (16, 32)
    emb = jnp.maximum(emb, floor)                          # ReLU only on metadata lanes
    x = emb + pe                                           # (16, 32)

    def layer_norm(z, g, b):
        mu = jnp.mean(z, axis=-1, keepdims=True)
        var = jnp.mean((z - mu) * (z - mu), axis=-1, keepdims=True)
        return (z - mu) * jax.lax.rsqrt(var + EPS) * g + b

    for li in range(N_LAYERS):                             # static unroll
        w_att = w_attn_ref[li]                             # (32, 128)  Q|K|V|O columns
        vec = vec_ref[li]                                   # (8, 128)
        b_att = vec[0:1, :]                                 # (1, 128)   bq|bk|bv|bo

        # single fused QKV(+O, discarded) projection: one MXU matmul
        qkvo = jnp.dot(x, w_att, preferred_element_type=f32) + b_att         # (16, 128)
        q = qkvo[:, 0:D_MODEL]
        k = qkvo[:, D_MODEL:2 * D_MODEL]
        v = qkvo[:, 2 * D_MODEL:3 * D_MODEL]

        # ---- multi-head attention: both batches in one masked matmul/head ----
        heads = []
        for h in range(H):
            hs = slice(h * DH, (h + 1) * DH)
            qh, kh, vh = q[:, hs], k[:, hs], v[:, hs]       # (16, 8) each
            s = jax.lax.dot_general(qh, kh, (((1,), (1,)), ((), ())),
                                    preferred_element_type=f32) * SCALE       # (16, 16)
            s = s + mask                                    # block-diagonal batch mask
            s = s - jnp.max(s, axis=-1, keepdims=True)
            e = jnp.exp(s)
            p = e * pl.reciprocal(jnp.sum(e, axis=-1, keepdims=True), approx=False)
            heads.append(jnp.dot(p, vh, preferred_element_type=f32))          # (16, 8)
        o_cat = jnp.concatenate(heads, axis=-1)             # (16, 32), lane concat

        # single output projection
        wo = w_att[:, 3 * D_MODEL:4 * D_MODEL]              # (32, 32)
        bo = b_att[:, 3 * D_MODEL:4 * D_MODEL]              # (1, 32)
        attn = jnp.dot(o_cat, wo, preferred_element_type=f32) + bo

        ln1g = vec[1:2, 0:D_MODEL]
        ln1b = vec[2:3, 0:D_MODEL]
        b1 = vec[3:4, 0:FF]
        b2 = vec[4:5, 0:D_MODEL]
        ln2g = vec[5:6, 0:D_MODEL]
        ln2b = vec[6:7, 0:D_MODEL]

        # ---- post-LN residual blocks ----
        x = layer_norm(x + attn, ln1g, ln1b)
        hdn = jnp.maximum(jnp.dot(x, w1_ref[li],
                                  preferred_element_type=f32) + b1, 0.0)
        ff = jnp.dot(hdn, w2_ref[li], preferred_element_type=f32) + b2
        x = layer_norm(x + ff, ln2g, ln2b)

    out_ref[...] = x                                        # single final store


# ---------------------------------------------------------------------------
# Wrapper: parameter packing (layout plumbing, done once) + forward call
# ---------------------------------------------------------------------------
def sinusoidal_pe(t, d):
    pos = jnp.arange(t, dtype=jnp.float32)[:, None]
    div = jnp.exp(jnp.arange(0, d, 2, dtype=jnp.float32) * (-math.log(10000.0) / d))
    pe = jnp.zeros((t, d), jnp.float32)
    pe = pe.at[:, 0::2].set(jnp.sin(pos * div))
    pe = pe.at[:, 1::2].set(jnp.cos(pos * div))
    return pe


def pack_params(emb_p, layer_ps):
    """Build the kernel-side weight layout: a few packed slabs instead of ~20 operands."""
    # block-diagonal embedding weight, padded to EMB_K contraction rows
    w_emb = jnp.zeros((EMB_K, D_MODEL), jnp.float32)
    w_emb = w_emb.at[:DYN_IN, :DYN_FEAT].set(emb_p["w_dyn"])
    w_emb = w_emb.at[DYN_IN:N_IN, DYN_FEAT:].set(emb_p["w_meta"])
    b_emb = jnp.concatenate([emb_p["b_dyn"], emb_p["b_meta"]], axis=-1)          # (1, 32)
    floor = jnp.concatenate([jnp.full((1, DYN_FEAT), NEG, jnp.float32),
                             jnp.zeros((1, META_FEAT), jnp.float32)], axis=-1)   # (1, 32)
    misc = jnp.concatenate([b_emb, floor,
                            jnp.zeros((8 - 2, D_MODEL), jnp.float32)], axis=0)   # (8, 32)
    pe_bt = jnp.tile(sinusoidal_pe(T, D_MODEL), (B, 1))                          # (16, 32)
    rb = jnp.arange(BT, dtype=jnp.int32) // T
    mask = jnp.where(rb[:, None] == rb[None, :], 0.0, NEG).astype(jnp.float32)   # (16, 16)
    mask_pad = jnp.zeros((BT, D_MODEL), jnp.float32).at[:, :BT].set(mask)
    econst = jnp.concatenate([w_emb, misc, pe_bt, mask_pad], axis=0)             # (48, 32)
    assert econst.shape == (_EC_ROWS, D_MODEL)

    # attention weights: Q|K|V|O columns in one slab
    w_attn = jnp.stack(
        [jnp.concatenate([p["wq"], p["wk"], p["wv"], p["wo"]], axis=1)
         for p in layer_ps], axis=0)                                             # (L, 32, 128)

    def pad_row(v, width=4 * D_MODEL):
        out = jnp.zeros((1, width), jnp.float32)
        return out.at[:, :v.shape[-1]].set(v)

    def vec_rows(p):
        rows = [jnp.concatenate([p["bq"], p["bk"], p["bv"], p["bo"]], axis=-1),  # (1, 128)
                pad_row(p["ln1g"]), pad_row(p["ln1b"]), pad_row(p["b1"]),
                pad_row(p["b2"]), pad_row(p["ln2g"]), pad_row(p["ln2b"]),
                jnp.zeros((1, 4 * D_MODEL), jnp.float32)]
        return jnp.concatenate(rows, axis=0)                                     # (8, 128)

    vec = jnp.stack([vec_rows(p) for p in layer_ps], axis=0)                     # (L, 8, 128)
    w1 = jnp.stack([p["w1"] for p in layer_ps], axis=0)                          # (L, 32, 64)
    w2 = jnp.stack([p["w2"] for p in layer_ps], axis=0)                          # (L, 64, 32)
    return dict(econst=econst, w_attn=w_attn, vec=vec, w1=w1, w2=w2)


@jax.jit
def forward(dynamic_data, metadata, pk):
    # Layout plumbing: concat raw dyn + (time-broadcast) metadata -> (BT, 8) padded
    meta_b = jnp.broadcast_to(metadata[:, None, :], (B, T, META_IN))
    xin = jnp.concatenate([dynamic_data, meta_b], axis=-1).reshape(BT, N_IN)
    xin = jnp.pad(xin, ((0, 0), (0, EMB_K - N_IN)))                              # (16, 8)

    out2d = pl.pallas_call(
        fused_forward_kernel,
        out_shape=jax.ShapeDtypeStruct((BT, D_MODEL), jnp.float32),
    )(xin, pk["econst"], pk["w_attn"], pk["vec"], pk["w1"], pk["w2"])
    return out2d.reshape(B, T, D_MODEL)


# ---------------------------------------------------------------------------
# Parameters (normalization folded into the embedding linears)
# ---------------------------------------------------------------------------
def init_params(key):
    def dense(k, fan_in, fan_out):
        kw, kb = jax.random.split(k)
        w = jax.random.normal(kw, (fan_in, fan_out), jnp.float32) / math.sqrt(fan_in)
        b = jax.random.normal(kb, (1, fan_out), jnp.float32) * 0.01
        return w, b

    keys = jax.random.split(key, 2 + N_LAYERS)

    # synthetic, deterministic InputNormalizationConfig
    d_mean = jnp.array([1.0, -0.5, 0.25, 0.0], jnp.float32)
    d_std = jnp.array([2.0, 1.5, 1.0, 0.5], jnp.float32)
    m_mean = jnp.array([10.0, 5.0], jnp.float32)
    m_std = jnp.array([4.0, 2.0], jnp.float32)

    kd, km = jax.random.split(keys[0])
    w_dyn, b_dyn = dense(kd, DYN_IN, DYN_FEAT)
    w_meta, b_meta = dense(km, META_IN, META_FEAT)
    emb = dict(
        w_dyn=w_dyn / d_std[:, None],
        b_dyn=b_dyn - (d_mean / d_std)[None, :] @ w_dyn,
        w_meta=w_meta / m_std[:, None],
        b_meta=b_meta - (m_mean / m_std)[None, :] @ w_meta,
    )

    layers = []
    for li in range(N_LAYERS):
        ks = jax.random.split(keys[2 + li], 6)
        wq, bq = dense(ks[0], D_MODEL, D_MODEL)
        wk, bk = dense(ks[1], D_MODEL, D_MODEL)
        wv, bv = dense(ks[2], D_MODEL, D_MODEL)
        wo, bo = dense(ks[3], D_MODEL, D_MODEL)
        w1, b1 = dense(ks[4], D_MODEL, FF)
        w2, b2 = dense(ks[5], FF, D_MODEL)
        layers.append(dict(
            wq=wq, bq=bq, wk=wk, bk=bk, wv=wv, bv=bv, wo=wo, bo=bo,
            w1=w1, b1=b1, w2=w2, b2=b2,
            ln1g=jnp.ones((1, D_MODEL), jnp.float32),
            ln1b=jnp.zeros((1, D_MODEL), jnp.float32),
            ln2g=jnp.ones((1, D_MODEL), jnp.float32),
            ln2b=jnp.zeros((1, D_MODEL), jnp.float32),
        ))
    return emb, layers


# ---------------------------------------------------------------------------
# Pure-JAX reference for validation
# ---------------------------------------------------------------------------
def reference_forward(dyn, meta, pe, emb_p, layer_ps):
    def ln(z, g, b):
        mu = jnp.mean(z, axis=-1, keepdims=True)
        var = jnp.mean((z - mu) ** 2, axis=-1, keepdims=True)
        return (z - mu) * jax.lax.rsqrt(var + EPS) * g + b

    x_dyn = dyn @ emb_p["w_dyn"] + emb_p["b_dyn"]
    m = jax.nn.relu(meta @ emb_p["w_meta"] + emb_p["b_meta"])
    m = jnp.broadcast_to(m[:, None, :], (B, T, META_FEAT))
    x = jnp.concatenate([x_dyn, m], axis=-1) + pe[None]
    for p in layer_ps:
        q = x @ p["wq"] + p["bq"]
        k = x @ p["wk"] + p["bk"]
        v = x @ p["wv"] + p["bv"]
        qh = q.reshape(B, T, H, DH).transpose(0, 2, 1, 3)
        kh = k.reshape(B, T, H, DH).transpose(0, 2, 1, 3)
        vh = v.reshape(B, T, H, DH).transpose(0, 2, 1, 3)
        s = jnp.einsum("bhqd,bhkd->bhqk", qh, kh) / math.sqrt(DH)
        pr = jax.nn.softmax(s, axis=-1)
        a = jnp.einsum("bhqk,bhkd->bhqd", pr, vh).transpose(0, 2, 1, 3).reshape(B, T, D_MODEL)
        a = a @ p["wo"] + p["bo"]
        x1 = ln(x + a, p["ln1g"], p["ln1b"])
        ff = jax.nn.relu(x1 @ p["w1"] + p["b1"]) @ p["w2"] + p["b2"]
        x = ln(x1 + ff, p["ln2g"], p["ln2b"])
    return x


if __name__ == "__main__":
    key = jax.random.PRNGKey(0)
    k_dyn, k_meta = jax.random.split(key)
    dynamic_data = jax.random.normal(k_dyn, (B, T, DYN_IN), jnp.float32)
    metadata = jax.random.normal(k_meta, (B, META_IN), jnp.float32)

    emb_p, layer_ps = init_params(jax.random.PRNGKey(42))
    packed = pack_params(emb_p, layer_ps)

    out = forward(dynamic_data, metadata, packed)
    out = jax.block_until_ready(out)

    ref = reference_forward(dynamic_data, metadata, sinusoidal_pe(T, D_MODEL),
                            emb_p, layer_ps)
    assert out.shape == (B, T, D_MODEL)
    assert bool(jnp.all(jnp.isfinite(out)))
    max_err = float(jnp.max(jnp.abs(out - ref)))
    assert bool(jnp.allclose(out, ref, atol=2e-4, rtol=2e-4)), \
        f"Pallas output mismatches JAX reference (max abs err {max_err:.3e})"
    print("KERNEL_OK")
</pallas_src>

<mosaic_0001>
module attributes {stable_mosaic.version = 11 : i64} {
  func.func @fused_forward_kernel(%arg0: memref<16x8xf32, #tpu.memory_space<vmem>>, %arg1: memref<48x32xf32, #tpu.memory_space<vmem>>, %arg2: memref<2x32x128xf32, #tpu.memory_space<vmem>>, %arg3: memref<2x8x128xf32, #tpu.memory_space<vmem>>, %arg4: memref<2x32x64xf32, #tpu.memory_space<vmem>>, %arg5: memref<2x64x32xf32, #tpu.memory_space<vmem>>, %arg6: memref<16x32xf32, #tpu.memory_space<vmem>>) attributes {dimension_semantics = [], scalar_prefetch = 0 : i64, scratch_operands = 0 : i64, tpu.core_type = #tpu.core_type<tc>} {
    %c0 = arith.constant 0 : index
    %c0_0 = arith.constant 0 : index
    %0 = vector.load %arg1[%c0, %c0_0] : memref<48x32xf32, #tpu.memory_space<vmem>>, vector<48x32xf32>
    %1 = vector.extract_strided_slice %0 {offsets = [0, 0], sizes = [8, 32], strides = [1, 1]} : vector<48x32xf32> to vector<8x32xf32>
    %2 = vector.extract_strided_slice %0 {offsets = [8, 0], sizes = [1, 32], strides = [1, 1]} : vector<48x32xf32> to vector<1x32xf32>
    %3 = vector.extract_strided_slice %0 {offsets = [9, 0], sizes = [1, 32], strides = [1, 1]} : vector<48x32xf32> to vector<1x32xf32>
    %4 = vector.extract_strided_slice %0 {offsets = [16, 0], sizes = [16, 32], strides = [1, 1]} : vector<48x32xf32> to vector<16x32xf32>
    %5 = vector.extract_strided_slice %0 {offsets = [32, 0], sizes = [16, 16], strides = [1, 1]} : vector<48x32xf32> to vector<16x16xf32>
    %c0_1 = arith.constant 0 : index
    %c0_2 = arith.constant 0 : index
    %6 = vector.load %arg0[%c0_1, %c0_2] : memref<16x8xf32, #tpu.memory_space<vmem>>, vector<16x8xf32>
    %cst = arith.constant dense<0.000000e+00> : vector<16x32xf32>
    %7 = tpu.matmul %6, %1, %cst {dimension_numbers = #tpu.dot_dimension_numbers<[1], [0], [0], [1], [0, 0, 1, 1], [], []>} : vector<16x8xf32>, vector<8x32xf32>, vector<16x32xf32> -> vector<16x32xf32>
    %8 = vector.broadcast %2 : vector<1x32xf32> to vector<16x32xf32>
    %9 = arith.addf %7, %8 : vector<16x32xf32>
    %10 = vector.broadcast %3 : vector<1x32xf32> to vector<16x32xf32>
    %11 = arith.maximumf %9, %10 : vector<16x32xf32>
    %12 = arith.addf %11, %4 : vector<16x32xf32>
    %c0_3 = arith.constant 0 : index
    %c0_4 = arith.constant 0 : index
    %c0_5 = arith.constant 0 : index
    %13 = vector.load %arg2[%c0_3, %c0_4, %c0_5] : memref<2x32x128xf32, #tpu.memory_space<vmem>>, vector<1x32x128xf32>
    %14 = vector.shape_cast %13 : vector<1x32x128xf32> to vector<32x128xf32>
    %c0_6 = arith.constant 0 : index
    %c0_7 = arith.constant 0 : index
    %c0_8 = arith.constant 0 : index
    %15 = vector.load %arg3[%c0_6, %c0_7, %c0_8] : memref<2x8x128xf32, #tpu.memory_space<vmem>>, vector<1x8x128xf32>
    %16 = vector.shape_cast %15 : vector<1x8x128xf32> to vector<8x128xf32>
    %17 = vector.extract_strided_slice %16 {offsets = [0, 0], sizes = [1, 128], strides = [1, 1]} : vector<8x128xf32> to vector<1x128xf32>
    %cst_9 = arith.constant dense<0.000000e+00> : vector<16x128xf32>
    %18 = tpu.matmul %12, %14, %cst_9 {dimension_numbers = #tpu.dot_dimension_numbers<[1], [0], [0], [1], [0, 0, 1, 1], [], []>} : vector<16x32xf32>, vector<32x128xf32>, vector<16x128xf32> -> vector<16x128xf32>
    %19 = vector.broadcast %17 : vector<1x128xf32> to vector<16x128xf32>
    %20 = arith.addf %18, %19 : vector<16x128xf32>
    %21 = vector.extract_strided_slice %20 {offsets = [0, 0], sizes = [16, 32], strides = [1, 1]} : vector<16x128xf32> to vector<16x32xf32>
    %22 = vector.extract_strided_slice %20 {offsets = [0, 32], sizes = [16, 32], strides = [1, 1]} : vector<16x128xf32> to vector<16x32xf32>
    %23 = vector.extract_strided_slice %20 {offsets = [0, 64], sizes = [16, 32], strides = [1, 1]} : vector<16x128xf32> to vector<16x32xf32>
    %24 = vector.extract_strided_slice %21 {offsets = [0, 0], sizes = [16, 8], strides = [1, 1]} : vector<16x32xf32> to vector<16x8xf32>
    %25 = vector.extract_strided_slice %22 {offsets = [0, 0], sizes = [16, 8], strides = [1, 1]} : vector<16x32xf32> to vector<16x8xf32>
    %26 = vector.extract_strided_slice %23 {offsets = [0, 0], sizes = [16, 8], strides = [1, 1]} : vector<16x32xf32> to vector<16x8xf32>
    %cst_10 = arith.constant dense<0.000000e+00> : vector<16x16xf32>
    %27 = tpu.matmul %24, %25, %cst_10 {dimension_numbers = #tpu.dot_dimension_numbers<[1], [1], [0], [0], [0, 0, 1, 0], [], []>} : vector<16x8xf32>, vector<16x8xf32>, vector<16x16xf32> -> vector<16x16xf32>
    %cst_11 = arith.constant 0.353553385 : f32
    %28 = vector.broadcast %cst_11 : f32 to vector<16x16xf32>
    %29 = arith.mulf %27, %28 : vector<16x16xf32>
    %30 = arith.addf %29, %5 : vector<16x16xf32>
    %cst_12 = arith.constant dense<0xFF800000> : vector<16xf32>
    %31 = vector.multi_reduction <maximumf>, %30, %cst_12 [1] : vector<16x16xf32> to vector<16xf32>
    %32 = vector.shape_cast %31 : vector<16xf32> to vector<16x1xf32>
    %33 = vector.broadcast %32 : vector<16x1xf32> to vector<16x16xf32>
    %34 = arith.subf %30, %33 : vector<16x16xf32>
    %35 = math.exp %34 : vector<16x16xf32>
    %cst_13 = arith.constant dense<0.000000e+00> : vector<16xf32>
    %36 = vector.multi_reduction <add>, %35, %cst_13 [1] : vector<16x16xf32> to vector<16xf32>
    %37 = vector.shape_cast %36 : vector<16xf32> to vector<16x1xf32>
    %38 = tpu.reciprocal %37 : vector<16x1xf32> -> vector<16x1xf32>
    %39 = vector.broadcast %38 : vector<16x1xf32> to vector<16x16xf32>
    %40 = arith.mulf %35, %39 : vector<16x16xf32>
    %cst_14 = arith.constant dense<0.000000e+00> : vector<16x8xf32>
    %41 = tpu.matmul %40, %26, %cst_14 {dimension_numbers = #tpu.dot_dimension_numbers<[1], [0], [0], [1], [0, 0, 1, 1], [], []>} : vector<16x16xf32>, vector<16x8xf32>, vector<16x8xf32> -> vector<16x8xf32>
    %42 = vector.extract_strided_slice %21 {offsets = [0, 8], sizes = [16, 8], strides = [1, 1]} : vector<16x32xf32> to vector<16x8xf32>
    %43 = vector.extract_strided_slice %22 {offsets = [0, 8], sizes = [16, 8], strides = [1, 1]} : vector<16x32xf32> to vector<16x8xf32>
    %44 = vector.extract_strided_slice %23 {offsets = [0, 8], sizes = [16, 8], strides = [1, 1]} : vector<16x32xf32> to vector<16x8xf32>
    %cst_15 = arith.constant dense<0.000000e+00> : vector<16x16xf32>
    %45 = tpu.matmul %42, %43, %cst_15 {dimension_numbers = #tpu.dot_dimension_numbers<[1], [1], [0], [0], [0, 0, 1, 0], [], []>} : vector<16x8xf32>, vector<16x8xf32>, vector<16x16xf32> -> vector<16x16xf32>
    %cst_16 = arith.constant 0.353553385 : f32
    %46 = vector.broadcast %cst_16 : f32 to vector<16x16xf32>
    %47 = arith.mulf %45, %46 : vector<16x16xf32>
    %48 = arith.addf %47, %5 : vector<16x16xf32>
    %cst_17 = arith.constant dense<0xFF800000> : vector<16xf32>
    %49 = vector.multi_reduction <maximumf>, %48, %cst_17 [1] : vector<16x16xf32> to vector<16xf32>
    %50 = vector.shape_cast %49 : vector<16xf32> to vector<16x1xf32>
    %51 = vector.broadcast %50 : vector<16x1xf32> to vector<16x16xf32>
    %52 = arith.subf %48, %51 : vector<16x16xf32>
    %53 = math.exp %52 : vector<16x16xf32>
    %cst_18 = arith.constant dense<0.000000e+00> : vector<16xf32>
    %54 = vector.multi_reduction <add>, %53, %cst_18 [1] : vector<16x16xf32> to vector<16xf32>
    %55 = vector.shape_cast %54 : vector<16xf32> to vector<16x1xf32>
    %56 = tpu.reciprocal %55 : vector<16x1xf32> -> vector<16x1xf32>
    %57 = vector.broadcast %56 : vector<16x1xf32> to vector<16x16xf32>
    %58 = arith.mulf %53, %57 : vector<16x16xf32>
    %cst_19 = arith.constant dense<0.000000e+00> : vector<16x8xf32>
    %59 = tpu.matmul %58, %44, %cst_19 {dimension_numbers = #tpu.dot_dimension_numbers<[1], [0], [0], [1], [0, 0, 1, 1], [], []>} : vector<16x16xf32>, vector<16x8xf32>, vector<16x8xf32> -> vector<16x8xf32>
    %60 = vector.extract_strided_slice %21 {offsets = [0, 16], sizes = [16, 8], strides = [1, 1]} : vector<16x32xf32> to vector<16x8xf32>
    %61 = vector.extract_strided_slice %22 {offsets = [0, 16], sizes = [16, 8], strides = [1, 1]} : vector<16x32xf32> to vector<16x8xf32>
    %62 = vector.extract_strided_slice %23 {offsets = [0, 16], sizes = [16, 8], strides = [1, 1]} : vector<16x32xf32> to vector<16x8xf32>
    %cst_20 = arith.constant dense<0.000000e+00> : vector<16x16xf32>
    %63 = tpu.matmul %60, %61, %cst_20 {dimension_numbers = #tpu.dot_dimension_numbers<[1], [1], [0], [0], [0, 0, 1, 0], [], []>} : vector<16x8xf32>, vector<16x8xf32>, vector<16x16xf32> -> vector<16x16xf32>
    %cst_21 = arith.constant 0.353553385 : f32
    %64 = vector.broadcast %cst_21 : f32 to vector<16x16xf32>
    %65 = arith.mulf %63, %64 : vector<16x16xf32>
    %66 = arith.addf %65, %5 : vector<16x16xf32>
    %cst_22 = arith.constant dense<0xFF800000> : vector<16xf32>
    %67 = vector.multi_reduction <maximumf>, %66, %cst_22 [1] : vector<16x16xf32> to vector<16xf32>
    %68 = vector.shape_cast %67 : vector<16xf32> to vector<16x1xf32>
    %69 = vector.broadcast %68 : vector<16x1xf32> to vector<16x16xf32>
    %70 = arith.subf %66, %69 : vector<16x16xf32>
    %71 = math.exp %70 : vector<16x16xf32>
    %cst_23 = arith.constant dense<0.000000e+00> : vector<16xf32>
    %72 = vector.multi_reduction <add>, %71, %cst_23 [1] : vector<16x16xf32> to vector<16xf32>
    %73 = vector.shape_cast %72 : vector<16xf32> to vector<16x1xf32>
    %74 = tpu.reciprocal %73 : vector<16x1xf32> -> vector<16x1xf32>
    %75 = vector.broadcast %74 : vector<16x1xf32> to vector<16x16xf32>
    %76 = arith.mulf %71, %75 : vector<16x16xf32>
    %cst_24 = arith.constant dense<0.000000e+00> : vector<16x8xf32>
    %77 = tpu.matmul %76, %62, %cst_24 {dimension_numbers = #tpu.dot_dimension_numbers<[1], [0], [0], [1], [0, 0, 1, 1], [], []>} : vector<16x16xf32>, vector<16x8xf32>, vector<16x8xf32> -> vector<16x8xf32>
    %78 = vector.extract_strided_slice %21 {offsets = [0, 24], sizes = [16, 8], strides = [1, 1]} : vector<16x32xf32> to vector<16x8xf32>
    %79 = vector.extract_strided_slice %22 {offsets = [0, 24], sizes = [16, 8], strides = [1, 1]} : vector<16x32xf32> to vector<16x8xf32>
    %80 = vector.extract_strided_slice %23 {offsets = [0, 24], sizes = [16, 8], strides = [1, 1]} : vector<16x32xf32> to vector<16x8xf32>
    %cst_25 = arith.constant dense<0.000000e+00> : vector<16x16xf32>
    %81 = tpu.matmul %78, %79, %cst_25 {dimension_numbers = #tpu.dot_dimension_numbers<[1], [1], [0], [0], [0, 0, 1, 0], [], []>} : vector<16x8xf32>, vector<16x8xf32>, vector<16x16xf32> -> vector<16x16xf32>
    %cst_26 = arith.constant 0.353553385 : f32
    %82 = vector.broadcast %cst_26 : f32 to vector<16x16xf32>
    %83 = arith.mulf %81, %82 : vector<16x16xf32>
    %84 = arith.addf %83, %5 : vector<16x16xf32>
    %cst_27 = arith.constant dense<0xFF800000> : vector<16xf32>
    %85 = vector.multi_reduction <maximumf>, %84, %cst_27 [1] : vector<16x16xf32> to vector<16xf32>
    %86 = vector.shape_cast %85 : vector<16xf32> to vector<16x1xf32>
    %87 = vector.broadcast %86 : vector<16x1xf32> to vector<16x16xf32>
    %88 = arith.subf %84, %87 : vector<16x16xf32>
    %89 = math.exp %88 : vector<16x16xf32>
    %cst_28 = arith.constant dense<0.000000e+00> : vector<16xf32>
    %90 = vector.multi_reduction <add>, %89, %cst_28 [1] : vector<16x16xf32> to vector<16xf32>
    %91 = vector.shape_cast %90 : vector<16xf32> to vector<16x1xf32>
    %92 = tpu.reciprocal %91 : vector<16x1xf32> -> vector<16x1xf32>
    %93 = vector.broadcast %92 : vector<16x1xf32> to vector<16x16xf32>
    %94 = arith.mulf %89, %93 : vector<16x16xf32>
    %cst_29 = arith.constant dense<0.000000e+00> : vector<16x8xf32>
    %95 = tpu.matmul %94, %80, %cst_29 {dimension_numbers = #tpu.dot_dimension_numbers<[1], [0], [0], [1], [0, 0, 1, 1], [], []>} : vector<16x16xf32>, vector<16x8xf32>, vector<16x8xf32> -> vector<16x8xf32>
    %96 = tpu.concatenate %41, %59, %77, %95 in 1 : vector<16x8xf32>, vector<16x8xf32>, vector<16x8xf32>, vector<16x8xf32> -> vector<16x32xf32>
    %97 = vector.extract_strided_slice %14 {offsets = [0, 96], sizes = [32, 32], strides = [1, 1]} : vector<32x128xf32> to vector<32x32xf32>
    %98 = vector.extract_strided_slice %17 {offsets = [0, 96], sizes = [1, 32], strides = [1, 1]} : vector<1x128xf32> to vector<1x32xf32>
    %cst_30 = arith.constant dense<0.000000e+00> : vector<16x32xf32>
    %99 = tpu.matmul %96, %97, %cst_30 {dimension_numbers = #tpu.dot_dimension_numbers<[1], [0], [0], [1], [0, 0, 1, 1], [], []>} : vector<16x32xf32>, vector<32x32xf32>, vector<16x32xf32> -> vector<16x32xf32>
    %100 = vector.broadcast %98 : vector<1x32xf32> to vector<16x32xf32>
    %101 = arith.addf %99, %100 : vector<16x32xf32>
    %102 = vector.extract_strided_slice %16 {offsets = [1, 0], sizes = [1, 32], strides = [1, 1]} : vector<8x128xf32> to vector<1x32xf32>
    %103 = vector.extract_strided_slice %16 {offsets = [2, 0], sizes = [1, 32], strides = [1, 1]} : vector<8x128xf32> to vector<1x32xf32>
    %104 = vector.extract_strided_slice %16 {offsets = [3, 0], sizes = [1, 64], strides = [1, 1]} : vector<8x128xf32> to vector<1x64xf32>
    %105 = vector.extract_strided_slice %16 {offsets = [4, 0], sizes = [1, 32], strides = [1, 1]} : vector<8x128xf32> to vector<1x32xf32>
    %106 = vector.extract_strided_slice %16 {offsets = [5, 0], sizes = [1, 32], strides = [1, 1]} : vector<8x128xf32> to vector<1x32xf32>
    %107 = vector.extract_strided_slice %16 {offsets = [6, 0], sizes = [1, 32], strides = [1, 1]} : vector<8x128xf32> to vector<1x32xf32>
    %108 = arith.addf %12, %101 : vector<16x32xf32>
    %cst_31 = arith.constant dense<0.000000e+00> : vector<16xf32>
    %109 = vector.multi_reduction <add>, %108, %cst_31 [1] : vector<16x32xf32> to vector<16xf32>
    %110 = vector.shape_cast %109 : vector<16xf32> to vector<16x1xf32>
    %cst_32 = arith.constant 3.200000e+01 : f32
    %111 = vector.broadcast %cst_32 : f32 to vector<16x1xf32>
    %112 = arith.divf %110, %111 : vector<16x1xf32>
    %113 = vector.broadcast %112 : vector<16x1xf32> to vector<16x32xf32>
    %114 = arith.subf %108, %113 : vector<16x32xf32>
    %115 = vector.broadcast %112 : vector<16x1xf32> to vector<16x32xf32>
    %116 = arith.subf %108, %115 : vector<16x32xf32>
    %117 = arith.mulf %114, %116 : vector<16x32xf32>
    %cst_33 = arith.constant dense<0.000000e+00> : vector<16xf32>
    %118 = vector.multi_reduction <add>, %117, %cst_33 [1] : vector<16x32xf32> to vector<16xf32>
    %119 = vector.shape_cast %118 : vector<16xf32> to vector<16x1xf32>
    %cst_34 = arith.constant 3.200000e+01 : f32
    %120 = vector.broadcast %cst_34 : f32 to vector<16x1xf32>
    %121 = arith.divf %119, %120 : vector<16x1xf32>
    %122 = vector.broadcast %112 : vector<16x1xf32> to vector<16x32xf32>
    %123 = arith.subf %108, %122 : vector<16x32xf32>
    %cst_35 = arith.constant 9.99999974E-6 : f32
    %124 = vector.broadcast %cst_35 : f32 to vector<16x1xf32>
    %125 = arith.addf %121, %124 : vector<16x1xf32>
    %126 = math.rsqrt %125 : vector<16x1xf32>
    %127 = vector.broadcast %126 : vector<16x1xf32> to vector<16x32xf32>
    %128 = arith.mulf %123, %127 : vector<16x32xf32>
    %129 = vector.broadcast %102 : vector<1x32xf32> to vector<16x32xf32>
    %130 = arith.mulf %128, %129 : vector<16x32xf32>
    %131 = vector.broadcast %103 : vector<1x32xf32> to vector<16x32xf32>
    %132 = arith.addf %130, %131 : vector<16x32xf32>
    %c0_36 = arith.constant 0 : index
    %c0_37 = arith.constant 0 : index
    %c0_38 = arith.constant 0 : index
    %133 = vector.load %arg4[%c0_36, %c0_37, %c0_38] : memref<2x32x64xf32, #tpu.memory_space<vmem>>, vector<1x32x64xf32>
    %134 = vector.shape_cast %133 : vector<1x32x64xf32> to vector<32x64xf32>
    %cst_39 = arith.constant dense<0.000000e+00> : vector<16x64xf32>
    %135 = tpu.matmul %132, %134, %cst_39 {dimension_numbers = #tpu.dot_dimension_numbers<[1], [0], [0], [1], [0, 0, 1, 1], [], []>} : vector<16x32xf32>, vector<32x64xf32>, vector<16x64xf32> -> vector<16x64xf32>
    %136 = vector.broadcast %104 : vector<1x64xf32> to vector<16x64xf32>
    %137 = arith.addf %135, %136 : vector<16x64xf32>
    %cst_40 = arith.constant 0.000000e+00 : f32
    %138 = vector.broadcast %cst_40 : f32 to vector<16x64xf32>
    %139 = arith.maximumf %137, %138 : vector<16x64xf32>
    %c0_41 = arith.constant 0 : index
    %c0_42 = arith.constant 0 : index
    %c0_43 = arith.constant 0 : index
    %140 = vector.load %arg5[%c0_41, %c0_42, %c0_43] : memref<2x64x32xf32, #tpu.memory_space<vmem>>, vector<1x64x32xf32>
    %141 = vector.shape_cast %140 : vector<1x64x32xf32> to vector<64x32xf32>
    %cst_44 = arith.constant dense<0.000000e+00> : vector<16x32xf32>
    %142 = tpu.matmul %139, %141, %cst_44 {dimension_numbers = #tpu.dot_dimension_numbers<[1], [0], [0], [1], [0, 0, 1, 1], [], []>} : vector<16x64xf32>, vector<64x32xf32>, vector<16x32xf32> -> vector<16x32xf32>
    %143 = vector.broadcast %105 : vector<1x32xf32> to vector<16x32xf32>
    %144 = arith.addf %142, %143 : vector<16x32xf32>
    %145 = arith.addf %132, %144 : vector<16x32xf32>
    %cst_45 = arith.constant dense<0.000000e+00> : vector<16xf32>
    %146 = vector.multi_reduction <add>, %145, %cst_45 [1] : vector<16x32xf32> to vector<16xf32>
    %147 = vector.shape_cast %146 : vector<16xf32> to vector<16x1xf32>
    %cst_46 = arith.constant 3.200000e+01 : f32
    %148 = vector.broadcast %cst_46 : f32 to vector<16x1xf32>
    %149 = arith.divf %147, %148 : vector<16x1xf32>
    %150 = vector.broadcast %149 : vector<16x1xf32> to vector<16x32xf32>
    %151 = arith.subf %145, %150 : vector<16x32xf32>
    %152 = vector.broadcast %149 : vector<16x1xf32> to vector<16x32xf32>
    %153 = arith.subf %145, %152 : vector<16x32xf32>
    %154 = arith.mulf %151, %153 : vector<16x32xf32>
    %cst_47 = arith.constant dense<0.000000e+00> : vector<16xf32>
    %155 = vector.multi_reduction <add>, %154, %cst_47 [1] : vector<16x32xf32> to vector<16xf32>
    %156 = vector.shape_cast %155 : vector<16xf32> to vector<16x1xf32>
    %cst_48 = arith.constant 3.200000e+01 : f32
    %157 = vector.broadcast %cst_48 : f32 to vector<16x1xf32>
    %158 = arith.divf %156, %157 : vector<16x1xf32>
    %159 = vector.broadcast %149 : vector<16x1xf32> to vector<16x32xf32>
    %160 = arith.subf %145, %159 : vector<16x32xf32>
    %cst_49 = arith.constant 9.99999974E-6 : f32
    %161 = vector.broadcast %cst_49 : f32 to vector<16x1xf32>
    %162 = arith.addf %158, %161 : vector<16x1xf32>
    %163 = math.rsqrt %162 : vector<16x1xf32>
    %164 = vector.broadcast %163 : vector<16x1xf32> to vector<16x32xf32>
    %165 = arith.mulf %160, %164 : vector<16x32xf32>
    %166 = vector.broadcast %106 : vector<1x32xf32> to vector<16x32xf32>
    %167 = arith.mulf %165, %166 : vector<16x32xf32>
    %168 = vector.broadcast %107 : vector<1x32xf32> to vector<16x32xf32>
    %169 = arith.addf %167, %168 : vector<16x32xf32>
    %c1 = arith.constant 1 : index
    %c0_50 = arith.constant 0 : index
    %c0_51 = arith.constant 0 : index
    %170 = vector.load %arg2[%c1, %c0_50, %c0_51] : memref<2x32x128xf32, #tpu.memory_space<vmem>>, vector<1x32x128xf32>
    %171 = vector.shape_cast %170 : vector<1x32x128xf32> to vector<32x128xf32>
    %c1_52 = arith.constant 1 : index
    %c0_53 = arith.constant 0 : index
    %c0_54 = arith.constant 0 : index
    %172 = vector.load %arg3[%c1_52, %c0_53, %c0_54] : memref<2x8x128xf32, #tpu.memory_space<vmem>>, vector<1x8x128xf32>
    %173 = vector.shape_cast %172 : vector<1x8x128xf32> to vector<8x128xf32>
    %174 = vector.extract_strided_slice %173 {offsets = [0, 0], sizes = [1, 128], strides = [1, 1]} : vector<8x128xf32> to vector<1x128xf32>
    %cst_55 = arith.constant dense<0.000000e+00> : vector<16x128xf32>
    %175 = tpu.matmul %169, %171, %cst_55 {dimension_numbers = #tpu.dot_dimension_numbers<[1], [0], [0], [1], [0, 0, 1, 1], [], []>} : vector<16x32xf32>, vector<32x128xf32>, vector<16x128xf32> -> vector<16x128xf32>
    %176 = vector.broadcast %174 : vector<1x128xf32> to vector<16x128xf32>
    %177 = arith.addf %175, %176 : vector<16x128xf32>
    %178 = vector.extract_strided_slice %177 {offsets = [0, 0], sizes = [16, 32], strides = [1, 1]} : vector<16x128xf32> to vector<16x32xf32>
    %179 = vector.extract_strided_slice %177 {offsets = [0, 32], sizes = [16, 32], strides = [1, 1]} : vector<16x128xf32> to vector<16x32xf32>
    %180 = vector.extract_strided_slice %177 {offsets = [0, 64], sizes = [16, 32], strides = [1, 1]} : vector<16x128xf32> to vector<16x32xf32>
    %181 = vector.extract_strided_slice %178 {offsets = [0, 0], sizes = [16, 8], strides = [1, 1]} : vector<16x32xf32> to vector<16x8xf32>
    %182 = vector.extract_strided_slice %179 {offsets = [0, 0], sizes = [16, 8], strides = [1, 1]} : vector<16x32xf32> to vector<16x8xf32>
    %183 = vector.extract_strided_slice %180 {offsets = [0, 0], sizes = [16, 8], strides = [1, 1]} : vector<16x32xf32> to vector<16x8xf32>
    %cst_56 = arith.constant dense<0.000000e+00> : vector<16x16xf32>
    %184 = tpu.matmul %181, %182, %cst_56 {dimension_numbers = #tpu.dot_dimension_numbers<[1], [1], [0], [0], [0, 0, 1, 0], [], []>} : vector<16x8xf32>, vector<16x8xf32>, vector<16x16xf32> -> vector<16x16xf32>
    %cst_57 = arith.constant 0.353553385 : f32
    %185 = vector.broadcast %cst_57 : f32 to vector<16x16xf32>
    %186 = arith.mulf %184, %185 : vector<16x16xf32>
    %187 = arith.addf %186, %5 : vector<16x16xf32>
    %cst_58 = arith.constant dense<0xFF800000> : vector<16xf32>
    %188 = vector.multi_reduction <maximumf>, %187, %cst_58 [1] : vector<16x16xf32> to vector<16xf32>
    %189 = vector.shape_cast %188 : vector<16xf32> to vector<16x1xf32>
    %190 = vector.broadcast %189 : vector<16x1xf32> to vector<16x16xf32>
    %191 = arith.subf %187, %190 : vector<16x16xf32>
    %192 = math.exp %191 : vector<16x16xf32>
    %cst_59 = arith.constant dense<0.000000e+00> : vector<16xf32>
    %193 = vector.multi_reduction <add>, %192, %cst_59 [1] : vector<16x16xf32> to vector<16xf32>
    %194 = vector.shape_cast %193 : vector<16xf32> to vector<16x1xf32>
    %195 = tpu.reciprocal %194 : vector<16x1xf32> -> vector<16x1xf32>
    %196 = vector.broadcast %195 : vector<16x1xf32> to vector<16x16xf32>
    %197 = arith.mulf %192, %196 : vector<16x16xf32>
    %cst_60 = arith.constant dense<0.000000e+00> : vector<16x8xf32>
    %198 = tpu.matmul %197, %183, %cst_60 {dimension_numbers = #tpu.dot_dimension_numbers<[1], [0], [0], [1], [0, 0, 1, 1], [], []>} : vector<16x16xf32>, vector<16x8xf32>, vector<16x8xf32> -> vector<16x8xf32>
    %199 = vector.extract_strided_slice %178 {offsets = [0, 8], sizes = [16, 8], strides = [1, 1]} : vector<16x32xf32> to vector<16x8xf32>
    %200 = vector.extract_strided_slice %179 {offsets = [0, 8], sizes = [16, 8], strides = [1, 1]} : vector<16x32xf32> to vector<16x8xf32>
    %201 = vector.extract_strided_slice %180 {offsets = [0, 8], sizes = [16, 8], strides = [1, 1]} : vector<16x32xf32> to vector<16x8xf32>
    %cst_61 = arith.constant dense<0.000000e+00> : vector<16x16xf32>
    %202 = tpu.matmul %199, %200, %cst_61 {dimension_numbers = #tpu.dot_dimension_numbers<[1], [1], [0], [0], [0, 0, 1, 0], [], []>} : vector<16x8xf32>, vector<16x8xf32>, vector<16x16xf32> -> vector<16x16xf32>
    %cst_62 = arith.constant 0.353553385 : f32
    %203 = vector.broadcast %cst_62 : f32 to vector<16x16xf32>
    %204 = arith.mulf %202, %203 : vector<16x16xf32>
    %205 = arith.addf %204, %5 : vector<16x16xf32>
    %cst_63 = arith.constant dense<0xFF800000> : vector<16xf32>
    %206 = vector.multi_reduction <maximumf>, %205, %cst_63 [1] : vector<16x16xf32> to vector<16xf32>
    %207 = vector.shape_cast %206 : vector<16xf32> to vector<16x1xf32>
    %208 = vector.broadcast %207 : vector<16x1xf32> to vector<16x16xf32>
    %209 = arith.subf %205, %208 : vector<16x16xf32>
    %210 = math.exp %209 : vector<16x16xf32>
    %cst_64 = arith.constant dense<0.000000e+00> : vector<16xf32>
    %211 = vector.multi_reduction <add>, %210, %cst_64 [1] : vector<16x16xf32> to vector<16xf32>
    %212 = vector.shape_cast %211 : vector<16xf32> to vector<16x1xf32>
    %213 = tpu.reciprocal %212 : vector<16x1xf32> -> vector<16x1xf32>
    %214 = vector.broadcast %213 : vector<16x1xf32> to vector<16x16xf32>
    %215 = arith.mulf %210, %214 : vector<16x16xf32>
    %cst_65 = arith.constant dense<0.000000e+00> : vector<16x8xf32>
    %216 = tpu.matmul %215, %201, %cst_65 {dimension_numbers = #tpu.dot_dimension_numbers<[1], [0], [0], [1], [0, 0, 1, 1], [], []>} : vector<16x16xf32>, vector<16x8xf32>, vector<16x8xf32> -> vector<16x8xf32>
    %217 = vector.extract_strided_slice %178 {offsets = [0, 16], sizes = [16, 8], strides = [1, 1]} : vector<16x32xf32> to vector<16x8xf32>
    %218 = vector.extract_strided_slice %179 {offsets = [0, 16], sizes = [16, 8], strides = [1, 1]} : vector<16x32xf32> to vector<16x8xf32>
    %219 = vector.extract_strided_slice %180 {offsets = [0, 16], sizes = [16, 8], strides = [1, 1]} : vector<16x32xf32> to vector<16x8xf32>
    %cst_66 = arith.constant dense<0.000000e+00> : vector<16x16xf32>
    %220 = tpu.matmul %217, %218, %cst_66 {dimension_numbers = #tpu.dot_dimension_numbers<[1], [1], [0], [0], [0, 0, 1, 0], [], []>} : vector<16x8xf32>, vector<16x8xf32>, vector<16x16xf32> -> vector<16x16xf32>
    %cst_67 = arith.constant 0.353553385 : f32
    %221 = vector.broadcast %cst_67 : f32 to vector<16x16xf32>
    %222 = arith.mulf %220, %221 : vector<16x16xf32>
    %223 = arith.addf %222, %5 : vector<16x16xf32>
    %cst_68 = arith.constant dense<0xFF800000> : vector<16xf32>
    %224 = vector.multi_reduction <maximumf>, %223, %cst_68 [1] : vector<16x16xf32> to vector<16xf32>
    %225 = vector.shape_cast %224 : vector<16xf32> to vector<16x1xf32>
    %226 = vector.broadcast %225 : vector<16x1xf32> to vector<16x16xf32>
    %227 = arith.subf %223, %226 : vector<16x16xf32>
    %228 = math.exp %227 : vector<16x16xf32>
    %cst_69 = arith.constant dense<0.000000e+00> : vector<16xf32>
    %229 = vector.multi_reduction <add>, %228, %cst_69 [1] : vector<16x16xf32> to vector<16xf32>
    %230 = vector.shape_cast %229 : vector<16xf32> to vector<16x1xf32>
    %231 = tpu.reciprocal %230 : vector<16x1xf32> -> vector<16x1xf32>
    %232 = vector.broadcast %231 : vector<16x1xf32> to vector<16x16xf32>
    %233 = arith.mulf %228, %232 : vector<16x16xf32>
    %cst_70 = arith.constant dense<0.000000e+00> : vector<16x8xf32>
    %234 = tpu.matmul %233, %219, %cst_70 {dimension_numbers = #tpu.dot_dimension_numbers<[1], [0], [0], [1], [0, 0, 1, 1], [], []>} : vector<16x16xf32>, vector<16x8xf32>, vector<16x8xf32> -> vector<16x8xf32>
    %235 = vector.extract_strided_slice %178 {offsets = [0, 24], sizes = [16, 8], strides = [1, 1]} : vector<16x32xf32> to vector<16x8xf32>
    %236 = vector.extract_strided_slice %179 {offsets = [0, 24], sizes = [16, 8], strides = [1, 1]} : vector<16x32xf32> to vector<16x8xf32>
    %237 = vector.extract_strided_slice %180 {offsets = [0, 24], sizes = [16, 8], strides = [1, 1]} : vector<16x32xf32> to vector<16x8xf32>
    %cst_71 = arith.constant dense<0.000000e+00> : vector<16x16xf32>
    %238 = tpu.matmul %235, %236, %cst_71 {dimension_numbers = #tpu.dot_dimension_numbers<[1], [1], [0], [0], [0, 0, 1, 0], [], []>} : vector<16x8xf32>, vector<16x8xf32>, vector<16x16xf32> -> vector<16x16xf32>
    %cst_72 = arith.constant 0.353553385 : f32
    %239 = vector.broadcast %cst_72 : f32 to vector<16x16xf32>
    %240 = arith.mulf %238, %239 : vector<16x16xf32>
    %241 = arith.addf %240, %5 : vector<16x16xf32>
    %cst_73 = arith.constant dense<0xFF800000> : vector<16xf32>
    %242 = vector.multi_reduction <maximumf>, %241, %cst_73 [1] : vector<16x16xf32> to vector<16xf32>
    %243 = vector.shape_cast %242 : vector<16xf32> to vector<16x1xf32>
    %244 = vector.broadcast %243 : vector<16x1xf32> to vector<16x16xf32>
    %245 = arith.subf %241, %244 : vector<16x16xf32>
    %246 = math.exp %245 : vector<16x16xf32>
    %cst_74 = arith.constant dense<0.000000e+00> : vector<16xf32>
    %247 = vector.multi_reduction <add>, %246, %cst_74 [1] : vector<16x16xf32> to vector<16xf32>
    %248 = vector.shape_cast %247 : vector<16xf32> to vector<16x1xf32>
    %249 = tpu.reciprocal %248 : vector<16x1xf32> -> vector<16x1xf32>
    %250 = vector.broadcast %249 : vector<16x1xf32> to vector<16x16xf32>
    %251 = arith.mulf %246, %250 : vector<16x16xf32>
    %cst_75 = arith.constant dense<0.000000e+00> : vector<16x8xf32>
    %252 = tpu.matmul %251, %237, %cst_75 {dimension_numbers = #tpu.dot_dimension_numbers<[1], [0], [0], [1], [0, 0, 1, 1], [], []>} : vector<16x16xf32>, vector<16x8xf32>, vector<16x8xf32> -> vector<16x8xf32>
    %253 = tpu.concatenate %198, %216, %234, %252 in 1 : vector<16x8xf32>, vector<16x8xf32>, vector<16x8xf32>, vector<16x8xf32> -> vector<16x32xf32>
    %254 = vector.extract_strided_slice %171 {offsets = [0, 96], sizes = [32, 32], strides = [1, 1]} : vector<32x128xf32> to vector<32x32xf32>
    %255 = vector.extract_strided_slice %174 {offsets = [0, 96], sizes = [1, 32], strides = [1, 1]} : vector<1x128xf32> to vector<1x32xf32>
    %cst_76 = arith.constant dense<0.000000e+00> : vector<16x32xf32>
    %256 = tpu.matmul %253, %254, %cst_76 {dimension_numbers = #tpu.dot_dimension_numbers<[1], [0], [0], [1], [0, 0, 1, 1], [], []>} : vector<16x32xf32>, vector<32x32xf32>, vector<16x32xf32> -> vector<16x32xf32>
    %257 = vector.broadcast %255 : vector<1x32xf32> to vector<16x32xf32>
    %258 = arith.addf %256, %257 : vector<16x32xf32>
    %259 = vector.extract_strided_slice %173 {offsets = [1, 0], sizes = [1, 32], strides = [1, 1]} : vector<8x128xf32> to vector<1x32xf32>
    %260 = vector.extract_strided_slice %173 {offsets = [2, 0], sizes = [1, 32], strides = [1, 1]} : vector<8x128xf32> to vector<1x32xf32>
    %261 = vector.extract_strided_slice %173 {offsets = [3, 0], sizes = [1, 64], strides = [1, 1]} : vector<8x128xf32> to vector<1x64xf32>
    %262 = vector.extract_strided_slice %173 {offsets = [4, 0], sizes = [1, 32], strides = [1, 1]} : vector<8x128xf32> to vector<1x32xf32>
    %263 = vector.extract_strided_slice %173 {offsets = [5, 0], sizes = [1, 32], strides = [1, 1]} : vector<8x128xf32> to vector<1x32xf32>
    %264 = vector.extract_strided_slice %173 {offsets = [6, 0], sizes = [1, 32], strides = [1, 1]} : vector<8x128xf32> to vector<1x32xf32>
    %265 = arith.addf %169, %258 : vector<16x32xf32>
    %cst_77 = arith.constant dense<0.000000e+00> : vector<16xf32>
    %266 = vector.multi_reduction <add>, %265, %cst_77 [1] : vector<16x32xf32> to vector<16xf32>
    %267 = vector.shape_cast %266 : vector<16xf32> to vector<16x1xf32>
    %cst_78 = arith.constant 3.200000e+01 : f32
    %268 = vector.broadcast %cst_78 : f32 to vector<16x1xf32>
    %269 = arith.divf %267, %268 : vector<16x1xf32>
    %270 = vector.broadcast %269 : vector<16x1xf32> to vector<16x32xf32>
    %271 = arith.subf %265, %270 : vector<16x32xf32>
    %272 = vector.broadcast %269 : vector<16x1xf32> to vector<16x32xf32>
    %273 = arith.subf %265, %272 : vector<16x32xf32>
    %274 = arith.mulf %271, %273 : vector<16x32xf32>
    %cst_79 = arith.constant dense<0.000000e+00> : vector<16xf32>
    %275 = vector.multi_reduction <add>, %274, %cst_79 [1] : vector<16x32xf32> to vector<16xf32>
    %276 = vector.shape_cast %275 : vector<16xf32> to vector<16x1xf32>
    %cst_80 = arith.constant 3.200000e+01 : f32
    %277 = vector.broadcast %cst_80 : f32 to vector<16x1xf32>
    %278 = arith.divf %276, %277 : vector<16x1xf32>
    %279 = vector.broadcast %269 : vector<16x1xf32> to vector<16x32xf32>
    %280 = arith.subf %265, %279 : vector<16x32xf32>
    %cst_81 = arith.constant 9.99999974E-6 : f32
    %281 = vector.broadcast %cst_81 : f32 to vector<16x1xf32>
    %282 = arith.addf %278, %281 : vector<16x1xf32>
    %283 = math.rsqrt %282 : vector<16x1xf32>
    %284 = vector.broadcast %283 : vector<16x1xf32> to vector<16x32xf32>
    %285 = arith.mulf %280, %284 : vector<16x32xf32>
    %286 = vector.broadcast %259 : vector<1x32xf32> to vector<16x32xf32>
    %287 = arith.mulf %285, %286 : vector<16x32xf32>
    %288 = vector.broadcast %260 : vector<1x32xf32> to vector<16x32xf32>
    %289 = arith.addf %287, %288 : vector<16x32xf32>
    %c1_82 = arith.constant 1 : index
    %c0_83 = arith.constant 0 : index
    %c0_84 = arith.constant 0 : index
    %290 = vector.load %arg4[%c1_82, %c0_83, %c0_84] : memref<2x32x64xf32, #tpu.memory_space<vmem>>, vector<1x32x64xf32>
    %291 = vector.shape_cast %290 : vector<1x32x64xf32> to vector<32x64xf32>
    %cst_85 = arith.constant dense<0.000000e+00> : vector<16x64xf32>
    %292 = tpu.matmul %289, %291, %cst_85 {dimension_numbers = #tpu.dot_dimension_numbers<[1], [0], [0], [1], [0, 0, 1, 1], [], []>} : vector<16x32xf32>, vector<32x64xf32>, vector<16x64xf32> -> vector<16x64xf32>
    %293 = vector.broadcast %261 : vector<1x64xf32> to vector<16x64xf32>
    %294 = arith.addf %292, %293 : vector<16x64xf32>
    %cst_86 = arith.constant 0.000000e+00 : f32
    %295 = vector.broadcast %cst_86 : f32 to vector<16x64xf32>
    %296 = arith.maximumf %294, %295 : vector<16x64xf32>
    %c1_87 = arith.constant 1 : index
    %c0_88 = arith.constant 0 : index
    %c0_89 = arith.constant 0 : index
    %297 = vector.load %arg5[%c1_87, %c0_88, %c0_89] : memref<2x64x32xf32, #tpu.memory_space<vmem>>, vector<1x64x32xf32>
    %298 = vector.shape_cast %297 : vector<1x64x32xf32> to vector<64x32xf32>
    %cst_90 = arith.constant dense<0.000000e+00> : vector<16x32xf32>
    %299 = tpu.matmul %296, %298, %cst_90 {dimension_numbers = #tpu.dot_dimension_numbers<[1], [0], [0], [1], [0, 0, 1, 1], [], []>} : vector<16x64xf32>, vector<64x32xf32>, vector<16x32xf32> -> vector<16x32xf32>
    %300 = vector.broadcast %262 : vector<1x32xf32> to vector<16x32xf32>
    %301 = arith.addf %299, %300 : vector<16x32xf32>
    %302 = arith.addf %289, %301 : vector<16x32xf32>
    %cst_91 = arith.constant dense<0.000000e+00> : vector<16xf32>
    %303 = vector.multi_reduction <add>, %302, %cst_91 [1] : vector<16x32xf32> to vector<16xf32>
    %304 = vector.shape_cast %303 : vector<16xf32> to vector<16x1xf32>
    %cst_92 = arith.constant 3.200000e+01 : f32
    %305 = vector.broadcast %cst_92 : f32 to vector<16x1xf32>
    %306 = arith.divf %304, %305 : vector<16x1xf32>
    %307 = vector.broadcast %306 : vector<16x1xf32> to vector<16x32xf32>
    %308 = arith.subf %302, %307 : vector<16x32xf32>
    %309 = vector.broadcast %306 : vector<16x1xf32> to vector<16x32xf32>
    %310 = arith.subf %302, %309 : vector<16x32xf32>
    %311 = arith.mulf %308, %310 : vector<16x32xf32>
    %cst_93 = arith.constant dense<0.000000e+00> : vector<16xf32>
    %312 = vector.multi_reduction <add>, %311, %cst_93 [1] : vector<16x32xf32> to vector<16xf32>
    %313 = vector.shape_cast %312 : vector<16xf32> to vector<16x1xf32>
    %cst_94 = arith.constant 3.200000e+01 : f32
    %314 = vector.broadcast %cst_94 : f32 to vector<16x1xf32>
    %315 = arith.divf %313, %314 : vector<16x1xf32>
    %316 = vector.broadcast %306 : vector<16x1xf32> to vector<16x32xf32>
    %317 = arith.subf %302, %316 : vector<16x32xf32>
    %cst_95 = arith.constant 9.99999974E-6 : f32
    %318 = vector.broadcast %cst_95 : f32 to vector<16x1xf32>
    %319 = arith.addf %315, %318 : vector<16x1xf32>
    %320 = math.rsqrt %319 : vector<16x1xf32>
    %321 = vector.broadcast %320 : vector<16x1xf32> to vector<16x32xf32>
    %322 = arith.mulf %317, %321 : vector<16x32xf32>
    %323 = vector.broadcast %263 : vector<1x32xf32> to vector<16x32xf32>
    %324 = arith.mulf %322, %323 : vector<16x32xf32>
    %325 = vector.broadcast %264 : vector<1x32xf32> to vector<16x32xf32>
    %326 = arith.addf %324, %325 : vector<16x32xf32>
    %c0_96 = arith.constant 0 : index
    %c0_97 = arith.constant 0 : index
    %327 = vector.load %arg6[%c0_96, %c0_97] : memref<16x32xf32, #tpu.memory_space<vmem>>, vector<16x32xf32>
    tpu.vector_store %arg6[%c0_96, %c0_97], %326 {strides = array<i32>} : memref<16x32xf32, #tpu.memory_space<vmem>>, vector<16x32xf32>,
    return
  }
}

</mosaic_0001>

<llo_original>
// kernel: forward.1
$region0: #{forward.1}
  #allocation0 [shape = 'u32[]', space=smem, size = 0x4, offset = 0x4, fixed_abs, tag = 'smem constant byte address 0x4 - core index']
  #allocation1 [shape = 'u32[144,128]{1,0:T(1,128)}', space=vmem, size = 0x12000, scoped, tag = 'internal scratch']
  %s0 = inlined_call_operand.vmem [shape: f32[16,8], index: 0, kind: input, shape index: {}]
  %s1 = inlined_call_operand.vmem [shape: f32[48,32], index: 1, kind: input, shape index: {}]
  %s2 = inlined_call_operand.vmem [shape: f32[2,32,128], index: 2, kind: input, shape index: {}]
  %s3 = inlined_call_operand.vmem [shape: f32[2,8,128], index: 3, kind: input, shape index: {}]
  %s4 = inlined_call_operand.vmem [shape: f32[2,32,64], index: 4, kind: input, shape index: {}]
  %s5 = inlined_call_operand.vmem [shape: f32[2,64,32], index: 5, kind: input, shape index: {}]
  %s6 = inlined_call_operand.hbm [shape: f32[16,32], index: 6, kind: output, shape index: {}]
  %s7 = sld [smem:[#allocation0]]
  $region34: #{forward.1} parent=0
    _
  %s9 = ssub.s32 1, %s7
  %s10 = scalar_select 0, %s9, %s7
  $region1: #{forward.1} parent=0
    #allocation2 [shape = 'u8[8192]{0}', space=vmem, size = 0x2000, scoped, tag = 'output window, operand 0, single buffered']
    #allocation3 [shape = 's32[1]{0}', space=sflag, size = 0x4, scoped, tag = 'scoped memory for forward.1']
    %11 = vsyncpa [#allocation3], 0
    // Predicated region
    $region2: #{forward.1} parent=1 // pred_check
      _
    $region3: #{forward.1} parent=1 // pred_check_branch
      %13 = sbr.rel (0) target = $region5
    $region4: #{forward.1} parent=1 // pred_region
      _
    $region5: #{forward.1} parent=1 // pred_fallthru
      _
    // Predicated region
    $region6: #{forward.1} parent=1 // pred_check
      _
    $region7: #{forward.1} parent=1 // pred_check_branch
      %15 = sbr.rel (0) target = $region9
    $region8: #{forward.1} parent=1 // pred_region
      _
    $region9: #{forward.1} parent=1 // pred_fallthru
      _
    // Predicated region
    $region10: #{forward.1} parent=1 // pred_check
      _
    $region11: #{forward.1} parent=1 // pred_check_branch
      %17 = sbr.rel (0) target = $region13
    $region12: #{forward.1} parent=1 // pred_region
      _
    $region13: #{forward.1} parent=1 // pred_fallthru
      _
    // Predicated region
    $region14: #{forward.1} parent=1 // pred_check
      _
    $region15: #{forward.1} parent=1 // pred_check_branch
      %19 = sbr.rel (0) target = $region17
    $region16: #{forward.1} parent=1 // pred_region
      _
    $region17: #{forward.1} parent=1 // pred_fallthru
      _
    // Predicated region
    $region18: #{forward.1} parent=1 // pred_check
      _
    $region19: #{forward.1} parent=1 // pred_check_branch
      %21 = sbr.rel (0) target = $region21
    $region20: #{forward.1} parent=1 // pred_region
      _
    $region21: #{forward.1} parent=1 // pred_fallthru
      _
    // Predicated region
    $region22: #{forward.1} parent=1 // pred_check
      _
    $region23: #{forward.1} parent=1 // pred_check_branch
      %23 = sbr.rel (0) target = $region25
    $region24: #{forward.1} parent=1 // pred_region
      _
    $region25: #{forward.1} parent=1 // pred_fallthru
      _
    %v24 = vld [vmem:[%s1] sm:$0xff]
    %v25 = vld [vmem:[%s1 + $0x8] sm:$0xff]
    %v26 = vld [vmem:[%s1 + $0x10] sm:$0xff]
    %v27 = vld [vmem:[%s1 + $0x18] sm:$0xff]
    %v28 = vld [vmem:[%s1 + $0x20] sm:$0xff]
    %v29 = vld [vmem:[%s1 + $0x28] sm:$0xff]
    %v30 = vld [vmem:[%s0] sm:$0xff]
    %v31 = vld [vmem:[%s0 + $0x8] sm:$0xff]
    %v32 = vlaneseq
    %v33 = vshrl.u32 %v32, 7
    %v34 = vsub.s32 0, %v33
    %v35 = vrot.slane %v25, %v34
    %vm36 = vcmask 64512
    %v38 = vsel %vm36, %v30, 0
    %v41 = vsel %vm36, %v31, 0
    %43 = vmatprep.subr.mxu0 0.0
    %44 = vmatpush1.msra.mxu0 %v24
    %45 = vmatprep.subr.mxu0 0.0
    %46 = vmatpush1.msra.mxu0 0.0
    %47 = vmatprep.subr.mxu0 0.0
    %48 = vmatpush1.msra.mxu0 0.0
    %49 = vmatprep.subr.mxu0 0.0
    %50 = vmatpush1.msra.mxu0 0.0
    %51 = vmatprep.subr.mxu0 0.0
    %52 = vmatpush1.msra.mxu0 0.0
    %53 = vmatprep.subr.mxu0 0.0
    %54 = vmatpush1.msra.mxu0 0.0
    %55 = vmatprep.subr.mxu0 0.0
    %56 = vmatpush1.msra.mxu0 0.0
    %57 = vmatprep.subr.mxu0 0.0
    %58 = vmatpush1.msra.mxu0 0.0
    %59 = vmatprep.subr.mxu0 0.0
    %60 = vmatpush1.msra.mxu0 0.0
    %61 = vmatprep.subr.mxu0 0.0
    %62 = vmatpush1.msra.mxu0 0.0
    %63 = vmatprep.subr.mxu0 0.0
    %64 = vmatpush1.msra.mxu0 0.0
    %65 = vmatprep.subr.mxu0 0.0
    %66 = vmatpush1.msra.mxu0 0.0
    %67 = vmatprep.subr.mxu0 0.0
    %68 = vmatpush1.msra.mxu0 0.0
    %69 = vmatprep.subr.mxu0 0.0
    %70 = vmatpush1.msra.mxu0 0.0
    %71 = vmatprep.subr.mxu0 0.0
    %72 = vmatpush1.msra.mxu0 0.0
    %73 = vmatprep.subr.mxu0 0.0
    %74 = vmatpush1.msra.mxu0 0.0
    %75 = vmatprep.subr.mxu0 0.0
    %76 = vmatpush1.msra.mxu0 0.0
    %77 = vmatprep.subr.mxu0 0.0
    %78 = vmatpush1.msra.mxu0 0.0
    %79 = vmatprep.subr.mxu0 0.0
    %80 = vmatpush1.msra.mxu0 0.0
    %81 = vmatprep.subr.mxu0 0.0
    %82 = vmatpush1.msra.mxu0 0.0
    %83 = vmatprep.subr.mxu0 0.0
    %84 = vmatpush1.msra.mxu0 0.0
    %85 = vmatprep.subr.mxu0 0.0
    %86 = vmatpush1.msra.mxu0 0.0
    %87 = vmatprep.subr.mxu0 0.0
    %88 = vmatpush1.msra.mxu0 0.0
    %89 = vmatprep.subr.mxu0 0.0
    %90 = vmatpush1.msra.mxu0 0.0
    %91 = vmatprep.subr.mxu0 0.0
    %92 = vmatpush1.msra.mxu0 0.0
    %93 = vmatprep.subr.mxu0 0.0
    %94 = vmatpush1.msra.mxu0 0.0
    %95 = vmatprep.subr.mxu0 0.0
    %96 = vmatpush1.msra.mxu0 0.0
    %97 = vmatprep.subr.mxu0 0.0
    %98 = vmatpush1.msra.mxu0 0.0
    %99 = vmatprep.subr.mxu0 0.0
    %100 = vmatpush1.msra.mxu0 0.0
    %101 = vmatprep.subr.mxu0 0.0
    %102 = vmatpush1.msra.mxu0 0.0
    %103 = vmatprep.subr.mxu0 0.0
    %104 = vmatpush1.msra.mxu0 0.0
    %105 = vmatprep.subr.mxu0 0.0
    %106 = vmatpush1.msra.mxu0 0.0
    %107 = vmatprep.mubr.f32.mxu0 0.0
    %108 = vmatmul.mubr.f32.gmra.mrb[0].mxu0 %v38
    %v109 = vpop.f32.mrb[0].mxu0
    %v110 = vadd.f32 %v35, %v109
    %v111 = vpop.f32.mrb[0].mxu0
    %112 = vmatprep.mubr.f32.mxu0 0.0
    %113 = vmatmul.mubr.f32.gmra.mrb[0].mxu0 %v41
    %v114 = vpop.f32.mrb[0].mxu0
    %v115 = vadd.f32 %v35, %v114
    %v116 = vpop.f32.mrb[0].mxu0
    %117 = vdwg.mxu0
    %v118 = vlaneseq
    %v119 = vshrl.u32 %v118, 7
    %v120 = vsub.s32 1, %v119
    %v121 = vrot.slane %v25, %v120
    %v122 = vmax.f32 %v110, %v121
    %v123 = vmax.f32 %v115, %v121
    %v124 = vadd.f32 %v122, %v26
    %v125 = vadd.f32 %v123, %v27
    %v126 = vld [vmem:[%s2] sm:$0xff]
    %v127 = vld [vmem:[%s2 + $0x8] sm:$0xff]
    %v128 = vld [vmem:[%s2 + $0x10] sm:$0xff]
    %v129 = vld [vmem:[%s2 + $0x18] sm:$0xff]
    %v130 = vld [vmem:[%s3] sm:$0xff]
    %v131 = vlaneseq
    %v132 = vshrl.u32 %v131, 7
    %v133 = vsub.s32 0, %v132
    %v134 = vrot.slane %v130, %v133
    %vm135 = vcmask 261120
    %v137 = vsel %vm135, %v124, 0
    %v140 = vsel %vm135, %v125, 0
    %142 = vmatprep.subr.mxu0 0.0
    %143 = vmatpush1.msra.mxu0 %v126
    %144 = vmatprep.subr.mxu0 0.0
    %145 = vmatpush1.msra.mxu0 %v127
    %146 = vmatprep.subr.mxu0 0.0
    %147 = vmatpush1.msra.mxu0 %v128
    %148 = vmatprep.subr.mxu0 0.0
    %149 = vmatpush1.msra.mxu0 %v129
    %150 = vmatprep.subr.mxu0 0.0
    %151 = vmatpush1.msra.mxu0 0.0
    %152 = vmatprep.subr.mxu0 0.0
    %153 = vmatpush1.msra.mxu0 0.0
    %154 = vmatprep.subr.mxu0 0.0
    %155 = vmatpush1.msra.mxu0 0.0
    %156 = vmatprep.subr.mxu0 0.0
    %157 = vmatpush1.msra.mxu0 0.0
    %158 = vmatprep.subr.mxu0 0.0
    %159 = vmatpush1.msra.mxu0 0.0
    %160 = vmatprep.subr.mxu0 0.0
    %161 = vmatpush1.msra.mxu0 0.0
    %162 = vmatprep.subr.mxu0 0.0
    %163 = vmatpush1.msra.mxu0 0.0
    %164 = vmatprep.subr.mxu0 0.0
    %165 = vmatpush1.msra.mxu0 0.0
    %166 = vmatprep.subr.mxu0 0.0
    %167 = vmatpush1.msra.mxu0 0.0
    %168 = vmatprep.subr.mxu0 0.0
    %169 = vmatpush1.msra.mxu0 0.0
    %170 = vmatprep.subr.mxu0 0.0
    %171 = vmatpush1.msra.mxu0 0.0
    %172 = vmatprep.subr.mxu0 0.0
    %173 = vmatpush1.msra.mxu0 0.0
    %174 = vmatprep.subr.mxu0 0.0
    %175 = vmatpush1.msra.mxu0 0.0
    %176 = vmatprep.subr.mxu0 0.0
    %177 = vmatpush1.msra.mxu0 0.0
    %178 = vmatprep.subr.mxu0 0.0
    %179 = vmatpush1.msra.mxu0 0.0
    %180 = vmatprep.subr.mxu0 0.0
    %181 = vmatpush1.msra.mxu0 0.0
    %182 = vmatprep.subr.mxu0 0.0
    %183 = vmatpush1.msra.mxu0 0.0
    %184 = vmatprep.subr.mxu0 0.0
    %185 = vmatpush1.msra.mxu0 0.0
    %186 = vmatprep.subr.mxu0 0.0
    %187 = vmatpush1.msra.mxu0 0.0
    %188 = vmatprep.subr.mxu0 0.0
    %189 = vmatpush1.msra.mxu0 0.0
    %190 = vmatprep.subr.mxu0 0.0
    %191 = vmatpush1.msra.mxu0 0.0
    %192 = vmatprep.subr.mxu0 0.0
    %193 = vmatpush1.msra.mxu0 0.0
    %194 = vmatprep.subr.mxu0 0.0
    %195 = vmatpush1.msra.mxu0 0.0
    %196 = vmatprep.subr.mxu0 0.0
    %197 = vmatpush1.msra.mxu0 0.0
    %198 = vmatprep.subr.mxu0 0.0
    %199 = vmatpush1.msra.mxu0 0.0
    %200 = vmatprep.subr.mxu0 0.0
    %201 = vmatpush1.msra.mxu0 0.0
    %202 = vmatprep.subr.mxu0 0.0
    %203 = vmatpush1.msra.mxu0 0.0
    %204 = vmatprep.subr.mxu0 0.0
    %205 = vmatpush1.msra.mxu0 0.0
    %206 = vmatprep.mubr.f32.mxu0 0.0
    %207 = vmatmul.mubr.f32.gmra.mrb[0].mxu0 %v137
    %v208 = vpop.f32.mrb[0].mxu0
    %v209 = vadd.f32 %v134, %v208
    %v210 = vpop.f32.mrb[0].mxu0
    %211 = vmatprep.mubr.f32.mxu0 0.0
    %212 = vmatmul.mubr.f32.gmra.mrb[0].mxu0 %v140
    %v213 = vpop.f32.mrb[0].mxu0
    %v214 = vadd.f32 %v134, %v213
    %v215 = vpop.f32.mrb[0].mxu0
    %216 = vdwg.mxu0
    %219 = vrot.lane.b32.xlu0 %v209, 96
    %v220 = vpop.permute.xlu0 %219
    %221 = vrot.lane.b32.xlu0 %v214, 96
    %v222 = vpop.permute.xlu0 %221
    %v223 = vsel %vm36, %v209, 0
    %v225 = vsel %vm36, %v214, 0
    %v227 = vsel %vm36, %v220, 0
    %v229 = vsel %vm36, %v222, 0
    %231 = vmatprep.subr.mxu0 0.0
    %232 = vmatpush1.xpose.msra.mxu0 %v227
    %233 = vmatprep.subr.mxu0 0.0
    %234 = vmatpush1.xpose.msra.mxu0 %v229
    %235 = vmatprep.subr.mxu0 0.0
    %236 = vmatpush1.xpose.msra.mxu0 0.0
    %237 = vmatprep.subr.mxu0 0.0
    %238 = vmatpush1.xpose.msra.mxu0 0.0
    %239 = vmatprep.subr.mxu0 0.0
    %240 = vmatpush1.xpose.msra.mxu0 0.0
    %241 = vmatprep.subr.mxu0 0.0
    %242 = vmatpush1.xpose.msra.mxu0 0.0
    %243 = vmatprep.subr.mxu0 0.0
    %244 = vmatpush1.xpose.msra.mxu0 0.0
    %245 = vmatprep.subr.mxu0 0.0
    %246 = vmatpush1.xpose.msra.mxu0 0.0
    %247 = vmatprep.subr.mxu0 0.0
    %248 = vmatpush1.xpose.msra.mxu0 0.0
    %249 = vmatprep.subr.mxu0 0.0
    %250 = vmatpush1.xpose.msra.mxu0 0.0
    %251 = vmatprep.subr.mxu0 0.0
    %252 = vmatpush1.xpose.msra.mxu0 0.0
    %253 = vmatprep.subr.mxu0 0.0
    %254 = vmatpush1.xpose.msra.mxu0 0.0
    %255 = vmatprep.subr.mxu0 0.0
    %256 = vmatpush1.xpose.msra.mxu0 0.0
    %257 = vmatprep.subr.mxu0 0.0
    %258 = vmatpush1.xpose.msra.mxu0 0.0
    %259 = vmatprep.subr.mxu0 0.0
    %260 = vmatpush1.xpose.msra.mxu0 0.0
    %261 = vmatprep.subr.mxu0 0.0
    %262 = vmatpush1.xpose.msra.mxu0 0.0
    %263 = vmatprep.subr.mxu0 0.0
    %264 = vmatpush1.xpose.msra.mxu0 0.0
    %265 = vmatprep.subr.mxu0 0.0
    %266 = vmatpush1.xpose.msra.mxu0 0.0
    %267 = vmatprep.subr.mxu0 0.0
    %268 = vmatpush1.xpose.msra.mxu0 0.0
    %269 = vmatprep.subr.mxu0 0.0
    %270 = vmatpush1.xpose.msra.mxu0 0.0
    %271 = vmatprep.subr.mxu0 0.0
    %272 = vmatpush1.xpose.msra.mxu0 0.0
    %273 = vmatprep.subr.mxu0 0.0
    %274 = vmatpush1.xpose.msra.mxu0 0.0
    %275 = vmatprep.subr.mxu0 0.0
    %276 = vmatpush1.xpose.msra.mxu0 0.0
    %277 = vmatprep.subr.mxu0 0.0
    %278 = vmatpush1.xpose.msra.mxu0 0.0
    %279 = vmatprep.subr.mxu0 0.0
    %280 = vmatpush1.xpose.msra.mxu0 0.0
    %281 = vmatprep.subr.mxu0 0.0
    %282 = vmatpush1.xpose.msra.mxu0 0.0
    %283 = vmatprep.subr.mxu0 0.0
    %284 = vmatpush1.xpose.msra.mxu0 0.0
    %285 = vmatprep.subr.mxu0 0.0
    %286 = vmatpush1.xpose.msra.mxu0 0.0
    %287 = vmatprep.subr.mxu0 0.0
    %288 = vmatpush1.xpose.msra.mxu0 0.0
    %289 = vmatprep.subr.mxu0 0.0
    %290 = vmatpush1.xpose.msra.mxu0 0.0
    %291 = vmatprep.subr.mxu0 0.0
    %292 = vmatpush1.xpose.msra.mxu0 0.0
    %293 = vmatprep.subr.mxu0 0.0
    %294 = vmatpush1.xpose.msra.mxu0 0.0
    %295 = vmatprep.mubr.f32.mxu0 0.0
    %296 = vmatmul.mubr.f32.gmra.mrb[0].mxu0 %v223
    %v297 = vpop.f32.mrb[0].mxu0
    %v298 = vadd.f32 0.0, %v297
    %v299 = vpop.f32.mrb[0].mxu0
    %300 = vmatprep.mubr.f32.mxu0 0.0
    %301 = vmatmul.mubr.f32.gmra.mrb[0].mxu0 %v225
    %v302 = vpop.f32.mrb[0].mxu0
    %v303 = vadd.f32 0.0, %v302
    %v304 = vpop.f32.mrb[0].mxu0
    %305 = vdwg.mxu0
    %v306 = vmul.f32 %v298, 0.35355338
    %v307 = vmul.f32 %v303, 0.35355338
    %v308 = vadd.f32 %v306, %v28
    %v309 = vadd.f32 %v307, %v29
    %vm310 = vcmask 130048
    %v311 = vsel %vm310, %v308, -inf
    %312 = vmax.xlane.f32.xlu0 %v311
    %v313 = vpop.xlane.xlu0 %312
    %v314 = vsel %vm310, %v309, -inf
    %315 = vmax.xlane.f32.xlu0 %v314
    %v316 = vpop.xlane.xlu0 %315
    %v317 = vsub.f32 %v308, %v313
    %v318 = vsub.f32 %v309, %v316
    %v319 = vmul.f32 %v317, 1.442695
    %v320 = vpow.pop %v319
    %v321 = vmul.f32 %v318, 1.442695
    %v322 = vpow.pop %v321
    %v323 = vsel %vm310, %v320, 0.0
    %324 = vadd.xlane.f32.xlu0 %v323
    %v325 = vpop.xlane.xlu0 %324
    %v326 = vsel %vm310, %v322, 0.0
    %327 = vadd.xlane.f32.xlu0 %v326
    %v328 = vpop.xlane.xlu0 %327
    %v329 = vrcp.pop %v325
    %v330 = vrcp.pop %v328
    %v331 = vmul.f32 %v320, %v329
    %v332 = vmul.f32 %v322, %v330
    %333 = vrot.lane.b32.xlu0 %v209, 64
    %v334 = vpop.permute.xlu0 %333
    %335 = vrot.lane.b32.xlu0 %v214, 64
    %v336 = vpop.permute.xlu0 %335
    %v340 = vsel %vm310, %v331, 0
    %v343 = vsel %vm310, %v332, 0
    %345 = vmatprep.subr.mxu0 0.0
    %346 = vmatpush1.msra.mxu0 %v334
    %347 = vmatprep.subr.mxu0 0.0
    %348 = vmatpush1.msra.mxu0 %v336
    %349 = vmatprep.subr.mxu0 0.0
    %350 = vmatpush1.msra.mxu0 0.0
    %351 = vmatprep.subr.mxu0 0.0
    %352 = vmatpush1.msra.mxu0 0.0
    %353 = vmatprep.subr.mxu0 0.0
    %354 = vmatpush1.msra.mxu0 0.0
    %355 = vmatprep.subr.mxu0 0.0
    %356 = vmatpush1.msra.mxu0 0.0
    %357 = vmatprep.subr.mxu0 0.0
    %358 = vmatpush1.msra.mxu0 0.0
    %359 = vmatprep.subr.mxu0 0.0
    %360 = vmatpush1.msra.mxu0 0.0
    %361 = vmatprep.subr.mxu0 0.0
    %362 = vmatpush1.msra.mxu0 0.0
    %363 = vmatprep.subr.mxu0 0.0
    %364 = vmatpush1.msra.mxu0 0.0
    %365 = vmatprep.subr.mxu0 0.0
    %366 = vmatpush1.msra.mxu0 0.0
    %367 = vmatprep.subr.mxu0 0.0
    %368 = vmatpush1.msra.mxu0 0.0
    %369 = vmatprep.subr.mxu0 0.0
    %370 = vmatpush1.msra.mxu0 0.0
    %371 = vmatprep.subr.mxu0 0.0
    %372 = vmatpush1.msra.mxu0 0.0
    %373 = vmatprep.subr.mxu0 0.0
    %374 = vmatpush1.msra.mxu0 0.0
    %375 = vmatprep.subr.mxu0 0.0
    %376 = vmatpush1.msra.mxu0 0.0
    %377 = vmatprep.subr.mxu0 0.0
    %378 = vmatpush1.msra.mxu0 0.0
    %379 = vmatprep.subr.mxu0 0.0
    %380 = vmatpush1.msra.mxu0 0.0
    %381 = vmatprep.subr.mxu0 0.0
    %382 = vmatpush1.msra.mxu0 0.0
    %383 = vmatprep.subr.mxu0 0.0
    %384 = vmatpush1.msra.mxu0 0.0
    %385 = vmatprep.subr.mxu0 0.0
    %386 = vmatpush1.msra.mxu0 0.0
    %387 = vmatprep.subr.mxu0 0.0
    %388 = vmatpush1.msra.mxu0 0.0
    %389 = vmatprep.subr.mxu0 0.0
    %390 = vmatpush1.msra.mxu0 0.0
    %391 = vmatprep.subr.mxu0 0.0
    %392 = vmatpush1.msra.mxu0 0.0
    %393 = vmatprep.subr.mxu0 0.0
    %394 = vmatpush1.msra.mxu0 0.0
    %395 = vmatprep.subr.mxu0 0.0
    %396 = vmatpush1.msra.mxu0 0.0
    %397 = vmatprep.subr.mxu0 0.0
    %398 = vmatpush1.msra.mxu0 0.0
    %399 = vmatprep.subr.mxu0 0.0
    %400 = vmatpush1.msra.mxu0 0.0
    %401 = vmatprep.subr.mxu0 0.0
    %402 = vmatpush1.msra.mxu0 0.0
    %403 = vmatprep.subr.mxu0 0.0
    %404 = vmatpush1.msra.mxu0 0.0
    %405 = vmatprep.subr.mxu0 0.0
    %406 = vmatpush1.msra.mxu0 0.0
    %407 = vmatprep.subr.mxu0 0.0
    %408 = vmatpush1.msra.mxu0 0.0
    %409 = vmatprep.mubr.f32.mxu0 0.0
    %410 = vmatmul.mubr.f32.gmra.mrb[0].mxu0 %v340
    %v411 = vpop.f32.mrb[0].mxu0
    %v412 = vadd.f32 0.0, %v411
    %v413 = vpop.f32.mrb[0].mxu0
    %414 = vmatprep.mubr.f32.mxu0 0.0
    %415 = vmatmul.mubr.f32.gmra.mrb[0].mxu0 %v343
    %v416 = vpop.f32.mrb[0].mxu0
    %v417 = vadd.f32 0.0, %v416
    %v418 = vpop.f32.mrb[0].mxu0
    %419 = vdwg.mxu0
    %420 = vrot.lane.b32.xlu0 %v209, 120
    %v421 = vpop.permute.xlu0 %420
    %422 = vrot.lane.b32.xlu0 %v214, 120
    %v423 = vpop.permute.xlu0 %422
    %424 = vrot.lane.b32.xlu0 %v209, 88
    %v425 = vpop.permute.xlu0 %424
    %426 = vrot.lane.b32.xlu0 %v214, 88
    %v427 = vpop.permute.xlu0 %426
    %v428 = vsel %vm36, %v421, 0
    %v430 = vsel %vm36, %v423, 0
    %v432 = vsel %vm36, %v425, 0
    %v434 = vsel %vm36, %v427, 0
    %436 = vmatprep.subr.mxu0 0.0
    %437 = vmatpush1.xpose.msra.mxu0 %v432
    %438 = vmatprep.subr.mxu0 0.0
    %439 = vmatpush1.xpose.msra.mxu0 %v434
    %440 = vmatprep.subr.mxu0 0.0
    %441 = vmatpush1.xpose.msra.mxu0 0.0
    %442 = vmatprep.subr.mxu0 0.0
    %443 = vmatpush1.xpose.msra.mxu0 0.0
    %444 = vmatprep.subr.mxu0 0.0
    %445 = vmatpush1.xpose.msra.mxu0 0.0
    %446 = vmatprep.subr.mxu0 0.0
    %447 = vmatpush1.xpose.msra.mxu0 0.0
    %448 = vmatprep.subr.mxu0 0.0
    %449 = vmatpush1.xpose.msra.mxu0 0.0
    %450 = vmatprep.subr.mxu0 0.0
    %451 = vmatpush1.xpose.msra.mxu0 0.0
    %452 = vmatprep.subr.mxu0 0.0
    %453 = vmatpush1.xpose.msra.mxu0 0.0
    %454 = vmatprep.subr.mxu0 0.0
    %455 = vmatpush1.xpose.msra.mxu0 0.0
    %456 = vmatprep.subr.mxu0 0.0
    %457 = vmatpush1.xpose.msra.mxu0 0.0
    %458 = vmatprep.subr.mxu0 0.0
    %459 = vmatpush1.xpose.msra.mxu0 0.0
    %460 = vmatprep.subr.mxu0 0.0
    %461 = vmatpush1.xpose.msra.mxu0 0.0
    %462 = vmatprep.subr.mxu0 0.0
    %463 = vmatpush1.xpose.msra.mxu0 0.0
    %464 = vmatprep.subr.mxu0 0.0
    %465 = vmatpush1.xpose.msra.mxu0 0.0
    %466 = vmatprep.subr.mxu0 0.0
    %467 = vmatpush1.xpose.msra.mxu0 0.0
    %468 = vmatprep.subr.mxu0 0.0
    %469 = vmatpush1.xpose.msra.mxu0 0.0
    %470 = vmatprep.subr.mxu0 0.0
    %471 = vmatpush1.xpose.msra.mxu0 0.0
    %472 = vmatprep.subr.mxu0 0.0
    %473 = vmatpush1.xpose.msra.mxu0 0.0
    %474 = vmatprep.subr.mxu0 0.0
    %475 = vmatpush1.xpose.msra.mxu0 0.0
    %476 = vmatprep.subr.mxu0 0.0
    %477 = vmatpush1.xpose.msra.mxu0 0.0
    %478 = vmatprep.subr.mxu0 0.0
    %479 = vmatpush1.xpose.msra.mxu0 0.0
    %480 = vmatprep.subr.mxu0 0.0
    %481 = vmatpush1.xpose.msra.mxu0 0.0
    %482 = vmatprep.subr.mxu0 0.0
    %483 = vmatpush1.xpose.msra.mxu0 0.0
    %484 = vmatprep.subr.mxu0 0.0
    %485 = vmatpush1.xpose.msra.mxu0 0.0
    %486 = vmatprep.subr.mxu0 0.0
    %487 = vmatpush1.xpose.msra.mxu0 0.0
    %488 = vmatprep.subr.mxu0 0.0
    %489 = vmatpush1.xpose.msra.mxu0 0.0
    %490 = vmatprep.subr.mxu0 0.0
    %491 = vmatpush1.xpose.msra.mxu0 0.0
    %492 = vmatprep.subr.mxu0 0.0
    %493 = vmatpush1.xpose.msra.mxu0 0.0
    %494 = vmatprep.subr.mxu0 0.0
    %495 = vmatpush1.xpose.msra.mxu0 0.0
    %496 = vmatprep.subr.mxu0 0.0
    %497 = vmatpush1.xpose.msra.mxu0 0.0
    %498 = vmatprep.subr.mxu0 0.0
    %499 = vmatpush1.xpose.msra.mxu0 0.0
    %500 = vmatprep.mubr.f32.mxu0 0.0
    %501 = vmatmul.mubr.f32.gmra.mrb[0].mxu0 %v428
    %v502 = vpop.f32.mrb[0].mxu0
    %v503 = vadd.f32 0.0, %v502
    %v504 = vpop.f32.mrb[0].mxu0
    %505 = vmatprep.mubr.f32.mxu0 0.0
    %506 = vmatmul.mubr.f32.gmra.mrb[0].mxu0 %v430
    %v507 = vpop.f32.mrb[0].mxu0
    %v508 = vadd.f32 0.0, %v507
    %v509 = vpop.f32.mrb[0].mxu0
    %510 = vdwg.mxu0
    %v511 = vmul.f32 %v503, 0.35355338
    %v512 = vmul.f32 %v508, 0.35355338
    %v513 = vadd.f32 %v511, %v28
    %v514 = vadd.f32 %v512, %v29
    %v515 = vsel %vm310, %v513, -inf
    %516 = vmax.xlane.f32.xlu0 %v515
    %v517 = vpop.xlane.xlu0 %516
    %v518 = vsel %vm310, %v514, -inf
    %519 = vmax.xlane.f32.xlu0 %v518
    %v520 = vpop.xlane.xlu0 %519
    %v521 = vsub.f32 %v513, %v517
    %v522 = vsub.f32 %v514, %v520
    %v523 = vmul.f32 %v521, 1.442695
    %v524 = vpow.pop %v523
    %v525 = vmul.f32 %v522, 1.442695
    %v526 = vpow.pop %v525
    %v527 = vsel %vm310, %v524, 0.0
    %528 = vadd.xlane.f32.xlu0 %v527
    %v529 = vpop.xlane.xlu0 %528
    %v530 = vsel %vm310, %v526, 0.0
    %531 = vadd.xlane.f32.xlu0 %v530
    %v532 = vpop.xlane.xlu0 %531
    %v533 = vrcp.pop %v529
    %v534 = vrcp.pop %v532
    %v535 = vmul.f32 %v524, %v533
    %v536 = vmul.f32 %v526, %v534
    %537 = vrot.lane.b32.xlu0 %v209, 56
    %v538 = vpop.permute.xlu0 %537
    %539 = vrot.lane.b32.xlu0 %v214, 56
    %v540 = vpop.permute.xlu0 %539
    %v544 = vsel %vm310, %v535, 0
    %v547 = vsel %vm310, %v536, 0
    %549 = vmatprep.subr.mxu0 0.0
    %550 = vmatpush1.msra.mxu0 %v538
    %551 = vmatprep.subr.mxu0 0.0
    %552 = vmatpush1.msra.mxu0 %v540
    %553 = vmatprep.subr.mxu0 0.0
    %554 = vmatpush1.msra.mxu0 0.0
    %555 = vmatprep.subr.mxu0 0.0
    %556 = vmatpush1.msra.mxu0 0.0
    %557 = vmatprep.subr.mxu0 0.0
    %558 = vmatpush1.msra.mxu0 0.0
    %559 = vmatprep.subr.mxu0 0.0
    %560 = vmatpush1.msra.mxu0 0.0
    %561 = vmatprep.subr.mxu0 0.0
    %562 = vmatpush1.msra.mxu0 0.0
    %563 = vmatprep.subr.mxu0 0.0
    %564 = vmatpush1.msra.mxu0 0.0
    %565 = vmatprep.subr.mxu0 0.0
    %566 = vmatpush1.msra.mxu0 0.0
    %567 = vmatprep.subr.mxu0 0.0
    %568 = vmatpush1.msra.mxu0 0.0
    %569 = vmatprep.subr.mxu0 0.0
    %570 = vmatpush1.msra.mxu0 0.0
    %571 = vmatprep.subr.mxu0 0.0
    %572 = vmatpush1.msra.mxu0 0.0
    %573 = vmatprep.subr.mxu0 0.0
    %574 = vmatpush1.msra.mxu0 0.0
    %575 = vmatprep.subr.mxu0 0.0
    %576 = vmatpush1.msra.mxu0 0.0
    %577 = vmatprep.subr.mxu0 0.0
    %578 = vmatpush1.msra.mxu0 0.0
    %579 = vmatprep.subr.mxu0 0.0
    %580 = vmatpush1.msra.mxu0 0.0
    %581 = vmatprep.subr.mxu0 0.0
    %582 = vmatpush1.msra.mxu0 0.0
    %583 = vmatprep.subr.mxu0 0.0
    %584 = vmatpush1.msra.mxu0 0.0
    %585 = vmatprep.subr.mxu0 0.0
    %586 = vmatpush1.msra.mxu0 0.0
    %587 = vmatprep.subr.mxu0 0.0
    %588 = vmatpush1.msra.mxu0 0.0
    %589 = vmatprep.subr.mxu0 0.0
    %590 = vmatpush1.msra.mxu0 0.0
    %591 = vmatprep.subr.mxu0 0.0
    %592 = vmatpush1.msra.mxu0 0.0
    %593 = vmatprep.subr.mxu0 0.0
    %594 = vmatpush1.msra.mxu0 0.0
    %595 = vmatprep.subr.mxu0 0.0
    %596 = vmatpush1.msra.mxu0 0.0
    %597 = vmatprep.subr.mxu0 0.0
    %598 = vmatpush1.msra.mxu0 0.0
    %599 = vmatprep.subr.mxu0 0.0
    %600 = vmatpush1.msra.mxu0 0.0
    %601 = vmatprep.subr.mxu0 0.0
    %602 = vmatpush1.msra.mxu0 0.0
    %603 = vmatprep.subr.mxu0 0.0
    %604 = vmatpush1.msra.mxu0 0.0
    %605 = vmatprep.subr.mxu0 0.0
    %606 = vmatpush1.msra.mxu0 0.0
    %607 = vmatprep.subr.mxu0 0.0
    %608 = vmatpush1.msra.mxu0 0.0
    %609 = vmatprep.subr.mxu0 0.0
    %610 = vmatpush1.msra.mxu0 0.0
    %611 = vmatprep.subr.mxu0 0.0
    %612 = vmatpush1.msra.mxu0 0.0
    %613 = vmatprep.mubr.f32.mxu0 0.0
    %614 = vmatmul.mubr.f32.gmra.mrb[0].mxu0 %v544
    %v615 = vpop.f32.mrb[0].mxu0
    %v616 = vadd.f32 0.0, %v615
    %v617 = vpop.f32.mrb[0].mxu0
    %618 = vmatprep.mubr.f32.mxu0 0.0
    %619 = vmatmul.mubr.f32.gmra.mrb[0].mxu0 %v547
    %v620 = vpop.f32.mrb[0].mxu0
    %v621 = vadd.f32 0.0, %v620
    %v622 = vpop.f32.mrb[0].mxu0
    %623 = vdwg.mxu0
    %624 = vrot.lane.b32.xlu0 %v209, 112
    %v625 = vpop.permute.xlu0 %624
    %626 = vrot.lane.b32.xlu0 %v214, 112
    %v627 = vpop.permute.xlu0 %626
    %628 = vrot.lane.b32.xlu0 %v209, 80
    %v629 = vpop.permute.xlu0 %628
    %630 = vrot.lane.b32.xlu0 %v214, 80
    %v631 = vpop.permute.xlu0 %630
    %v632 = vsel %vm36, %v625, 0
    %v634 = vsel %vm36, %v627, 0
    %v636 = vsel %vm36, %v629, 0
    %v638 = vsel %vm36, %v631, 0
    %640 = vmatprep.subr.mxu0 0.0
    %641 = vmatpush1.xpose.msra.mxu0 %v636
    %642 = vmatprep.subr.mxu0 0.0
    %643 = vmatpush1.xpose.msra.mxu0 %v638
    %644 = vmatprep.subr.mxu0 0.0
    %645 = vmatpush1.xpose.msra.mxu0 0.0
    %646 = vmatprep.subr.mxu0 0.0
    %647 = vmatpush1.xpose.msra.mxu0 0.0
    %648 = vmatprep.subr.mxu0 0.0
    %649 = vmatpush1.xpose.msra.mxu0 0.0
    %650 = vmatprep.subr.mxu0 0.0
    %651 = vmatpush1.xpose.msra.mxu0 0.0
    %652 = vmatprep.subr.mxu0 0.0
    %653 = vmatpush1.xpose.msra.mxu0 0.0
    %654 = vmatprep.subr.mxu0 0.0
    %655 = vmatpush1.xpose.msra.mxu0 0.0
    %656 = vmatprep.subr.mxu0 0.0
    %657 = vmatpush1.xpose.msra.mxu0 0.0
    %658 = vmatprep.subr.mxu0 0.0
    %659 = vmatpush1.xpose.msra.mxu0 0.0
    %660 = vmatprep.subr.mxu0 0.0
    %661 = vmatpush1.xpose.msra.mxu0 0.0
    %662 = vmatprep.subr.mxu0 0.0
    %663 = vmatpush1.xpose.msra.mxu0 0.0
    %664 = vmatprep.subr.mxu0 0.0
    %665 = vmatpush1.xpose.msra.mxu0 0.0
    %666 = vmatprep.subr.mxu0 0.0
    %667 = vmatpush1.xpose.msra.mxu0 0.0
    %668 = vmatprep.subr.mxu0 0.0
    %669 = vmatpush1.xpose.msra.mxu0 0.0
    %670 = vmatprep.subr.mxu0 0.0
    %671 = vmatpush1.xpose.msra.mxu0 0.0
    %672 = vmatprep.subr.mxu0 0.0
    %673 = vmatpush1.xpose.msra.mxu0 0.0
    %674 = vmatprep.subr.mxu0 0.0
    %675 = vmatpush1.xpose.msra.mxu0 0.0
    %676 = vmatprep.subr.mxu0 0.0
    %677 = vmatpush1.xpose.msra.mxu0 0.0
    %678 = vmatprep.subr.mxu0 0.0
    %679 = vmatpush1.xpose.msra.mxu0 0.0
    %680 = vmatprep.subr.mxu0 0.0
    %681 = vmatpush1.xpose.msra.mxu0 0.0
    %682 = vmatprep.subr.mxu0 0.0
    %683 = vmatpush1.xpose.msra.mxu0 0.0
    %684 = vmatprep.subr.mxu0 0.0
    %685 = vmatpush1.xpose.msra.mxu0 0.0
    %686 = vmatprep.subr.mxu0 0.0
    %687 = vmatpush1.xpose.msra.mxu0 0.0
    %688 = vmatprep.subr.mxu0 0.0
    %689 = vmatpush1.xpose.msra.mxu0 0.0
    %690 = vmatprep.subr.mxu0 0.0
    %691 = vmatpush1.xpose.msra.mxu0 0.0
    %692 = vmatprep.subr.mxu0 0.0
    %693 = vmatpush1.xpose.msra.mxu0 0.0
    %694 = vmatprep.subr.mxu0 0.0
    %695 = vmatpush1.xpose.msra.mxu0 0.0
    %696 = vmatprep.subr.mxu0 0.0
    %697 = vmatpush1.xpose.msra.mxu0 0.0
    %698 = vmatprep.subr.mxu0 0.0
    %699 = vmatpush1.xpose.msra.mxu0 0.0
    %700 = vmatprep.subr.mxu0 0.0
    %701 = vmatpush1.xpose.msra.mxu0 0.0
    %702 = vmatprep.subr.mxu0 0.0
    %703 = vmatpush1.xpose.msra.mxu0 0.0
    %704 = vmatprep.mubr.f32.mxu0 0.0
    %705 = vmatmul.mubr.f32.gmra.mrb[0].mxu0 %v632
    %v706 = vpop.f32.mrb[0].mxu0
    %v707 = vadd.f32 0.0, %v706
    %v708 = vpop.f32.mrb[0].mxu0
    %709 = vmatprep.mubr.f32.mxu0 0.0
    %710 = vmatmul.mubr.f32.gmra.mrb[0].mxu0 %v634
    %v711 = vpop.f32.mrb[0].mxu0
    %v712 = vadd.f32 0.0, %v711
    %v713 = vpop.f32.mrb[0].mxu0
    %714 = vdwg.mxu0
    %v715 = vmul.f32 %v707, 0.35355338
    %v716 = vmul.f32 %v712, 0.35355338
    %v717 = vadd.f32 %v715, %v28
    %v718 = vadd.f32 %v716, %v29
    %v719 = vsel %vm310, %v717, -inf
    %720 = vmax.xlane.f32.xlu0 %v719
    %v721 = vpop.xlane.xlu0 %720
    %v722 = vsel %vm310, %v718, -inf
    %723 = vmax.xlane.f32.xlu0 %v722
    %v724 = vpop.xlane.xlu0 %723
    %v725 = vsub.f32 %v717, %v721
    %v726 = vsub.f32 %v718, %v724
    %v727 = vmul.f32 %v725, 1.442695
    %v728 = vpow.pop %v727
    %v729 = vmul.f32 %v726, 1.442695
    %v730 = vpow.pop %v729
    %v731 = vsel %vm310, %v728, 0.0
    %732 = vadd.xlane.f32.xlu0 %v731
    %v733 = vpop.xlane.xlu0 %732
    %v734 = vsel %vm310, %v730, 0.0
    %735 = vadd.xlane.f32.xlu0 %v734
    %v736 = vpop.xlane.xlu0 %735
    %v737 = vrcp.pop %v733
    %v738 = vrcp.pop %v736
    %v739 = vmul.f32 %v728, %v737
    %v740 = vmul.f32 %v730, %v738
    %741 = vrot.lane.b32.xlu0 %v209, 48
    %v742 = vpop.permute.xlu0 %741
    %743 = vrot.lane.b32.xlu0 %v214, 48
    %v744 = vpop.permute.xlu0 %743
    %v748 = vsel %vm310, %v739, 0
    %v751 = vsel %vm310, %v740, 0
    %753 = vmatprep.subr.mxu0 0.0
    %754 = vmatpush1.msra.mxu0 %v742
    %755 = vmatprep.subr.mxu0 0.0
    %756 = vmatpush1.msra.mxu0 %v744
    %757 = vmatprep.subr.mxu0 0.0
    %758 = vmatpush1.msra.mxu0 0.0
    %759 = vmatprep.subr.mxu0 0.0
    %760 = vmatpush1.msra.mxu0 0.0
    %761 = vmatprep.subr.mxu0 0.0
    %762 = vmatpush1.msra.mxu0 0.0
    %763 = vmatprep.subr.mxu0 0.0
    %764 = vmatpush1.msra.mxu0 0.0
    %765 = vmatprep.subr.mxu0 0.0
    %766 = vmatpush1.msra.mxu0 0.0
    %767 = vmatprep.subr.mxu0 0.0
    %768 = vmatpush1.msra.mxu0 0.0
    %769 = vmatprep.subr.mxu0 0.0
    %770 = vmatpush1.msra.mxu0 0.0
    %771 = vmatprep.subr.mxu0 0.0
    %772 = vmatpush1.msra.mxu0 0.0
    %773 = vmatprep.subr.mxu0 0.0
    %774 = vmatpush1.msra.mxu0 0.0
    %775 = vmatprep.subr.mxu0 0.0
    %776 = vmatpush1.msra.mxu0 0.0
    %777 = vmatprep.subr.mxu0 0.0
    %778 = vmatpush1.msra.mxu0 0.0
    %779 = vmatprep.subr.mxu0 0.0
    %780 = vmatpush1.msra.mxu0 0.0
    %781 = vmatprep.subr.mxu0 0.0
    %782 = vmatpush1.msra.mxu0 0.0
    %783 = vmatprep.subr.mxu0 0.0
    %784 = vmatpush1.msra.mxu0 0.0
    %785 = vmatprep.subr.mxu0 0.0
    %786 = vmatpush1.msra.mxu0 0.0
    %787 = vmatprep.subr.mxu0 0.0
    %788 = vmatpush1.msra.mxu0 0.0
    %789 = vmatprep.subr.mxu0 0.0
    %790 = vmatpush1.msra.mxu0 0.0
    %791 = vmatprep.subr.mxu0 0.0
    %792 = vmatpush1.msra.mxu0 0.0
    %793 = vmatprep.subr.mxu0 0.0
    %794 = vmatpush1.msra.mxu0 0.0
    %795 = vmatprep.subr.mxu0 0.0
    %796 = vmatpush1.msra.mxu0 0.0
    %797 = vmatprep.subr.mxu0 0.0
    %798 = vmatpush1.msra.mxu0 0.0
    %799 = vmatprep.subr.mxu0 0.0
    %800 = vmatpush1.msra.mxu0 0.0
    %801 = vmatprep.subr.mxu0 0.0
    %802 = vmatpush1.msra.mxu0 0.0
    %803 = vmatprep.subr.mxu0 0.0
    %804 = vmatpush1.msra.mxu0 0.0
    %805 = vmatprep.subr.mxu0 0.0
    %806 = vmatpush1.msra.mxu0 0.0
    %807 = vmatprep.subr.mxu0 0.0
    %808 = vmatpush1.msra.mxu0 0.0
    %809 = vmatprep.subr.mxu0 0.0
    %810 = vmatpush1.msra.mxu0 0.0
    %811 = vmatprep.subr.mxu0 0.0
    %812 = vmatpush1.msra.mxu0 0.0
    %813 = vmatprep.subr.mxu0 0.0
    %814 = vmatpush1.msra.mxu0 0.0
    %815 = vmatprep.subr.mxu0 0.0
    %816 = vmatpush1.msra.mxu0 0.0
    %817 = vmatprep.mubr.f32.mxu0 0.0
    %818 = vmatmul.mubr.f32.gmra.mrb[0].mxu0 %v748
    %v819 = vpop.f32.mrb[0].mxu0
    %v820 = vadd.f32 0.0, %v819
    %v821 = vpop.f32.mrb[0].mxu0
    %822 = vmatprep.mubr.f32.mxu0 0.0
    %823 = vmatmul.mubr.f32.gmra.mrb[0].mxu0 %v751
    %v824 = vpop.f32.mrb[0].mxu0
    %v825 = vadd.f32 0.0, %v824
    %v826 = vpop.f32.mrb[0].mxu0
    %827 = vdwg.mxu0
    %828 = vrot.lane.b32.xlu0 %v209, 104
    %v829 = vpop.permute.xlu0 %828
    %830 = vrot.lane.b32.xlu0 %v214, 104
    %v831 = vpop.permute.xlu0 %830
    %832 = vrot.lane.b32.xlu0 %v209, 72
    %v833 = vpop.permute.xlu0 %832
    %834 = vrot.lane.b32.xlu0 %v214, 72
    %v835 = vpop.permute.xlu0 %834
    %v836 = vsel %vm36, %v829, 0
    %v838 = vsel %vm36, %v831, 0
    %v840 = vsel %vm36, %v833, 0
    %v842 = vsel %vm36, %v835, 0
    %844 = vmatprep.subr.mxu0 0.0
    %845 = vmatpush1.xpose.msra.mxu0 %v840
    %846 = vmatprep.subr.mxu0 0.0
    %847 = vmatpush1.xpose.msra.mxu0 %v842
    %848 = vmatprep.subr.mxu0 0.0
    %849 = vmatpush1.xpose.msra.mxu0 0.0
    %850 = vmatprep.subr.mxu0 0.0
    %851 = vmatpush1.xpose.msra.mxu0 0.0
    %852 = vmatprep.subr.mxu0 0.0
    %853 = vmatpush1.xpose.msra.mxu0 0.0
    %854 = vmatprep.subr.mxu0 0.0
    %855 = vmatpush1.xpose.msra.mxu0 0.0
    %856 = vmatprep.subr.mxu0 0.0
    %857 = vmatpush1.xpose.msra.mxu0 0.0
    %858 = vmatprep.subr.mxu0 0.0
    %859 = vmatpush1.xpose.msra.mxu0 0.0
    %860 = vmatprep.subr.mxu0 0.0
    %861 = vmatpush1.xpose.msra.mxu0 0.0
    %862 = vmatprep.subr.mxu0 0.0
    %863 = vmatpush1.xpose.msra.mxu0 0.0
    %864 = vmatprep.subr.mxu0 0.0
    %865 = vmatpush1.xpose.msra.mxu0 0.0
    %866 = vmatprep.subr.mxu0 0.0
    %867 = vmatpush1.xpose.msra.mxu0 0.0
    %868 = vmatprep.subr.mxu0 0.0
    %869 = vmatpush1.xpose.msra.mxu0 0.0
    %870 = vmatprep.subr.mxu0 0.0
    %871 = vmatpush1.xpose.msra.mxu0 0.0
    %872 = vmatprep.subr.mxu0 0.0
    %873 = vmatpush1.xpose.msra.mxu0 0.0
    %874 = vmatprep.subr.mxu0 0.0
    %875 = vmatpush1.xpose.msra.mxu0 0.0
    %876 = vmatprep.subr.mxu0 0.0
    %877 = vmatpush1.xpose.msra.mxu0 0.0
    %878 = vmatprep.subr.mxu0 0.0
    %879 = vmatpush1.xpose.msra.mxu0 0.0
    %880 = vmatprep.subr.mxu0 0.0
    %881 = vmatpush1.xpose.msra.mxu0 0.0
    %882 = vmatprep.subr.mxu0 0.0
    %883 = vmatpush1.xpose.msra.mxu0 0.0
    %884 = vmatprep.subr.mxu0 0.0
    %885 = vmatpush1.xpose.msra.mxu0 0.0
    %886 = vmatprep.subr.mxu0 0.0
    %887 = vmatpush1.xpose.msra.mxu0 0.0
    %888 = vmatprep.subr.mxu0 0.0
    %889 = vmatpush1.xpose.msra.mxu0 0.0
    %890 = vmatprep.subr.mxu0 0.0
    %891 = vmatpush1.xpose.msra.mxu0 0.0
    %892 = vmatprep.subr.mxu0 0.0
    %893 = vmatpush1.xpose.msra.mxu0 0.0
    %894 = vmatprep.subr.mxu0 0.0
    %895 = vmatpush1.xpose.msra.mxu0 0.0
    %896 = vmatprep.subr.mxu0 0.0
    %897 = vmatpush1.xpose.msra.mxu0 0.0
    %898 = vmatprep.subr.mxu0 0.0
    %899 = vmatpush1.xpose.msra.mxu0 0.0
    %900 = vmatprep.subr.mxu0 0.0
    %901 = vmatpush1.xpose.msra.mxu0 0.0
    %902 = vmatprep.subr.mxu0 0.0
    %903 = vmatpush1.xpose.msra.mxu0 0.0
    %904 = vmatprep.subr.mxu0 0.0
    %905 = vmatpush1.xpose.msra.mxu0 0.0
    %906 = vmatprep.subr.mxu0 0.0
    %907 = vmatpush1.xpose.msra.mxu0 0.0
    %908 = vmatprep.mubr.f32.mxu0 0.0
    %909 = vmatmul.mubr.f32.gmra.mrb[0].mxu0 %v836
    %v910 = vpop.f32.mrb[0].mxu0
    %v911 = vadd.f32 0.0, %v910
    %v912 = vpop.f32.mrb[0].mxu0
    %913 = vmatprep.mubr.f32.mxu0 0.0
    %914 = vmatmul.mubr.f32.gmra.mrb[0].mxu0 %v838
    %v915 = vpop.f32.mrb[0].mxu0
    %v916 = vadd.f32 0.0, %v915
    %v917 = vpop.f32.mrb[0].mxu0
    %918 = vdwg.mxu0
    %v919 = vmul.f32 %v911, 0.35355338
    %v920 = vmul.f32 %v916, 0.35355338
    %v921 = vadd.f32 %v919, %v28
    %v922 = vadd.f32 %v920, %v29
    %v923 = vsel %vm310, %v921, -inf
    %924 = vmax.xlane.f32.xlu0 %v923
    %v925 = vpop.xlane.xlu0 %924
    %v926 = vsel %vm310, %v922, -inf
    %927 = vmax.xlane.f32.xlu0 %v926
    %v928 = vpop.xlane.xlu0 %927
    %v929 = vsub.f32 %v921, %v925
    %v930 = vsub.f32 %v922, %v928
    %v931 = vmul.f32 %v929, 1.442695
    %v932 = vpow.pop %v931
    %v933 = vmul.f32 %v930, 1.442695
    %v934 = vpow.pop %v933
    %v935 = vsel %vm310, %v932, 0.0
    %936 = vadd.xlane.f32.xlu0 %v935
    %v937 = vpop.xlane.xlu0 %936
    %v938 = vsel %vm310, %v934, 0.0
    %939 = vadd.xlane.f32.xlu0 %v938
    %v940 = vpop.xlane.xlu0 %939
    %v941 = vrcp.pop %v937
    %v942 = vrcp.pop %v940
    %v943 = vmul.f32 %v932, %v941
    %v944 = vmul.f32 %v934, %v942
    %945 = vrot.lane.b32.xlu0 %v209, 40
    %v946 = vpop.permute.xlu0 %945
    %947 = vrot.lane.b32.xlu0 %v214, 40
    %v948 = vpop.permute.xlu0 %947
    %v952 = vsel %vm310, %v943, 0
    %v955 = vsel %vm310, %v944, 0
    %957 = vmatprep.subr.mxu0 0.0
    %958 = vmatpush1.msra.mxu0 %v946
    %959 = vmatprep.subr.mxu0 0.0
    %960 = vmatpush1.msra.mxu0 %v948
    %961 = vmatprep.subr.mxu0 0.0
    %962 = vmatpush1.msra.mxu0 0.0
    %963 = vmatprep.subr.mxu0 0.0
    %964 = vmatpush1.msra.mxu0 0.0
    %965 = vmatprep.subr.mxu0 0.0
    %966 = vmatpush1.msra.mxu0 0.0
    %967 = vmatprep.subr.mxu0 0.0
    %968 = vmatpush1.msra.mxu0 0.0
    %969 = vmatprep.subr.mxu0 0.0
    %970 = vmatpush1.msra.mxu0 0.0
    %971 = vmatprep.subr.mxu0 0.0
    %972 = vmatpush1.msra.mxu0 0.0
    %973 = vmatprep.subr.mxu0 0.0
    %974 = vmatpush1.msra.mxu0 0.0
    %975 = vmatprep.subr.mxu0 0.0
    %976 = vmatpush1.msra.mxu0 0.0
    %977 = vmatprep.subr.mxu0 0.0
    %978 = vmatpush1.msra.mxu0 0.0
    %979 = vmatprep.subr.mxu0 0.0
    %980 = vmatpush1.msra.mxu0 0.0
    %981 = vmatprep.subr.mxu0 0.0
    %982 = vmatpush1.msra.mxu0 0.0
    %983 = vmatprep.subr.mxu0 0.0
    %984 = vmatpush1.msra.mxu0 0.0
    %985 = vmatprep.subr.mxu0 0.0
    %986 = vmatpush1.msra.mxu0 0.0
    %987 = vmatprep.subr.mxu0 0.0
    %988 = vmatpush1.msra.mxu0 0.0
    %989 = vmatprep.subr.mxu0 0.0
    %990 = vmatpush1.msra.mxu0 0.0
    %991 = vmatprep.subr.mxu0 0.0
    %992 = vmatpush1.msra.mxu0 0.0
    %993 = vmatprep.subr.mxu0 0.0
    %994 = vmatpush1.msra.mxu0 0.0
    %995 = vmatprep.subr.mxu0 0.0
    %996 = vmatpush1.msra.mxu0 0.0
    %997 = vmatprep.subr.mxu0 0.0
    %998 = vmatpush1.msra.mxu0 0.0
    %999 = vmatprep.subr.mxu0 0.0
    %1000 = vmatpush1.msra.mxu0 0.0
    %1001 = vmatprep.subr.mxu0 0.0
    %1002 = vmatpush1.msra.mxu0 0.0
    %1003 = vmatprep.subr.mxu0 0.0
    %1004 = vmatpush1.msra.mxu0 0.0
    %1005 = vmatprep.subr.mxu0 0.0
    %1006 = vmatpush1.msra.mxu0 0.0
    %1007 = vmatprep.subr.mxu0 0.0
    %1008 = vmatpush1.msra.mxu0 0.0
    %1009 = vmatprep.subr.mxu0 0.0
    %1010 = vmatpush1.msra.mxu0 0.0
    %1011 = vmatprep.subr.mxu0 0.0
    %1012 = vmatpush1.msra.mxu0 0.0
    %1013 = vmatprep.subr.mxu0 0.0
    %1014 = vmatpush1.msra.mxu0 0.0
    %1015 = vmatprep.subr.mxu0 0.0
    %1016 = vmatpush1.msra.mxu0 0.0
    %1017 = vmatprep.subr.mxu0 0.0
    %1018 = vmatpush1.msra.mxu0 0.0
    %1019 = vmatprep.subr.mxu0 0.0
    %1020 = vmatpush1.msra.mxu0 0.0
    %1021 = vmatprep.mubr.f32.mxu0 0.0
    %1022 = vmatmul.mubr.f32.gmra.mrb[0].mxu0 %v952
    %v1023 = vpop.f32.mrb[0].mxu0
    %v1024 = vadd.f32 0.0, %v1023
    %v1025 = vpop.f32.mrb[0].mxu0
    %1026 = vmatprep.mubr.f32.mxu0 0.0
    %1027 = vmatmul.mubr.f32.gmra.mrb[0].mxu0 %v955
    %v1028 = vpop.f32.mrb[0].mxu0
    %v1029 = vadd.f32 0.0, %v1028
    %v1030 = vpop.f32.mrb[0].mxu0
    %1031 = vdwg.mxu0
    %1034 = vrot.lane.b32.xlu0 %v616, 8
    %v1035 = vpop.permute.xlu0 %1034
    %1036 = vrot.lane.b32.xlu0 %v621, 8
    %v1037 = vpop.permute.xlu0 %1036
    %1042 = vrot.lane.b32.xlu0 %v820, 16
    %v1043 = vpop.permute.xlu0 %1042
    %1044 = vrot.lane.b32.xlu0 %v825, 16
    %v1045 = vpop.permute.xlu0 %1044
    %1050 = vrot.lane.b32.xlu0 %v1024, 24
    %v1051 = vpop.permute.xlu0 %1050
    %1052 = vrot.lane.b32.xlu0 %v1029, 24
    %v1053 = vpop.permute.xlu0 %1052
    %v1056 = vsel %vm36, %v412, %v1035
    %v1057 = vsel %vm36, %v417, %v1037
    %v1058 = vsel %vm310, %v1056, %v1043
    %v1059 = vsel %vm310, %v1057, %v1045
    %vm1060 = vcmask 195584
    %v1061 = vsel %vm1060, %v1058, %v1051
    %v1062 = vsel %vm1060, %v1059, %v1053
    %1067 = vrot.lane.b32.xlu0 %v126, 32
    %v1068 = vpop.permute.xlu0 %1067
    %1069 = vrot.lane.b32.xlu0 %v127, 32
    %v1070 = vpop.permute.xlu0 %1069
    %1071 = vrot.lane.b32.xlu0 %v128, 32
    %v1072 = vpop.permute.xlu0 %1071
    %1073 = vrot.lane.b32.xlu0 %v129, 32
    %v1074 = vpop.permute.xlu0 %1073
    %1080 = vrot.lane.b32.xlu0 %v134, 32
    %v1081 = vpop.permute.xlu0 %1080
    %v1084 = vsel %vm135, %v1061, 0
    %v1087 = vsel %vm135, %v1062, 0
    %1089 = vmatprep.subr.mxu0 0.0
    %1090 = vmatpush1.msra.mxu0 %v1068
    %1091 = vmatprep.subr.mxu0 0.0
    %1092 = vmatpush1.msra.mxu0 %v1070
    %1093 = vmatprep.subr.mxu0 0.0
    %1094 = vmatpush1.msra.mxu0 %v1072
    %1095 = vmatprep.subr.mxu0 0.0
    %1096 = vmatpush1.msra.mxu0 %v1074
    %1097 = vmatprep.subr.mxu0 0.0
    %1098 = vmatpush1.msra.mxu0 0.0
    %1099 = vmatprep.subr.mxu0 0.0
    %1100 = vmatpush1.msra.mxu0 0.0
    %1101 = vmatprep.subr.mxu0 0.0
    %1102 = vmatpush1.msra.mxu0 0.0
    %1103 = vmatprep.subr.mxu0 0.0
    %1104 = vmatpush1.msra.mxu0 0.0
    %1105 = vmatprep.subr.mxu0 0.0
    %1106 = vmatpush1.msra.mxu0 0.0
    %1107 = vmatprep.subr.mxu0 0.0
    %1108 = vmatpush1.msra.mxu0 0.0
    %1109 = vmatprep.subr.mxu0 0.0
    %1110 = vmatpush1.msra.mxu0 0.0
    %1111 = vmatprep.subr.mxu0 0.0
    %1112 = vmatpush1.msra.mxu0 0.0
    %1113 = vmatprep.subr.mxu0 0.0
    %1114 = vmatpush1.msra.mxu0 0.0
    %1115 = vmatprep.subr.mxu0 0.0
    %1116 = vmatpush1.msra.mxu0 0.0
    %1117 = vmatprep.subr.mxu0 0.0
    %1118 = vmatpush1.msra.mxu0 0.0
    %1119 = vmatprep.subr.mxu0 0.0
    %1120 = vmatpush1.msra.mxu0 0.0
    %1121 = vmatprep.subr.mxu0 0.0
    %1122 = vmatpush1.msra.mxu0 0.0
    %1123 = vmatprep.subr.mxu0 0.0
    %1124 = vmatpush1.msra.mxu0 0.0
    %1125 = vmatprep.subr.mxu0 0.0
    %1126 = vmatpush1.msra.mxu0 0.0
    %1127 = vmatprep.subr.mxu0 0.0
    %1128 = vmatpush1.msra.mxu0 0.0
    %1129 = vmatprep.subr.mxu0 0.0
    %1130 = vmatpush1.msra.mxu0 0.0
    %1131 = vmatprep.subr.mxu0 0.0
    %1132 = vmatpush1.msra.mxu0 0.0
    %1133 = vmatprep.subr.mxu0 0.0
    %1134 = vmatpush1.msra.mxu0 0.0
    %1135 = vmatprep.subr.mxu0 0.0
    %1136 = vmatpush1.msra.mxu0 0.0
    %1137 = vmatprep.subr.mxu0 0.0
    %1138 = vmatpush1.msra.mxu0 0.0
    %1139 = vmatprep.subr.mxu0 0.0
    %1140 = vmatpush1.msra.mxu0 0.0
    %1141 = vmatprep.subr.mxu0 0.0
    %1142 = vmatpush1.msra.mxu0 0.0
    %1143 = vmatprep.subr.mxu0 0.0
    %1144 = vmatpush1.msra.mxu0 0.0
    %1145 = vmatprep.subr.mxu0 0.0
    %1146 = vmatpush1.msra.mxu0 0.0
    %1147 = vmatprep.subr.mxu0 0.0
    %1148 = vmatpush1.msra.mxu0 0.0
    %1149 = vmatprep.subr.mxu0 0.0
    %1150 = vmatpush1.msra.mxu0 0.0
    %1151 = vmatprep.subr.mxu0 0.0
    %1152 = vmatpush1.msra.mxu0 0.0
    %1153 = vmatprep.mubr.f32.mxu0 0.0
    %1154 = vmatmul.mubr.f32.gmra.mrb[0].mxu0 %v1084
    %v1155 = vpop.f32.mrb[0].mxu0
    %v1156 = vadd.f32 %v1081, %v1155
    %v1157 = vpop.f32.mrb[0].mxu0
    %1158 = vmatprep.mubr.f32.mxu0 0.0
    %1159 = vmatmul.mubr.f32.gmra.mrb[0].mxu0 %v1087
    %v1160 = vpop.f32.mrb[0].mxu0
    %v1161 = vadd.f32 %v1081, %v1160
    %v1162 = vpop.f32.mrb[0].mxu0
    %1163 = vdwg.mxu0
    %v1164 = vadd.f32 %v124, %v1156
    %v1165 = vadd.f32 %v125, %v1161
    %v1166 = vsel %vm135, %v1164, 0.0
    %1167 = vadd.xlane.f32.xlu0 %v1166
    %v1168 = vpop.xlane.xlu0 %1167
    %v1169 = vsel %vm135, %v1165, 0.0
    %1170 = vadd.xlane.f32.xlu0 %v1169
    %v1171 = vpop.xlane.xlu0 %1170
    %v1172 = vrcp.pop 32.0
    %v1173 = vmul.f32 %v1168, %v1172
    %v1174 = vmul.f32 %v1171, %v1172
    %v1175 = vsub.f32 %v1164, %v1173
    %v1176 = vsub.f32 %v1165, %v1174
    %v1177 = vmul.f32 %v1175, %v1175
    %v1178 = vmul.f32 %v1176, %v1176
    %v1179 = vsel %vm135, %v1177, 0.0
    %1180 = vadd.xlane.f32.xlu0 %v1179
    %v1181 = vpop.xlane.xlu0 %1180
    %v1182 = vsel %vm135, %v1178, 0.0
    %1183 = vadd.xlane.f32.xlu0 %v1182
    %v1184 = vpop.xlane.xlu0 %1183
    %v1185 = vmul.f32 %v1181, %v1172
    %v1186 = vmul.f32 %v1184, %v1172
    %v1187 = vadd.f32 %v1185, 1e-05
    %v1188 = vadd.f32 %v1186, 1e-05
    %v1189 = vrsqrt.pop %v1187
    %v1190 = vrsqrt.pop %v1188
    %v1191 = vmul.f32 %v1175, %v1189
    %v1192 = vmul.f32 %v1176, %v1190
    %v1193 = vlaneseq
    %v1194 = vshrl.u32 %v1193, 7
    %v1195 = vsub.s32 1, %v1194
    %v1196 = vrot.slane %v130, %v1195
    %v1197 = vmul.f32 %v1191, %v1196
    %v1198 = vmul.f32 %v1192, %v1196
    %v1199 = vlaneseq
    %v1200 = vshrl.u32 %v1199, 7
    %v1201 = vsub.s32 2, %v1200
    %v1202 = vrot.slane %v130, %v1201
    %v1203 = vadd.f32 %v1197, %v1202
    %v1204 = vadd.f32 %v1198, %v1202
    %v1205 = vld [vmem:[%s4] sm:$0xff]
    %v1206 = vld [vmem:[%s4 + $0x8] sm:$0xff]
    %v1207 = vld [vmem:[%s4 + $0x10] sm:$0xff]
    %v1208 = vld [vmem:[%s4 + $0x18] sm:$0xff]
    %v1209 = vlaneseq
    %v1210 = vshrl.u32 %v1209, 7
    %v1211 = vsub.s32 3, %v1210
    %v1212 = vrot.slane %v130, %v1211
    %v1214 = vsel %vm135, %v1203, 0
    %v1217 = vsel %vm135, %v1204, 0
    %1219 = vmatprep.subr.mxu0 0.0
    %1220 = vmatpush1.msra.mxu0 %v1205
    %1221 = vmatprep.subr.mxu0 0.0
    %1222 = vmatpush1.msra.mxu0 %v1206
    %1223 = vmatprep.subr.mxu0 0.0
    %1224 = vmatpush1.msra.mxu0 %v1207
    %1225 = vmatprep.subr.mxu0 0.0
    %1226 = vmatpush1.msra.mxu0 %v1208
    %1227 = vmatprep.subr.mxu0 0.0
    %1228 = vmatpush1.msra.mxu0 0.0
    %1229 = vmatprep.subr.mxu0 0.0
    %1230 = vmatpush1.msra.mxu0 0.0
    %1231 = vmatprep.subr.mxu0 0.0
    %1232 = vmatpush1.msra.mxu0 0.0
    %1233 = vmatprep.subr.mxu0 0.0
    %1234 = vmatpush1.msra.mxu0 0.0
    %1235 = vmatprep.subr.mxu0 0.0
    %1236 = vmatpush1.msra.mxu0 0.0
    %1237 = vmatprep.subr.mxu0 0.0
    %1238 = vmatpush1.msra.mxu0 0.0
    %1239 = vmatprep.subr.mxu0 0.0
    %1240 = vmatpush1.msra.mxu0 0.0
    %1241 = vmatprep.subr.mxu0 0.0
    %1242 = vmatpush1.msra.mxu0 0.0
    %1243 = vmatprep.subr.mxu0 0.0
    %1244 = vmatpush1.msra.mxu0 0.0
    %1245 = vmatprep.subr.mxu0 0.0
    %1246 = vmatpush1.msra.mxu0 0.0
    %1247 = vmatprep.subr.mxu0 0.0
    %1248 = vmatpush1.msra.mxu0 0.0
    %1249 = vmatprep.subr.mxu0 0.0
    %1250 = vmatpush1.msra.mxu0 0.0
    %1251 = vmatprep.subr.mxu0 0.0
    %1252 = vmatpush1.msra.mxu0 0.0
    %1253 = vmatprep.subr.mxu0 0.0
    %1254 = vmatpush1.msra.mxu0 0.0
    %1255 = vmatprep.subr.mxu0 0.0
    %1256 = vmatpush1.msra.mxu0 0.0
    %1257 = vmatprep.subr.mxu0 0.0
    %1258 = vmatpush1.msra.mxu0 0.0
    %1259 = vmatprep.subr.mxu0 0.0
    %1260 = vmatpush1.msra.mxu0 0.0
    %1261 = vmatprep.subr.mxu0 0.0
    %1262 = vmatpush1.msra.mxu0 0.0
    %1263 = vmatprep.subr.mxu0 0.0
    %1264 = vmatpush1.msra.mxu0 0.0
    %1265 = vmatprep.subr.mxu0 0.0
    %1266 = vmatpush1.msra.mxu0 0.0
    %1267 = vmatprep.subr.mxu0 0.0
    %1268 = vmatpush1.msra.mxu0 0.0
    %1269 = vmatprep.subr.mxu0 0.0
    %1270 = vmatpush1.msra.mxu0 0.0
    %1271 = vmatprep.subr.mxu0 0.0
    %1272 = vmatpush1.msra.mxu0 0.0
    %1273 = vmatprep.subr.mxu0 0.0
    %1274 = vmatpush1.msra.mxu0 0.0
    %1275 = vmatprep.subr.mxu0 0.0
    %1276 = vmatpush1.msra.mxu0 0.0
    %1277 = vmatprep.subr.mxu0 0.0
    %1278 = vmatpush1.msra.mxu0 0.0
    %1279 = vmatprep.subr.mxu0 0.0
    %1280 = vmatpush1.msra.mxu0 0.0
    %1281 = vmatprep.subr.mxu0 0.0
    %1282 = vmatpush1.msra.mxu0 0.0
    %1283 = vmatprep.mubr.f32.mxu0 0.0
    %1284 = vmatmul.mubr.f32.gmra.mrb[0].mxu0 %v1214
    %v1285 = vpop.f32.mrb[0].mxu0
    %v1286 = vadd.f32 %v1212, %v1285
    %v1287 = vpop.f32.mrb[0].mxu0
    %1288 = vmatprep.mubr.f32.mxu0 0.0
    %1289 = vmatmul.mubr.f32.gmra.mrb[0].mxu0 %v1217
    %v1290 = vpop.f32.mrb[0].mxu0
    %v1291 = vadd.f32 %v1212, %v1290
    %v1292 = vpop.f32.mrb[0].mxu0
    %1293 = vdwg.mxu0
    %v1294 = vmax.f32 %v1286, 0.0
    %v1295 = vmax.f32 %v1291, 0.0
    %v1296 = vld [vmem:[%s5] sm:$0xff]
    %v1297 = vld [vmem:[%s5 + $0x8] sm:$0xff]
    %v1298 = vld [vmem:[%s5 + $0x10] sm:$0xff]
    %v1299 = vld [vmem:[%s5 + $0x18] sm:$0xff]
    %v1300 = vld [vmem:[%s5 + $0x20] sm:$0xff]
    %v1301 = vld [vmem:[%s5 + $0x28] sm:$0xff]
    %v1302 = vld [vmem:[%s5 + $0x30] sm:$0xff]
    %v1303 = vld [vmem:[%s5 + $0x38] sm:$0xff]
    %v1304 = vlaneseq
    %v1305 = vshrl.u32 %v1304, 7
    %v1306 = vsub.s32 4, %v1305
    %v1307 = vrot.slane %v130, %v1306
    %vm1308 = vcmask 523264
    %v1310 = vsel %vm1308, %v1294, 0
    %v1313 = vsel %vm1308, %v1295, 0
    %1315 = vmatprep.subr.mxu0 0.0
    %1316 = vmatpush1.msra.mxu0 %v1296
    %1317 = vmatprep.subr.mxu0 0.0
    %1318 = vmatpush1.msra.mxu0 %v1297
    %1319 = vmatprep.subr.mxu0 0.0
    %1320 = vmatpush1.msra.mxu0 %v1298
    %1321 = vmatprep.subr.mxu0 0.0
    %1322 = vmatpush1.msra.mxu0 %v1299
    %1323 = vmatprep.subr.mxu0 0.0
    %1324 = vmatpush1.msra.mxu0 %v1300
    %1325 = vmatprep.subr.mxu0 0.0
    %1326 = vmatpush1.msra.mxu0 %v1301
    %1327 = vmatprep.subr.mxu0 0.0
    %1328 = vmatpush1.msra.mxu0 %v1302
    %1329 = vmatprep.subr.mxu0 0.0
    %1330 = vmatpush1.msra.mxu0 %v1303
    %1331 = vmatprep.subr.mxu0 0.0
    %1332 = vmatpush1.msra.mxu0 0.0
    %1333 = vmatprep.subr.mxu0 0.0
    %1334 = vmatpush1.msra.mxu0 0.0
    %1335 = vmatprep.subr.mxu0 0.0
    %1336 = vmatpush1.msra.mxu0 0.0
    %1337 = vmatprep.subr.mxu0 0.0
    %1338 = vmatpush1.msra.mxu0 0.0
    %1339 = vmatprep.subr.mxu0 0.0
    %1340 = vmatpush1.msra.mxu0 0.0
    %1341 = vmatprep.subr.mxu0 0.0
    %1342 = vmatpush1.msra.mxu0 0.0
    %1343 = vmatprep.subr.mxu0 0.0
    %1344 = vmatpush1.msra.mxu0 0.0
    %1345 = vmatprep.subr.mxu0 0.0
    %1346 = vmatpush1.msra.mxu0 0.0
    %1347 = vmatprep.subr.mxu0 0.0
    %1348 = vmatpush1.msra.mxu0 0.0
    %1349 = vmatprep.subr.mxu0 0.0
    %1350 = vmatpush1.msra.mxu0 0.0
    %1351 = vmatprep.subr.mxu0 0.0
    %1352 = vmatpush1.msra.mxu0 0.0
    %1353 = vmatprep.subr.mxu0 0.0
    %1354 = vmatpush1.msra.mxu0 0.0
    %1355 = vmatprep.subr.mxu0 0.0
    %1356 = vmatpush1.msra.mxu0 0.0
    %1357 = vmatprep.subr.mxu0 0.0
    %1358 = vmatpush1.msra.mxu0 0.0
    %1359 = vmatprep.subr.mxu0 0.0
    %1360 = vmatpush1.msra.mxu0 0.0
    %1361 = vmatprep.subr.mxu0 0.0
    %1362 = vmatpush1.msra.mxu0 0.0
    %1363 = vmatprep.subr.mxu0 0.0
    %1364 = vmatpush1.msra.mxu0 0.0
    %1365 = vmatprep.subr.mxu0 0.0
    %1366 = vmatpush1.msra.mxu0 0.0
    %1367 = vmatprep.subr.mxu0 0.0
    %1368 = vmatpush1.msra.mxu0 0.0
    %1369 = vmatprep.subr.mxu0 0.0
    %1370 = vmatpush1.msra.mxu0 0.0
    %1371 = vmatprep.subr.mxu0 0.0
    %1372 = vmatpush1.msra.mxu0 0.0
    %1373 = vmatprep.subr.mxu0 0.0
    %1374 = vmatpush1.msra.mxu0 0.0
    %1375 = vmatprep.subr.mxu0 0.0
    %1376 = vmatpush1.msra.mxu0 0.0
    %1377 = vmatprep.subr.mxu0 0.0
    %1378 = vmatpush1.msra.mxu0 0.0
    %1379 = vmatprep.mubr.f32.mxu0 0.0
    %1380 = vmatmul.mubr.f32.gmra.mrb[0].mxu0 %v1310
    %v1381 = vpop.f32.mrb[0].mxu0
    %v1382 = vadd.f32 %v1307, %v1381
    %v1383 = vpop.f32.mrb[0].mxu0
    %1384 = vmatprep.mubr.f32.mxu0 0.0
    %1385 = vmatmul.mubr.f32.gmra.mrb[0].mxu0 %v1313
    %v1386 = vpop.f32.mrb[0].mxu0
    %v1387 = vadd.f32 %v1307, %v1386
    %v1388 = vpop.f32.mrb[0].mxu0
    %1389 = vdwg.mxu0
    %v1390 = vadd.f32 %v1203, %v1382
    %v1391 = vadd.f32 %v1204, %v1387
    %v1392 = vsel %vm135, %v1390, 0.0
    %1393 = vadd.xlane.f32.xlu0 %v1392
    %v1394 = vpop.xlane.xlu0 %1393
    %v1395 = vsel %vm135, %v1391, 0.0
    %1396 = vadd.xlane.f32.xlu0 %v1395
    %v1397 = vpop.xlane.xlu0 %1396
    %v1398 = vmul.f32 %v1394, %v1172
    %v1399 = vmul.f32 %v1397, %v1172
    %v1400 = vsub.f32 %v1390, %v1398
    %v1401 = vsub.f32 %v1391, %v1399
    %v1402 = vmul.f32 %v1400, %v1400
    %v1403 = vmul.f32 %v1401, %v1401
    %v1404 = vsel %vm135, %v1402, 0.0
    %1405 = vadd.xlane.f32.xlu0 %v1404
    %v1406 = vpop.xlane.xlu0 %1405
    %v1407 = vsel %vm135, %v1403, 0.0
    %1408 = vadd.xlane.f32.xlu0 %v1407
    %v1409 = vpop.xlane.xlu0 %1408
    %v1410 = vmul.f32 %v1406, %v1172
    %v1411 = vmul.f32 %v1409, %v1172
    %v1412 = vadd.f32 %v1410, 1e-05
    %v1413 = vadd.f32 %v1411, 1e-05
    %v1414 = vrsqrt.pop %v1412
    %v1415 = vrsqrt.pop %v1413
    %v1416 = vmul.f32 %v1400, %v1414
    %v1417 = vmul.f32 %v1401, %v1415
    %v1418 = vlaneseq
    %v1419 = vshrl.u32 %v1418, 7
    %v1420 = vsub.s32 5, %v1419
    %v1421 = vrot.slane %v130, %v1420
    %v1422 = vmul.f32 %v1416, %v1421
    %v1423 = vmul.f32 %v1417, %v1421
    %v1424 = vlaneseq
    %v1425 = vshrl.u32 %v1424, 7
    %v1426 = vsub.s32 6, %v1425
    %v1427 = vrot.slane %v130, %v1426
    %v1428 = vadd.f32 %v1422, %v1427
    %v1429 = vadd.f32 %v1423, %v1427
    %s1430 = scalar_lea.vmem %s2, 32
    %v1431 = vld [vmem:[%s1430] sm:$0xff]
    %v1432 = vld [vmem:[%s1430 + $0x8] sm:$0xff]
    %v1433 = vld [vmem:[%s1430 + $0x10] sm:$0xff]
    %v1434 = vld [vmem:[%s1430 + $0x18] sm:$0xff]
    %s1435 = scalar_lea.vmem %s3, 8
    %v1436 = vld [vmem:[%s1435] sm:$0xff]
    %v1437 = vlaneseq
    %v1438 = vshrl.u32 %v1437, 7
    %v1439 = vsub.s32 0, %v1438
    %v1440 = vrot.slane %v1436, %v1439
    %v1442 = vsel %vm135, %v1428, 0
    %v1445 = vsel %vm135, %v1429, 0
    %1447 = vmatprep.subr.mxu0 0.0
    %1448 = vmatpush1.msra.mxu0 %v1431
    %1449 = vmatprep.subr.mxu0 0.0
    %1450 = vmatpush1.msra.mxu0 %v1432
    %1451 = vmatprep.subr.mxu0 0.0
    %1452 = vmatpush1.msra.mxu0 %v1433
    %1453 = vmatprep.subr.mxu0 0.0
    %1454 = vmatpush1.msra.mxu0 %v1434
    %1455 = vmatprep.subr.mxu0 0.0
    %1456 = vmatpush1.msra.mxu0 0.0
    %1457 = vmatprep.subr.mxu0 0.0
    %1458 = vmatpush1.msra.mxu0 0.0
    %1459 = vmatprep.subr.mxu0 0.0
    %1460 = vmatpush1.msra.mxu0 0.0
    %1461 = vmatprep.subr.mxu0 0.0
    %1462 = vmatpush1.msra.mxu0 0.0
    %1463 = vmatprep.subr.mxu0 0.0
    %1464 = vmatpush1.msra.mxu0 0.0
    %1465 = vmatprep.subr.mxu0 0.0
    %1466 = vmatpush1.msra.mxu0 0.0
    %1467 = vmatprep.subr.mxu0 0.0
    %1468 = vmatpush1.msra.mxu0 0.0
    %1469 = vmatprep.subr.mxu0 0.0
    %1470 = vmatpush1.msra.mxu0 0.0
    %1471 = vmatprep.subr.mxu0 0.0
    %1472 = vmatpush1.msra.mxu0 0.0
    %1473 = vmatprep.subr.mxu0 0.0
    %1474 = vmatpush1.msra.mxu0 0.0
    %1475 = vmatprep.subr.mxu0 0.0
    %1476 = vmatpush1.msra.mxu0 0.0
    %1477 = vmatprep.subr.mxu0 0.0
    %1478 = vmatpush1.msra.mxu0 0.0
    %1479 = vmatprep.subr.mxu0 0.0
    %1480 = vmatpush1.msra.mxu0 0.0
    %1481 = vmatprep.subr.mxu0 0.0
    %1482 = vmatpush1.msra.mxu0 0.0
    %1483 = vmatprep.subr.mxu0 0.0
    %1484 = vmatpush1.msra.mxu0 0.0
    %1485 = vmatprep.subr.mxu0 0.0
    %1486 = vmatpush1.msra.mxu0 0.0
    %1487 = vmatprep.subr.mxu0 0.0
    %1488 = vmatpush1.msra.mxu0 0.0
    %1489 = vmatprep.subr.mxu0 0.0
    %1490 = vmatpush1.msra.mxu0 0.0
    %1491 = vmatprep.subr.mxu0 0.0
    %1492 = vmatpush1.msra.mxu0 0.0
    %1493 = vmatprep.subr.mxu0 0.0
    %1494 = vmatpush1.msra.mxu0 0.0
    %1495 = vmatprep.subr.mxu0 0.0
    %1496 = vmatpush1.msra.mxu0 0.0
    %1497 = vmatprep.subr.mxu0 0.0
    %1498 = vmatpush1.msra.mxu0 0.0
    %1499 = vmatprep.subr.mxu0 0.0
    %1500 = vmatpush1.msra.mxu0 0.0
    %1501 = vmatprep.subr.mxu0 0.0
    %1502 = vmatpush1.msra.mxu0 0.0
    %1503 = vmatprep.subr.mxu0 0.0
    %1504 = vmatpush1.msra.mxu0 0.0
    %1505 = vmatprep.subr.mxu0 0.0
    %1506 = vmatpush1.msra.mxu0 0.0
    %1507 = vmatprep.subr.mxu0 0.0
    %1508 = vmatpush1.msra.mxu0 0.0
    %1509 = vmatprep.subr.mxu0 0.0
    %1510 = vmatpush1.msra.mxu0 0.0
    %1511 = vmatprep.mubr.f32.mxu0 0.0
    %1512 = vmatmul.mubr.f32.gmra.mrb[0].mxu0 %v1442
    %v1513 = vpop.f32.mrb[0].mxu0
    %v1514 = vadd.f32 %v1440, %v1513
    %v1515 = vpop.f32.mrb[0].mxu0
    %1516 = vmatprep.mubr.f32.mxu0 0.0
    %1517 = vmatmul.mubr.f32.gmra.mrb[0].mxu0 %v1445
    %v1518 = vpop.f32.mrb[0].mxu0
    %v1519 = vadd.f32 %v1440, %v1518
    %v1520 = vpop.f32.mrb[0].mxu0
    %1521 = vdwg.mxu0
    %1524 = vrot.lane.b32.xlu0 %v1514, 96
    %v1525 = vpop.permute.xlu0 %1524
    %1526 = vrot.lane.b32.xlu0 %v1519, 96
    %v1527 = vpop.permute.xlu0 %1526
    %v1528 = vsel %vm36, %v1514, 0
    %v1530 = vsel %vm36, %v1519, 0
    %v1532 = vsel %vm36, %v1525, 0
    %v1534 = vsel %vm36, %v1527, 0
    %1536 = vmatprep.subr.mxu0 0.0
    %1537 = vmatpush1.xpose.msra.mxu0 %v1532
    %1538 = vmatprep.subr.mxu0 0.0
    %1539 = vmatpush1.xpose.msra.mxu0 %v1534
    %1540 = vmatprep.subr.mxu0 0.0
    %1541 = vmatpush1.xpose.msra.mxu0 0.0
    %1542 = vmatprep.subr.mxu0 0.0
    %1543 = vmatpush1.xpose.msra.mxu0 0.0
    %1544 = vmatprep.subr.mxu0 0.0
    %1545 = vmatpush1.xpose.msra.mxu0 0.0
    %1546 = vmatprep.subr.mxu0 0.0
    %1547 = vmatpush1.xpose.msra.mxu0 0.0
    %1548 = vmatprep.subr.mxu0 0.0
    %1549 = vmatpush1.xpose.msra.mxu0 0.0
    %1550 = vmatprep.subr.mxu0 0.0
    %1551 = vmatpush1.xpose.msra.mxu0 0.0
    %1552 = vmatprep.subr.mxu0 0.0
    %1553 = vmatpush1.xpose.msra.mxu0 0.0
    %1554 = vmatprep.subr.mxu0 0.0
    %1555 = vmatpush1.xpose.msra.mxu0 0.0
    %1556 = vmatprep.subr.mxu0 0.0
    %1557 = vmatpush1.xpose.msra.mxu0 0.0
    %1558 = vmatprep.subr.mxu0 0.0
    %1559 = vmatpush1.xpose.msra.mxu0 0.0
    %1560 = vmatprep.subr.mxu0 0.0
    %1561 = vmatpush1.xpose.msra.mxu0 0.0
    %1562 = vmatprep.subr.mxu0 0.0
    %1563 = vmatpush1.xpose.msra.mxu0 0.0
    %1564 = vmatprep.subr.mxu0 0.0
    %1565 = vmatpush1.xpose.msra.mxu0 0.0
    %1566 = vmatprep.subr.mxu0 0.0
    %1567 = vmatpush1.xpose.msra.mxu0 0.0
    %1568 = vmatprep.subr.mxu0 0.0
    %1569 = vmatpush1.xpose.msra.mxu0 0.0
    %1570 = vmatprep.subr.mxu0 0.0
    %1571 = vmatpush1.xpose.msra.mxu0 0.0
    %1572 = vmatprep.subr.mxu0 0.0
    %1573 = vmatpush1.xpose.msra.mxu0 0.0
    %1574 = vmatprep.subr.mxu0 0.0
    %1575 = vmatpush1.xpose.msra.mxu0 0.0
    %1576 = vmatprep.subr.mxu0 0.0
    %1577 = vmatpush1.xpose.msra.mxu0 0.0
    %1578 = vmatprep.subr.mxu0 0.0
    %1579 = vmatpush1.xpose.msra.mxu0 0.0
    %1580 = vmatprep.subr.mxu0 0.0
    %1581 = vmatpush1.xpose.msra.mxu0 0.0
    %1582 = vmatprep.subr.mxu0 0.0
    %1583 = vmatpush1.xpose.msra.mxu0 0.0
    %1584 = vmatprep.subr.mxu0 0.0
    %1585 = vmatpush1.xpose.msra.mxu0 0.0
    %1586 = vmatprep.subr.mxu0 0.0
    %1587 = vmatpush1.xpose.msra.mxu0 0.0
    %1588 = vmatprep.subr.mxu0 0.0
    %1589 = vmatpush1.xpose.msra.mxu0 0.0
    %1590 = vmatprep.subr.mxu0 0.0
    %1591 = vmatpush1.xpose.msra.mxu0 0.0
    %1592 = vmatprep.subr.mxu0 0.0
    %1593 = vmatpush1.xpose.msra.mxu0 0.0
    %1594 = vmatprep.subr.mxu0 0.0
    %1595 = vmatpush1.xpose.msra.mxu0 0.0
    %1596 = vmatprep.subr.mxu0 0.0
    %1597 = vmatpush1.xpose.msra.mxu0 0.0
    %1598 = vmatprep.subr.mxu0 0.0
    %1599 = vmatpush1.xpose.msra.mxu0 0.0
    %1600 = vmatprep.mubr.f32.mxu0 0.0
    %1601 = vmatmul.mubr.f32.gmra.mrb[0].mxu0 %v1528
    %v1602 = vpop.f32.mrb[0].mxu0
    %v1603 = vadd.f32 0.0, %v1602
    %v1604 = vpop.f32.mrb[0].mxu0
    %1605 = vmatprep.mubr.f32.mxu0 0.0
    %1606 = vmatmul.mubr.f32.gmra.mrb[0].mxu0 %v1530
    %v1607 = vpop.f32.mrb[0].mxu0
    %v1608 = vadd.f32 0.0, %v1607
    %v1609 = vpop.f32.mrb[0].mxu0
    %1610 = vdwg.mxu0
    %v1611 = vmul.f32 %v1603, 0.35355338
    %v1612 = vmul.f32 %v1608, 0.35355338
    %v1613 = vadd.f32 %v1611, %v28
    %v1614 = vadd.f32 %v1612, %v29
    %v1615 = vsel %vm310, %v1613, -inf
    %1616 = vmax.xlane.f32.xlu0 %v1615
    %v1617 = vpop.xlane.xlu0 %1616
    %v1618 = vsel %vm310, %v1614, -inf
    %1619 = vmax.xlane.f32.xlu0 %v1618
    %v1620 = vpop.xlane.xlu0 %1619
    %v1621 = vsub.f32 %v1613, %v1617
    %v1622 = vsub.f32 %v1614, %v1620
    %v1623 = vmul.f32 %v1621, 1.442695
    %v1624 = vpow.pop %v1623
    %v1625 = vmul.f32 %v1622, 1.442695
    %v1626 = vpow.pop %v1625
    %v1627 = vsel %vm310, %v1624, 0.0
    %1628 = vadd.xlane.f32.xlu0 %v1627
    %v1629 = vpop.xlane.xlu0 %1628
    %v1630 = vsel %vm310, %v1626, 0.0
    %1631 = vadd.xlane.f32.xlu0 %v1630
    %v1632 = vpop.xlane.xlu0 %1631
    %v1633 = vrcp.pop %v1629
    %v1634 = vrcp.pop %v1632
    %v1635 = vmul.f32 %v1624, %v1633
    %v1636 = vmul.f32 %v1626, %v1634
    %1637 = vrot.lane.b32.xlu0 %v1514, 64
    %v1638 = vpop.permute.xlu0 %1637
    %1639 = vrot.lane.b32.xlu0 %v1519, 64
    %v1640 = vpop.permute.xlu0 %1639
    %v1644 = vsel %vm310, %v1635, 0
    %v1647 = vsel %vm310, %v1636, 0
    %1649 = vmatprep.subr.mxu0 0.0
    %1650 = vmatpush1.msra.mxu0 %v1638
    %1651 = vmatprep.subr.mxu0 0.0
    %1652 = vmatpush1.msra.mxu0 %v1640
    %1653 = vmatprep.subr.mxu0 0.0
    %1654 = vmatpush1.msra.mxu0 0.0
    %1655 = vmatprep.subr.mxu0 0.0
    %1656 = vmatpush1.msra.mxu0 0.0
    %1657 = vmatprep.subr.mxu0 0.0
    %1658 = vmatpush1.msra.mxu0 0.0
    %1659 = vmatprep.subr.mxu0 0.0
    %1660 = vmatpush1.msra.mxu0 0.0
    %1661 = vmatprep.subr.mxu0 0.0
    %1662 = vmatpush1.msra.mxu0 0.0
    %1663 = vmatprep.subr.mxu0 0.0
    %1664 = vmatpush1.msra.mxu0 0.0
    %1665 = vmatprep.subr.mxu0 0.0
    %1666 = vmatpush1.msra.mxu0 0.0
    %1667 = vmatprep.subr.mxu0 0.0
    %1668 = vmatpush1.msra.mxu0 0.0
    %1669 = vmatprep.subr.mxu0 0.0
    %1670 = vmatpush1.msra.mxu0 0.0
    %1671 = vmatprep.subr.mxu0 0.0
    %1672 = vmatpush1.msra.mxu0 0.0
    %1673 = vmatprep.subr.mxu0 0.0
    %1674 = vmatpush1.msra.mxu0 0.0
    %1675 = vmatprep.subr.mxu0 0.0
    %1676 = vmatpush1.msra.mxu0 0.0
    %1677 = vmatprep.subr.mxu0 0.0
    %1678 = vmatpush1.msra.mxu0 0.0
    %1679 = vmatprep.subr.mxu0 0.0
    %1680 = vmatpush1.msra.mxu0 0.0
    %1681 = vmatprep.subr.mxu0 0.0
    %1682 = vmatpush1.msra.mxu0 0.0
    %1683 = vmatprep.subr.mxu0 0.0
    %1684 = vmatpush1.msra.mxu0 0.0
    %1685 = vmatprep.subr.mxu0 0.0
    %1686 = vmatpush1.msra.mxu0 0.0
    %1687 = vmatprep.subr.mxu0 0.0
    %1688 = vmatpush1.msra.mxu0 0.0
    %1689 = vmatprep.subr.mxu0 0.0
    %1690 = vmatpush1.msra.mxu0 0.0
    %1691 = vmatprep.subr.mxu0 0.0
    %1692 = vmatpush1.msra.mxu0 0.0
    %1693 = vmatprep.subr.mxu0 0.0
    %1694 = vmatpush1.msra.mxu0 0.0
    %1695 = vmatprep.subr.mxu0 0.0
    %1696 = vmatpush1.msra.mxu0 0.0
    %1697 = vmatprep.subr.mxu0 0.0
    %1698 = vmatpush1.msra.mxu0 0.0
    %1699 = vmatprep.subr.mxu0 0.0
    %1700 = vmatpush1.msra.mxu0 0.0
    %1701 = vmatprep.subr.mxu0 0.0
    %1702 = vmatpush1.msra.mxu0 0.0
    %1703 = vmatprep.subr.mxu0 0.0
    %1704 = vmatpush1.msra.mxu0 0.0
    %1705 = vmatprep.subr.mxu0 0.0
    %1706 = vmatpush1.msra.mxu0 0.0
    %1707 = vmatprep.subr.mxu0 0.0
    %1708 = vmatpush1.msra.mxu0 0.0
    %1709 = vmatprep.subr.mxu0 0.0
    %1710 = vmatpush1.msra.mxu0 0.0
    %1711 = vmatprep.subr.mxu0 0.0
    %1712 = vmatpush1.msra.mxu0 0.0
    %1713 = vmatprep.mubr.f32.mxu0 0.0
    %1714 = vmatmul.mubr.f32.gmra.mrb[0].mxu0 %v1644
    %v1715 = vpop.f32.mrb[0].mxu0
    %v1716 = vadd.f32 0.0, %v1715
    %v1717 = vpop.f32.mrb[0].mxu0
    %1718 = vmatprep.mubr.f32.mxu0 0.0
    %1719 = vmatmul.mubr.f32.gmra.mrb[0].mxu0 %v1647
    %v1720 = vpop.f32.mrb[0].mxu0
    %v1721 = vadd.f32 0.0, %v1720
    %v1722 = vpop.f32.mrb[0].mxu0
    %1723 = vdwg.mxu0
    %1724 = vrot.lane.b32.xlu0 %v1514, 120
    %v1725 = vpop.permute.xlu0 %1724
    %1726 = vrot.lane.b32.xlu0 %v1519, 120
    %v1727 = vpop.permute.xlu0 %1726
    %1728 = vrot.lane.b32.xlu0 %v1514, 88
    %v1729 = vpop.permute.xlu0 %1728
    %1730 = vrot.lane.b32.xlu0 %v1519, 88
    %v1731 = vpop.permute.xlu0 %1730
    %v1732 = vsel %vm36, %v1725, 0
    %v1734 = vsel %vm36, %v1727, 0
    %v1736 = vsel %vm36, %v1729, 0
    %v1738 = vsel %vm36, %v1731, 0
    %1740 = vmatprep.subr.mxu0 0.0
    %1741 = vmatpush1.xpose.msra.mxu0 %v1736
    %1742 = vmatprep.subr.mxu0 0.0
    %1743 = vmatpush1.xpose.msra.mxu0 %v1738
    %1744 = vmatprep.subr.mxu0 0.0
    %1745 = vmatpush1.xpose.msra.mxu0 0.0
    %1746 = vmatprep.subr.mxu0 0.0
    %1747 = vmatpush1.xpose.msra.mxu0 0.0
    %1748 = vmatprep.subr.mxu0 0.0
    %1749 = vmatpush1.xpose.msra.mxu0 0.0
    %1750 = vmatprep.subr.mxu0 0.0
    %1751 = vmatpush1.xpose.msra.mxu0 0.0
    %1752 = vmatprep.subr.mxu0 0.0
    %1753 = vmatpush1.xpose.msra.mxu0 0.0
    %1754 = vmatprep.subr.mxu0 0.0
    %1755 = vmatpush1.xpose.msra.mxu0 0.0
    %1756 = vmatprep.subr.mxu0 0.0
    %1757 = vmatpush1.xpose.msra.mxu0 0.0
    %1758 = vmatprep.subr.mxu0 0.0
    %1759 = vmatpush1.xpose.msra.mxu0 0.0
    %1760 = vmatprep.subr.mxu0 0.0
    %1761 = vmatpush1.xpose.msra.mxu0 0.0
    %1762 = vmatprep.subr.mxu0 0.0
    %1763 = vmatpush1.xpose.msra.mxu0 0.0
    %1764 = vmatprep.subr.mxu0 0.0
    %1765 = vmatpush1.xpose.msra.mxu0 0.0
    %1766 = vmatprep.subr.mxu0 0.0
    %1767 = vmatpush1.xpose.msra.mxu0 0.0
    %1768 = vmatprep.subr.mxu0 0.0
    %1769 = vmatpush1.xpose.msra.mxu0 0.0
    %1770 = vmatprep.subr.mxu0 0.0
    %1771 = vmatpush1.xpose.msra.mxu0 0.0
    %1772 = vmatprep.subr.mxu0 0.0
    %1773 = vmatpush1.xpose.msra.mxu0 0.0
    %1774 = vmatprep.subr.mxu0 0.0
    %1775 = vmatpush1.xpose.msra.mxu0 0.0
    %1776 = vmatprep.subr.mxu0 0.0
    %1777 = vmatpush1.xpose.msra.mxu0 0.0
    %1778 = vmatprep.subr.mxu0 0.0
    %1779 = vmatpush1.xpose.msra.mxu0 0.0
    %1780 = vmatprep.subr.mxu0 0.0
    %1781 = vmatpush1.xpose.msra.mxu0 0.0
    %1782 = vmatprep.subr.mxu0 0.0
    %1783 = vmatpush1.xpose.msra.mxu0 0.0
    %1784 = vmatprep.subr.mxu0 0.0
    %1785 = vmatpush1.xpose.msra.mxu0 0.0
    %1786 = vmatprep.subr.mxu0 0.0
    %1787 = vmatpush1.xpose.msra.mxu0 0.0
    %1788 = vmatprep.subr.mxu0 0.0
    %1789 = vmatpush1.xpose.msra.mxu0 0.0
    %1790 = vmatprep.subr.mxu0 0.0
    %1791 = vmatpush1.xpose.msra.mxu0 0.0
    %1792 = vmatprep.subr.mxu0 0.0
    %1793 = vmatpush1.xpose.msra.mxu0 0.0
    %1794 = vmatprep.subr.mxu0 0.0
    %1795 = vmatpush1.xpose.msra.mxu0 0.0
    %1796 = vmatprep.subr.mxu0 0.0
    %1797 = vmatpush1.xpose.msra.mxu0 0.0
    %1798 = vmatprep.subr.mxu0 0.0
    %1799 = vmatpush1.xpose.msra.mxu0 0.0
    %1800 = vmatprep.subr.mxu0 0.0
    %1801 = vmatpush1.xpose.msra.mxu0 0.0
    %1802 = vmatprep.subr.mxu0 0.0
    %1803 = vmatpush1.xpose.msra.mxu0 0.0
    %1804 = vmatprep.mubr.f32.mxu0 0.0
    %1805 = vmatmul.mubr.f32.gmra.mrb[0].mxu0 %v1732
    %v1806 = vpop.f32.mrb[0].mxu0
    %v1807 = vadd.f32 0.0, %v1806
    %v1808 = vpop.f32.mrb[0].mxu0
    %1809 = vmatprep.mubr.f32.mxu0 0.0
    %1810 = vmatmul.mubr.f32.gmra.mrb[0].mxu0 %v1734
    %v1811 = vpop.f32.mrb[0].mxu0
    %v1812 = vadd.f32 0.0, %v1811
    %v1813 = vpop.f32.mrb[0].mxu0
    %1814 = vdwg.mxu0
    %v1815 = vmul.f32 %v1807, 0.35355338
    %v1816 = vmul.f32 %v1812, 0.35355338
    %v1817 = vadd.f32 %v1815, %v28
    %v1818 = vadd.f32 %v1816, %v29
    %v1819 = vsel %vm310, %v1817, -inf
    %1820 = vmax.xlane.f32.xlu0 %v1819
    %v1821 = vpop.xlane.xlu0 %1820
    %v1822 = vsel %vm310, %v1818, -inf
    %1823 = vmax.xlane.f32.xlu0 %v1822
    %v1824 = vpop.xlane.xlu0 %1823
    %v1825 = vsub.f32 %v1817, %v1821
    %v1826 = vsub.f32 %v1818, %v1824
    %v1827 = vmul.f32 %v1825, 1.442695
    %v1828 = vpow.pop %v1827
    %v1829 = vmul.f32 %v1826, 1.442695
    %v1830 = vpow.pop %v1829
    %v1831 = vsel %vm310, %v1828, 0.0
    %1832 = vadd.xlane.f32.xlu0 %v1831
    %v1833 = vpop.xlane.xlu0 %1832
    %v1834 = vsel %vm310, %v1830, 0.0
    %1835 = vadd.xlane.f32.xlu0 %v1834
    %v1836 = vpop.xlane.xlu0 %1835
    %v1837 = vrcp.pop %v1833
    %v1838 = vrcp.pop %v1836
    %v1839 = vmul.f32 %v1828, %v1837
    %v1840 = vmul.f32 %v1830, %v1838
    %1841 = vrot.lane.b32.xlu0 %v1514, 56
    %v1842 = vpop.permute.xlu0 %1841
    %1843 = vrot.lane.b32.xlu0 %v1519, 56
    %v1844 = vpop.permute.xlu0 %1843
    %v1848 = vsel %vm310, %v1839, 0
    %v1851 = vsel %vm310, %v1840, 0
    %1853 = vmatprep.subr.mxu0 0.0
    %1854 = vmatpush1.msra.mxu0 %v1842
    %1855 = vmatprep.subr.mxu0 0.0
    %1856 = vmatpush1.msra.mxu0 %v1844
    %1857 = vmatprep.subr.mxu0 0.0
    %1858 = vmatpush1.msra.mxu0 0.0
    %1859 = vmatprep.subr.mxu0 0.0
    %1860 = vmatpush1.msra.mxu0 0.0
    %1861 = vmatprep.subr.mxu0 0.0
    %1862 = vmatpush1.msra.mxu0 0.0
    %1863 = vmatprep.subr.mxu0 0.0
    %1864 = vmatpush1.msra.mxu0 0.0
    %1865 = vmatprep.subr.mxu0 0.0
    %1866 = vmatpush1.msra.mxu0 0.0
    %1867 = vmatprep.subr.mxu0 0.0
    %1868 = vmatpush1.msra.mxu0 0.0
    %1869 = vmatprep.subr.mxu0 0.0
    %1870 = vmatpush1.msra.mxu0 0.0
    %1871 = vmatprep.subr.mxu0 0.0
    %1872 = vmatpush1.msra.mxu0 0.0
    %1873 = vmatprep.subr.mxu0 0.0
    %1874 = vmatpush1.msra.mxu0 0.0
    %1875 = vmatprep.subr.mxu0 0.0
    %1876 = vmatpush1.msra.mxu0 0.0
    %1877 = vmatprep.subr.mxu0 0.0
    %1878 = vmatpush1.msra.mxu0 0.0
    %1879 = vmatprep.subr.mxu0 0.0
    %1880 = vmatpush1.msra.mxu0 0.0
    %1881 = vmatprep.subr.mxu0 0.0
    %1882 = vmatpush1.msra.mxu0 0.0
    %1883 = vmatprep.subr.mxu0 0.0
    %1884 = vmatpush1.msra.mxu0 0.0
    %1885 = vmatprep.subr.mxu0 0.0
    %1886 = vmatpush1.msra.mxu0 0.0
    %1887 = vmatprep.subr.mxu0 0.0
    %1888 = vmatpush1.msra.mxu0 0.0
    %1889 = vmatprep.subr.mxu0 0.0
    %1890 = vmatpush1.msra.mxu0 0.0
    %1891 = vmatprep.subr.mxu0 0.0
    %1892 = vmatpush1.msra.mxu0 0.0
    %1893 = vmatprep.subr.mxu0 0.0
    %1894 = vmatpush1.msra.mxu0 0.0
    %1895 = vmatprep.subr.mxu0 0.0
    %1896 = vmatpush1.msra.mxu0 0.0
    %1897 = vmatprep.subr.mxu0 0.0
    %1898 = vmatpush1.msra.mxu0 0.0
    %1899 = vmatprep.subr.mxu0 0.0
    %1900 = vmatpush1.msra.mxu0 0.0
    %1901 = vmatprep.subr.mxu0 0.0
    %1902 = vmatpush1.msra.mxu0 0.0
    %1903 = vmatprep.subr.mxu0 0.0
    %1904 = vmatpush1.msra.mxu0 0.0
    %1905 = vmatprep.subr.mxu0 0.0
    %1906 = vmatpush1.msra.mxu0 0.0
    %1907 = vmatprep.subr.mxu0 0.0
    %1908 = vmatpush1.msra.mxu0 0.0
    %1909 = vmatprep.subr.mxu0 0.0
    %1910 = vmatpush1.msra.mxu0 0.0
    %1911 = vmatprep.subr.mxu0 0.0
    %1912 = vmatpush1.msra.mxu0 0.0
    %1913 = vmatprep.subr.mxu0 0.0
    %1914 = vmatpush1.msra.mxu0 0.0
    %1915 = vmatprep.subr.mxu0 0.0
    %1916 = vmatpush1.msra.mxu0 0.0
    %1917 = vmatprep.mubr.f32.mxu0 0.0
    %1918 = vmatmul.mubr.f32.gmra.mrb[0].mxu0 %v1848
    %v1919 = vpop.f32.mrb[0].mxu0
    %v1920 = vadd.f32 0.0, %v1919
    %v1921 = vpop.f32.mrb[0].mxu0
    %1922 = vmatprep.mubr.f32.mxu0 0.0
    %1923 = vmatmul.mubr.f32.gmra.mrb[0].mxu0 %v1851
    %v1924 = vpop.f32.mrb[0].mxu0
    %v1925 = vadd.f32 0.0, %v1924
    %v1926 = vpop.f32.mrb[0].mxu0
    %1927 = vdwg.mxu0
    %1928 = vrot.lane.b32.xlu0 %v1514, 112
    %v1929 = vpop.permute.xlu0 %1928
    %1930 = vrot.lane.b32.xlu0 %v1519, 112
    %v1931 = vpop.permute.xlu0 %1930
    %1932 = vrot.lane.b32.xlu0 %v1514, 80
    %v1933 = vpop.permute.xlu0 %1932
    %1934 = vrot.lane.b32.xlu0 %v1519, 80
    %v1935 = vpop.permute.xlu0 %1934
    %v1936 = vsel %vm36, %v1929, 0
    %v1938 = vsel %vm36, %v1931, 0
    %v1940 = vsel %vm36, %v1933, 0
    %v1942 = vsel %vm36, %v1935, 0
    %1944 = vmatprep.subr.mxu0 0.0
    %1945 = vmatpush1.xpose.msra.mxu0 %v1940
    %1946 = vmatprep.subr.mxu0 0.0
    %1947 = vmatpush1.xpose.msra.mxu0 %v1942
    %1948 = vmatprep.subr.mxu0 0.0
    %1949 = vmatpush1.xpose.msra.mxu0 0.0
    %1950 = vmatprep.subr.mxu0 0.0
    %1951 = vmatpush1.xpose.msra.mxu0 0.0
    %1952 = vmatprep.subr.mxu0 0.0
    %1953 = vmatpush1.xpose.msra.mxu0 0.0
    %1954 = vmatprep.subr.mxu0 0.0
    %1955 = vmatpush1.xpose.msra.mxu0 0.0
    %1956 = vmatprep.subr.mxu0 0.0
    %1957 = vmatpush1.xpose.msra.mxu0 0.0
    %1958 = vmatprep.subr.mxu0 0.0
    %1959 = vmatpush1.xpose.msra.mxu0 0.0
    %1960 = vmatprep.subr.mxu0 0.0
    %1961 = vmatpush1.xpose.msra.mxu0 0.0
    %1962 = vmatprep.subr.mxu0 0.0
    %1963 = vmatpush1.xpose.msra.mxu0 0.0
    %1964 = vmatprep.subr.mxu0 0.0
    %1965 = vmatpush1.xpose.msra.mxu0 0.0
    %1966 = vmatprep.subr.mxu0 0.0
    %1967 = vmatpush1.xpose.msra.mxu0 0.0
    %1968 = vmatprep.subr.mxu0 0.0
    %1969 = vmatpush1.xpose.msra.mxu0 0.0
    %1970 = vmatprep.subr.mxu0 0.0
    %1971 = vmatpush1.xpose.msra.mxu0 0.0
    %1972 = vmatprep.subr.mxu0 0.0
    %1973 = vmatpush1.xpose.msra.mxu0 0.0
    %1974 = vmatprep.subr.mxu0 0.0
    %1975 = vmatpush1.xpose.msra.mxu0 0.0
    %1976 = vmatprep.subr.mxu0 0.0
    %1977 = vmatpush1.xpose.msra.mxu0 0.0
    %1978 = vmatprep.subr.mxu0 0.0
    %1979 = vmatpush1.xpose.msra.mxu0 0.0
    %1980 = vmatprep.subr.mxu0 0.0
    %1981 = vmatpush1.xpose.msra.mxu0 0.0
    %1982 = vmatprep.subr.mxu0 0.0
    %1983 = vmatpush1.xpose.msra.mxu0 0.0
    %1984 = vmatprep.subr.mxu0 0.0
    %1985 = vmatpush1.xpose.msra.mxu0 0.0
    %1986 = vmatprep.subr.mxu0 0.0
    %1987 = vmatpush1.xpose.msra.mxu0 0.0
    %1988 = vmatprep.subr.mxu0 0.0
    %1989 = vmatpush1.xpose.msra.mxu0 0.0
    %1990 = vmatprep.subr.mxu0 0.0
    %1991 = vmatpush1.xpose.msra.mxu0 0.0
    %1992 = vmatprep.subr.mxu0 0.0
    %1993 = vmatpush1.xpose.msra.mxu0 0.0
    %1994 = vmatprep.subr.mxu0 0.0
    %1995 = vmatpush1.xpose.msra.mxu0 0.0
    %1996 = vmatprep.subr.mxu0 0.0
    %1997 = vmatpush1.xpose.msra.mxu0 0.0
    %1998 = vmatprep.subr.mxu0 0.0
    %1999 = vmatpush1.xpose.msra.mxu0 0.0
    %2000 = vmatprep.subr.mxu0 0.0
    %2001 = vmatpush1.xpose.msra.mxu0 0.0
    %2002 = vmatprep.subr.mxu0 0.0
    %2003 = vmatpush1.xpose.msra.mxu0 0.0
    %2004 = vmatprep.subr.mxu0 0.0
    %2005 = vmatpush1.xpose.msra.mxu0 0.0
    %2006 = vmatprep.subr.mxu0 0.0
    %2007 = vmatpush1.xpose.msra.mxu0 0.0
    %2008 = vmatprep.mubr.f32.mxu0 0.0
    %2009 = vmatmul.mubr.f32.gmra.mrb[0].mxu0 %v1936
    %v2010 = vpop.f32.mrb[0].mxu0
    %v2011 = vadd.f32 0.0, %v2010
    %v2012 = vpop.f32.mrb[0].mxu0
    %2013 = vmatprep.mubr.f32.mxu0 0.0
    %2014 = vmatmul.mubr.f32.gmra.mrb[0].mxu0 %v1938
    %v2015 = vpop.f32.mrb[0].mxu0
    %v2016 = vadd.f32 0.0, %v2015
    %v2017 = vpop.f32.mrb[0].mxu0
    %2018 = vdwg.mxu0
    %v2019 = vmul.f32 %v2011, 0.35355338
    %v2020 = vmul.f32 %v2016, 0.35355338
    %v2021 = vadd.f32 %v2019, %v28
    %v2022 = vadd.f32 %v2020, %v29
    %v2023 = vsel %vm310, %v2021, -inf
    %2024 = vmax.xlane.f32.xlu0 %v2023
    %v2025 = vpop.xlane.xlu0 %2024
    %v2026 = vsel %vm310, %v2022, -inf
    %2027 = vmax.xlane.f32.xlu0 %v2026
    %v2028 = vpop.xlane.xlu0 %2027
    %v2029 = vsub.f32 %v2021, %v2025
    %v2030 = vsub.f32 %v2022, %v2028
    %v2031 = vmul.f32 %v2029, 1.442695
    %v2032 = vpow.pop %v2031
    %v2033 = vmul.f32 %v2030, 1.442695
    %v2034 = vpow.pop %v2033
    %v2035 = vsel %vm310, %v2032, 0.0
    %2036 = vadd.xlane.f32.xlu0 %v2035
    %v2037 = vpop.xlane.xlu0 %2036
    %v2038 = vsel %vm310, %v2034, 0.0
    %2039 = vadd.xlane.f32.xlu0 %v2038
    %v2040 = vpop.xlane.xlu0 %2039
    %v2041 = vrcp.pop %v2037
    %v2042 = vrcp.pop %v2040
    %v2043 = vmul.f32 %v2032, %v2041
    %v2044 = vmul.f32 %v2034, %v2042
    %2045 = vrot.lane.b32.xlu0 %v1514, 48
    %v2046 = vpop.permute.xlu0 %2045
    %2047 = vrot.lane.b32.xlu0 %v1519, 48
    %v2048 = vpop.permute.xlu0 %2047
    %v2052 = vsel %vm310, %v2043, 0
    %v2055 = vsel %vm310, %v2044, 0
    %2057 = vmatprep.subr.mxu0 0.0
    %2058 = vmatpush1.msra.mxu0 %v2046
    %2059 = vmatprep.subr.mxu0 0.0
    %2060 = vmatpush1.msra.mxu0 %v2048
    %2061 = vmatprep.subr.mxu0 0.0
    %2062 = vmatpush1.msra.mxu0 0.0
    %2063 = vmatprep.subr.mxu0 0.0
    %2064 = vmatpush1.msra.mxu0 0.0
    %2065 = vmatprep.subr.mxu0 0.0
    %2066 = vmatpush1.msra.mxu0 0.0
    %2067 = vmatprep.subr.mxu0 0.0
    %2068 = vmatpush1.msra.mxu0 0.0
    %2069 = vmatprep.subr.mxu0 0.0
    %2070 = vmatpush1.msra.mxu0 0.0
    %2071 = vmatprep.subr.mxu0 0.0
    %2072 = vmatpush1.msra.mxu0 0.0
    %2073 = vmatprep.subr.mxu0 0.0
    %2074 = vmatpush1.msra.mxu0 0.0
    %2075 = vmatprep.subr.mxu0 0.0
    %2076 = vmatpush1.msra.mxu0 0.0
    %2077 = vmatprep.subr.mxu0 0.0
    %2078 = vmatpush1.msra.mxu0 0.0
    %2079 = vmatprep.subr.mxu0 0.0
    %2080 = vmatpush1.msra.mxu0 0.0
    %2081 = vmatprep.subr.mxu0 0.0
    %2082 = vmatpush1.msra.mxu0 0.0
    %2083 = vmatprep.subr.mxu0 0.0
    %2084 = vmatpush1.msra.mxu0 0.0
    %2085 = vmatprep.subr.mxu0 0.0
    %2086 = vmatpush1.msra.mxu0 0.0
    %2087 = vmatprep.subr.mxu0 0.0
    %2088 = vmatpush1.msra.mxu0 0.0
    %2089 = vmatprep.subr.mxu0 0.0
    %2090 = vmatpush1.msra.mxu0 0.0
    %2091 = vmatprep.subr.mxu0 0.0
    %2092 = vmatpush1.msra.mxu0 0.0
    %2093 = vmatprep.subr.mxu0 0.0
    %2094 = vmatpush1.msra.mxu0 0.0
    %2095 = vmatprep.subr.mxu0 0.0
    %2096 = vmatpush1.msra.mxu0 0.0
    %2097 = vmatprep.subr.mxu0 0.0
    %2098 = vmatpush1.msra.mxu0 0.0
    %2099 = vmatprep.subr.mxu0 0.0
    %2100 = vmatpush1.msra.mxu0 0.0
    %2101 = vmatprep.subr.mxu0 0.0
    %2102 = vmatpush1.msra.mxu0 0.0
    %2103 = vmatprep.subr.mxu0 0.0
    %2104 = vmatpush1.msra.mxu0 0.0
    %2105 = vmatprep.subr.mxu0 0.0
    %2106 = vmatpush1.msra.mxu0 0.0
    %2107 = vmatprep.subr.mxu0 0.0
    %2108 = vmatpush1.msra.mxu0 0.0
    %2109 = vmatprep.subr.mxu0 0.0
    %2110 = vmatpush1.msra.mxu0 0.0
    %2111 = vmatprep.subr.mxu0 0.0
    %2112 = vmatpush1.msra.mxu0 0.0
    %2113 = vmatprep.subr.mxu0 0.0
    %2114 = vmatpush1.msra.mxu0 0.0
    %2115 = vmatprep.subr.mxu0 0.0
    %2116 = vmatpush1.msra.mxu0 0.0
    %2117 = vmatprep.subr.mxu0 0.0
    %2118 = vmatpush1.msra.mxu0 0.0
    %2119 = vmatprep.subr.mxu0 0.0
    %2120 = vmatpush1.msra.mxu0 0.0
    %2121 = vmatprep.mubr.f32.mxu0 0.0
    %2122 = vmatmul.mubr.f32.gmra.mrb[0].mxu0 %v2052
    %v2123 = vpop.f32.mrb[0].mxu0
    %v2124 = vadd.f32 0.0, %v2123
    %v2125 = vpop.f32.mrb[0].mxu0
    %2126 = vmatprep.mubr.f32.mxu0 0.0
    %2127 = vmatmul.mubr.f32.gmra.mrb[0].mxu0 %v2055
    %v2128 = vpop.f32.mrb[0].mxu0
    %v2129 = vadd.f32 0.0, %v2128
    %v2130 = vpop.f32.mrb[0].mxu0
    %2131 = vdwg.mxu0
    %2132 = vrot.lane.b32.xlu0 %v1514, 104
    %v2133 = vpop.permute.xlu0 %2132
    %2134 = vrot.lane.b32.xlu0 %v1519, 104
    %v2135 = vpop.permute.xlu0 %2134
    %2136 = vrot.lane.b32.xlu0 %v1514, 72
    %v2137 = vpop.permute.xlu0 %2136
    %2138 = vrot.lane.b32.xlu0 %v1519, 72
    %v2139 = vpop.permute.xlu0 %2138
    %v2140 = vsel %vm36, %v2133, 0
    %v2142 = vsel %vm36, %v2135, 0
    %v2144 = vsel %vm36, %v2137, 0
    %v2146 = vsel %vm36, %v2139, 0
    %2148 = vmatprep.subr.mxu0 0.0
    %2149 = vmatpush1.xpose.msra.mxu0 %v2144
    %2150 = vmatprep.subr.mxu0 0.0
    %2151 = vmatpush1.xpose.msra.mxu0 %v2146
    %2152 = vmatprep.subr.mxu0 0.0
    %2153 = vmatpush1.xpose.msra.mxu0 0.0
    %2154 = vmatprep.subr.mxu0 0.0
    %2155 = vmatpush1.xpose.msra.mxu0 0.0
    %2156 = vmatprep.subr.mxu0 0.0
    %2157 = vmatpush1.xpose.msra.mxu0 0.0
    %2158 = vmatprep.subr.mxu0 0.0
    %2159 = vmatpush1.xpose.msra.mxu0 0.0
    %2160 = vmatprep.subr.mxu0 0.0
    %2161 = vmatpush1.xpose.msra.mxu0 0.0
    %2162 = vmatprep.subr.mxu0 0.0
    %2163 = vmatpush1.xpose.msra.mxu0 0.0
    %2164 = vmatprep.subr.mxu0 0.0
    %2165 = vmatpush1.xpose.msra.mxu0 0.0
    %2166 = vmatprep.subr.mxu0 0.0
    %2167 = vmatpush1.xpose.msra.mxu0 0.0
    %2168 = vmatprep.subr.mxu0 0.0
    %2169 = vmatpush1.xpose.msra.mxu0 0.0
    %2170 = vmatprep.subr.mxu0 0.0
    %2171 = vmatpush1.xpose.msra.mxu0 0.0
    %2172 = vmatprep.subr.mxu0 0.0
    %2173 = vmatpush1.xpose.msra.mxu0 0.0
    %2174 = vmatprep.subr.mxu0 0.0
    %2175 = vmatpush1.xpose.msra.mxu0 0.0
    %2176 = vmatprep.subr.mxu0 0.0
    %2177 = vmatpush1.xpose.msra.mxu0 0.0
    %2178 = vmatprep.subr.mxu0 0.0
    %2179 = vmatpush1.xpose.msra.mxu0 0.0
    %2180 = vmatprep.subr.mxu0 0.0
    %2181 = vmatpush1.xpose.msra.mxu0 0.0
    %2182 = vmatprep.subr.mxu0 0.0
    %2183 = vmatpush1.xpose.msra.mxu0 0.0
    %2184 = vmatprep.subr.mxu0 0.0
    %2185 = vmatpush1.xpose.msra.mxu0 0.0
    %2186 = vmatprep.subr.mxu0 0.0
    %2187 = vmatpush1.xpose.msra.mxu0 0.0
    %2188 = vmatprep.subr.mxu0 0.0
    %2189 = vmatpush1.xpose.msra.mxu0 0.0
    %2190 = vmatprep.subr.mxu0 0.0
    %2191 = vmatpush1.xpose.msra.mxu0 0.0
    %2192 = vmatprep.subr.mxu0 0.0
    %2193 = vmatpush1.xpose.msra.mxu0 0.0
    %2194 = vmatprep.subr.mxu0 0.0
    %2195 = vmatpush1.xpose.msra.mxu0 0.0
    %2196 = vmatprep.subr.mxu0 0.0
    %2197 = vmatpush1.xpose.msra.mxu0 0.0
    %2198 = vmatprep.subr.mxu0 0.0
    %2199 = vmatpush1.xpose.msra.mxu0 0.0
    %2200 = vmatprep.subr.mxu0 0.0
    %2201 = vmatpush1.xpose.msra.mxu0 0.0
    %2202 = vmatprep.subr.mxu0 0.0
    %2203 = vmatpush1.xpose.msra.mxu0 0.0
    %2204 = vmatprep.subr.mxu0 0.0
    %2205 = vmatpush1.xpose.msra.mxu0 0.0
    %2206 = vmatprep.subr.mxu0 0.0
    %2207 = vmatpush1.xpose.msra.mxu0 0.0
    %2208 = vmatprep.subr.mxu0 0.0
    %2209 = vmatpush1.xpose.msra.mxu0 0.0
    %2210 = vmatprep.subr.mxu0 0.0
    %2211 = vmatpush1.xpose.msra.mxu0 0.0
    %2212 = vmatprep.mubr.f32.mxu0 0.0
    %2213 = vmatmul.mubr.f32.gmra.mrb[0].mxu0 %v2140
    %v2214 = vpop.f32.mrb[0].mxu0
    %v2215 = vadd.f32 0.0, %v2214
    %v2216 = vpop.f32.mrb[0].mxu0
    %2217 = vmatprep.mubr.f32.mxu0 0.0
    %2218 = vmatmul.mubr.f32.gmra.mrb[0].mxu0 %v2142
    %v2219 = vpop.f32.mrb[0].mxu0
    %v2220 = vadd.f32 0.0, %v2219
    %v2221 = vpop.f32.mrb[0].mxu0
    %2222 = vdwg.mxu0
    %v2223 = vmul.f32 %v2215, 0.35355338
    %v2224 = vmul.f32 %v2220, 0.35355338
    %v2225 = vadd.f32 %v2223, %v28
    %v2226 = vadd.f32 %v2224, %v29
    %v2227 = vsel %vm310, %v2225, -inf
    %2228 = vmax.xlane.f32.xlu0 %v2227
    %v2229 = vpop.xlane.xlu0 %2228
    %v2230 = vsel %vm310, %v2226, -inf
    %2231 = vmax.xlane.f32.xlu0 %v2230
    %v2232 = vpop.xlane.xlu0 %2231
    %v2233 = vsub.f32 %v2225, %v2229
    %v2234 = vsub.f32 %v2226, %v2232
    %v2235 = vmul.f32 %v2233, 1.442695
    %v2236 = vpow.pop %v2235
    %v2237 = vmul.f32 %v2234, 1.442695
    %v2238 = vpow.pop %v2237
    %v2239 = vsel %vm310, %v2236, 0.0
    %2240 = vadd.xlane.f32.xlu0 %v2239
    %v2241 = vpop.xlane.xlu0 %2240
    %v2242 = vsel %vm310, %v2238, 0.0
    %2243 = vadd.xlane.f32.xlu0 %v2242
    %v2244 = vpop.xlane.xlu0 %2243
    %v2245 = vrcp.pop %v2241
    %v2246 = vrcp.pop %v2244
    %v2247 = vmul.f32 %v2236, %v2245
    %v2248 = vmul.f32 %v2238, %v2246
    %2249 = vrot.lane.b32.xlu0 %v1514, 40
    %v2250 = vpop.permute.xlu0 %2249
    %2251 = vrot.lane.b32.xlu0 %v1519, 40
    %v2252 = vpop.permute.xlu0 %2251
    %v2256 = vsel %vm310, %v2247, 0
    %v2259 = vsel %vm310, %v2248, 0
    %2261 = vmatprep.subr.mxu0 0.0
    %2262 = vmatpush1.msra.mxu0 %v2250
    %2263 = vmatprep.subr.mxu0 0.0
    %2264 = vmatpush1.msra.mxu0 %v2252
    %2265 = vmatprep.subr.mxu0 0.0
    %2266 = vmatpush1.msra.mxu0 0.0
    %2267 = vmatprep.subr.mxu0 0.0
    %2268 = vmatpush1.msra.mxu0 0.0
    %2269 = vmatprep.subr.mxu0 0.0
    %2270 = vmatpush1.msra.mxu0 0.0
    %2271 = vmatprep.subr.mxu0 0.0
    %2272 = vmatpush1.msra.mxu0 0.0
    %2273 = vmatprep.subr.mxu0 0.0
    %2274 = vmatpush1.msra.mxu0 0.0
    %2275 = vmatprep.subr.mxu0 0.0
    %2276 = vmatpush1.msra.mxu0 0.0
    %2277 = vmatprep.subr.mxu0 0.0
    %2278 = vmatpush1.msra.mxu0 0.0
    %2279 = vmatprep.subr.mxu0 0.0
    %2280 = vmatpush1.msra.mxu0 0.0
    %2281 = vmatprep.subr.mxu0 0.0
    %2282 = vmatpush1.msra.mxu0 0.0
    %2283 = vmatprep.subr.mxu0 0.0
    %2284 = vmatpush1.msra.mxu0 0.0
    %2285 = vmatprep.subr.mxu0 0.0
    %2286 = vmatpush1.msra.mxu0 0.0
    %2287 = vmatprep.subr.mxu0 0.0
    %2288 = vmatpush1.msra.mxu0 0.0
    %2289 = vmatprep.subr.mxu0 0.0
    %2290 = vmatpush1.msra.mxu0 0.0
    %2291 = vmatprep.subr.mxu0 0.0
    %2292 = vmatpush1.msra.mxu0 0.0
    %2293 = vmatprep.subr.mxu0 0.0
    %2294 = vmatpush1.msra.mxu0 0.0
    %2295 = vmatprep.subr.mxu0 0.0
    %2296 = vmatpush1.msra.mxu0 0.0
    %2297 = vmatprep.subr.mxu0 0.0
    %2298 = vmatpush1.msra.mxu0 0.0
    %2299 = vmatprep.subr.mxu0 0.0
    %2300 = vmatpush1.msra.mxu0 0.0
    %2301 = vmatprep.subr.mxu0 0.0
    %2302 = vmatpush1.msra.mxu0 0.0
    %2303 = vmatprep.subr.mxu0 0.0
    %2304 = vmatpush1.msra.mxu0 0.0
    %2305 = vmatprep.subr.mxu0 0.0
    %2306 = vmatpush1.msra.mxu0 0.0
    %2307 = vmatprep.subr.mxu0 0.0
    %2308 = vmatpush1.msra.mxu0 0.0
    %2309 = vmatprep.subr.mxu0 0.0
    %2310 = vmatpush1.msra.mxu0 0.0
    %2311 = vmatprep.subr.mxu0 0.0
    %2312 = vmatpush1.msra.mxu0 0.0
    %2313 = vmatprep.subr.mxu0 0.0
    %2314 = vmatpush1.msra.mxu0 0.0
    %2315 = vmatprep.subr.mxu0 0.0
    %2316 = vmatpush1.msra.mxu0 0.0
    %2317 = vmatprep.subr.mxu0 0.0
    %2318 = vmatpush1.msra.mxu0 0.0
    %2319 = vmatprep.subr.mxu0 0.0
    %2320 = vmatpush1.msra.mxu0 0.0
    %2321 = vmatprep.subr.mxu0 0.0
    %2322 = vmatpush1.msra.mxu0 0.0
    %2323 = vmatprep.subr.mxu0 0.0
    %2324 = vmatpush1.msra.mxu0 0.0
    %2325 = vmatprep.mubr.f32.mxu0 0.0
    %2326 = vmatmul.mubr.f32.gmra.mrb[0].mxu0 %v2256
    %v2327 = vpop.f32.mrb[0].mxu0
    %v2328 = vadd.f32 0.0, %v2327
    %v2329 = vpop.f32.mrb[0].mxu0
    %2330 = vmatprep.mubr.f32.mxu0 0.0
    %2331 = vmatmul.mubr.f32.gmra.mrb[0].mxu0 %v2259
    %v2332 = vpop.f32.mrb[0].mxu0
    %v2333 = vadd.f32 0.0, %v2332
    %v2334 = vpop.f32.mrb[0].mxu0
    %2335 = vdwg.mxu0
    %2338 = vrot.lane.b32.xlu0 %v1920, 8
    %v2339 = vpop.permute.xlu0 %2338
    %2340 = vrot.lane.b32.xlu0 %v1925, 8
    %v2341 = vpop.permute.xlu0 %2340
    %2346 = vrot.lane.b32.xlu0 %v2124, 16
    %v2347 = vpop.permute.xlu0 %2346
    %2348 = vrot.lane.b32.xlu0 %v2129, 16
    %v2349 = vpop.permute.xlu0 %2348
    %2354 = vrot.lane.b32.xlu0 %v2328, 24
    %v2355 = vpop.permute.xlu0 %2354
    %2356 = vrot.lane.b32.xlu0 %v2333, 24
    %v2357 = vpop.permute.xlu0 %2356
    %v2360 = vsel %vm36, %v1716, %v2339
    %v2361 = vsel %vm36, %v1721, %v2341
    %v2362 = vsel %vm310, %v2360, %v2347
    %v2363 = vsel %vm310, %v2361, %v2349
    %v2364 = vsel %vm1060, %v2362, %v2355
    %v2365 = vsel %vm1060, %v2363, %v2357
    %2370 = vrot.lane.b32.xlu0 %v1431, 32
    %v2371 = vpop.permute.xlu0 %2370
    %2372 = vrot.lane.b32.xlu0 %v1432, 32
    %v2373 = vpop.permute.xlu0 %2372
    %2374 = vrot.lane.b32.xlu0 %v1433, 32
    %v2375 = vpop.permute.xlu0 %2374
    %2376 = vrot.lane.b32.xlu0 %v1434, 32
    %v2377 = vpop.permute.xlu0 %2376
    %2383 = vrot.lane.b32.xlu0 %v1440, 32
    %v2384 = vpop.permute.xlu0 %2383
    %v2387 = vsel %vm135, %v2364, 0
    %v2390 = vsel %vm135, %v2365, 0
    %2392 = vmatprep.subr.mxu0 0.0
    %2393 = vmatpush1.msra.mxu0 %v2371
    %2394 = vmatprep.subr.mxu0 0.0
    %2395 = vmatpush1.msra.mxu0 %v2373
    %2396 = vmatprep.subr.mxu0 0.0
    %2397 = vmatpush1.msra.mxu0 %v2375
    %2398 = vmatprep.subr.mxu0 0.0
    %2399 = vmatpush1.msra.mxu0 %v2377
    %2400 = vmatprep.subr.mxu0 0.0
    %2401 = vmatpush1.msra.mxu0 0.0
    %2402 = vmatprep.subr.mxu0 0.0
    %2403 = vmatpush1.msra.mxu0 0.0
    %2404 = vmatprep.subr.mxu0 0.0
    %2405 = vmatpush1.msra.mxu0 0.0
    %2406 = vmatprep.subr.mxu0 0.0
    %2407 = vmatpush1.msra.mxu0 0.0
    %2408 = vmatprep.subr.mxu0 0.0
    %2409 = vmatpush1.msra.mxu0 0.0
    %2410 = vmatprep.subr.mxu0 0.0
    %2411 = vmatpush1.msra.mxu0 0.0
    %2412 = vmatprep.subr.mxu0 0.0
    %2413 = vmatpush1.msra.mxu0 0.0
    %2414 = vmatprep.subr.mxu0 0.0
    %2415 = vmatpush1.msra.mxu0 0.0
    %2416 = vmatprep.subr.mxu0 0.0
    %2417 = vmatpush1.msra.mxu0 0.0
    %2418 = vmatprep.subr.mxu0 0.0
    %2419 = vmatpush1.msra.mxu0 0.0
    %2420 = vmatprep.subr.mxu0 0.0
    %2421 = vmatpush1.msra.mxu0 0.0
    %2422 = vmatprep.subr.mxu0 0.0
    %2423 = vmatpush1.msra.mxu0 0.0
    %2424 = vmatprep.subr.mxu0 0.0
    %2425 = vmatpush1.msra.mxu0 0.0
    %2426 = vmatprep.subr.mxu0 0.0
    %2427 = vmatpush1.msra.mxu0 0.0
    %2428 = vmatprep.subr.mxu0 0.0
    %2429 = vmatpush1.msra.mxu0 0.0
    %2430 = vmatprep.subr.mxu0 0.0
    %2431 = vmatpush1.msra.mxu0 0.0
    %2432 = vmatprep.subr.mxu0 0.0
    %2433 = vmatpush1.msra.mxu0 0.0
    %2434 = vmatprep.subr.mxu0 0.0
    %2435 = vmatpush1.msra.mxu0 0.0
    %2436 = vmatprep.subr.mxu0 0.0
    %2437 = vmatpush1.msra.mxu0 0.0
    %2438 = vmatprep.subr.mxu0 0.0
    %2439 = vmatpush1.msra.mxu0 0.0
    %2440 = vmatprep.subr.mxu0 0.0
    %2441 = vmatpush1.msra.mxu0 0.0
    %2442 = vmatprep.subr.mxu0 0.0
    %2443 = vmatpush1.msra.mxu0 0.0
    %2444 = vmatprep.subr.mxu0 0.0
    %2445 = vmatpush1.msra.mxu0 0.0
    %2446 = vmatprep.subr.mxu0 0.0
    %2447 = vmatpush1.msra.mxu0 0.0
    %2448 = vmatprep.subr.mxu0 0.0
    %2449 = vmatpush1.msra.mxu0 0.0
    %2450 = vmatprep.subr.mxu0 0.0
    %2451 = vmatpush1.msra.mxu0 0.0
    %2452 = vmatprep.subr.mxu0 0.0
    %2453 = vmatpush1.msra.mxu0 0.0
    %2454 = vmatprep.subr.mxu0 0.0
    %2455 = vmatpush1.msra.mxu0 0.0
    %2456 = vmatprep.mubr.f32.mxu0 0.0
    %2457 = vmatmul.mubr.f32.gmra.mrb[0].mxu0 %v2387
    %v2458 = vpop.f32.mrb[0].mxu0
    %v2459 = vadd.f32 %v2384, %v2458
    %v2460 = vpop.f32.mrb[0].mxu0
    %2461 = vmatprep.mubr.f32.mxu0 0.0
    %2462 = vmatmul.mubr.f32.gmra.mrb[0].mxu0 %v2390
    %v2463 = vpop.f32.mrb[0].mxu0
    %v2464 = vadd.f32 %v2384, %v2463
    %v2465 = vpop.f32.mrb[0].mxu0
    %2466 = vdwg.mxu0
    %v2467 = vadd.f32 %v1428, %v2459
    %v2468 = vadd.f32 %v1429, %v2464
    %v2469 = vsel %vm135, %v2467, 0.0
    %2470 = vadd.xlane.f32.xlu0 %v2469
    %v2471 = vpop.xlane.xlu0 %2470
    %v2472 = vsel %vm135, %v2468, 0.0
    %2473 = vadd.xlane.f32.xlu0 %v2472
    %v2474 = vpop.xlane.xlu0 %2473
    %v2475 = vmul.f32 %v2471, %v1172
    %v2476 = vmul.f32 %v2474, %v1172
    %v2477 = vsub.f32 %v2467, %v2475
    %v2478 = vsub.f32 %v2468, %v2476
    %v2479 = vmul.f32 %v2477, %v2477
    %v2480 = vmul.f32 %v2478, %v2478
    %v2481 = vsel %vm135, %v2479, 0.0
    %2482 = vadd.xlane.f32.xlu0 %v2481
    %v2483 = vpop.xlane.xlu0 %2482
    %v2484 = vsel %vm135, %v2480, 0.0
    %2485 = vadd.xlane.f32.xlu0 %v2484
    %v2486 = vpop.xlane.xlu0 %2485
    %v2487 = vmul.f32 %v2483, %v1172
    %v2488 = vmul.f32 %v2486, %v1172
    %v2489 = vadd.f32 %v2487, 1e-05
    %v2490 = vadd.f32 %v2488, 1e-05
    %v2491 = vrsqrt.pop %v2489
    %v2492 = vrsqrt.pop %v2490
    %v2493 = vmul.f32 %v2477, %v2491
    %v2494 = vmul.f32 %v2478, %v2492
    %v2495 = vlaneseq
    %v2496 = vshrl.u32 %v2495, 7
    %v2497 = vsub.s32 1, %v2496
    %v2498 = vrot.slane %v1436, %v2497
    %v2499 = vmul.f32 %v2493, %v2498
    %v2500 = vmul.f32 %v2494, %v2498
    %v2501 = vlaneseq
    %v2502 = vshrl.u32 %v2501, 7
    %v2503 = vsub.s32 2, %v2502
    %v2504 = vrot.slane %v1436, %v2503
    %v2505 = vadd.f32 %v2499, %v2504
    %v2506 = vadd.f32 %v2500, %v2504
    %s2507 = scalar_lea.vmem %s4, 32
    %v2508 = vld [vmem:[%s2507] sm:$0xff]
    %v2509 = vld [vmem:[%s2507 + $0x8] sm:$0xff]
    %v2510 = vld [vmem:[%s2507 + $0x10] sm:$0xff]
    %v2511 = vld [vmem:[%s2507 + $0x18] sm:$0xff]
    %v2512 = vlaneseq
    %v2513 = vshrl.u32 %v2512, 7
    %v2514 = vsub.s32 3, %v2513
    %v2515 = vrot.slane %v1436, %v2514
    %v2517 = vsel %vm135, %v2505, 0
    %v2520 = vsel %vm135, %v2506, 0
    %2522 = vmatprep.subr.mxu0 0.0
    %2523 = vmatpush1.msra.mxu0 %v2508
    %2524 = vmatprep.subr.mxu0 0.0
    %2525 = vmatpush1.msra.mxu0 %v2509
    %2526 = vmatprep.subr.mxu0 0.0
    %2527 = vmatpush1.msra.mxu0 %v2510
    %2528 = vmatprep.subr.mxu0 0.0
    %2529 = vmatpush1.msra.mxu0 %v2511
    %2530 = vmatprep.subr.mxu0 0.0
    %2531 = vmatpush1.msra.mxu0 0.0
    %2532 = vmatprep.subr.mxu0 0.0
    %2533 = vmatpush1.msra.mxu0 0.0
    %2534 = vmatprep.subr.mxu0 0.0
    %2535 = vmatpush1.msra.mxu0 0.0
    %2536 = vmatprep.subr.mxu0 0.0
    %2537 = vmatpush1.msra.mxu0 0.0
    %2538 = vmatprep.subr.mxu0 0.0
    %2539 = vmatpush1.msra.mxu0 0.0
    %2540 = vmatprep.subr.mxu0 0.0
    %2541 = vmatpush1.msra.mxu0 0.0
    %2542 = vmatprep.subr.mxu0 0.0
    %2543 = vmatpush1.msra.mxu0 0.0
    %2544 = vmatprep.subr.mxu0 0.0
    %2545 = vmatpush1.msra.mxu0 0.0
    %2546 = vmatprep.subr.mxu0 0.0
    %2547 = vmatpush1.msra.mxu0 0.0
    %2548 = vmatprep.subr.mxu0 0.0
    %2549 = vmatpush1.msra.mxu0 0.0
    %2550 = vmatprep.subr.mxu0 0.0
    %2551 = vmatpush1.msra.mxu0 0.0
    %2552 = vmatprep.subr.mxu0 0.0
    %2553 = vmatpush1.msra.mxu0 0.0
    %2554 = vmatprep.subr.mxu0 0.0
    %2555 = vmatpush1.msra.mxu0 0.0
    %2556 = vmatprep.subr.mxu0 0.0
    %2557 = vmatpush1.msra.mxu0 0.0
    %2558 = vmatprep.subr.mxu0 0.0
    %2559 = vmatpush1.msra.mxu0 0.0
    %2560 = vmatprep.subr.mxu0 0.0
    %2561 = vmatpush1.msra.mxu0 0.0
    %2562 = vmatprep.subr.mxu0 0.0
    %2563 = vmatpush1.msra.mxu0 0.0
    %2564 = vmatprep.subr.mxu0 0.0
    %2565 = vmatpush1.msra.mxu0 0.0
    %2566 = vmatprep.subr.mxu0 0.0
    %2567 = vmatpush1.msra.mxu0 0.0
    %2568 = vmatprep.subr.mxu0 0.0
    %2569 = vmatpush1.msra.mxu0 0.0
    %2570 = vmatprep.subr.mxu0 0.0
    %2571 = vmatpush1.msra.mxu0 0.0
    %2572 = vmatprep.subr.mxu0 0.0
    %2573 = vmatpush1.msra.mxu0 0.0
    %2574 = vmatprep.subr.mxu0 0.0
    %2575 = vmatpush1.msra.mxu0 0.0
    %2576 = vmatprep.subr.mxu0 0.0
    %2577 = vmatpush1.msra.mxu0 0.0
    %2578 = vmatprep.subr.mxu0 0.0
    %2579 = vmatpush1.msra.mxu0 0.0
    %2580 = vmatprep.subr.mxu0 0.0
    %2581 = vmatpush1.msra.mxu0 0.0
    %2582 = vmatprep.subr.mxu0 0.0
    %2583 = vmatpush1.msra.mxu0 0.0
    %2584 = vmatprep.subr.mxu0 0.0
    %2585 = vmatpush1.msra.mxu0 0.0
    %2586 = vmatprep.mubr.f32.mxu0 0.0
    %2587 = vmatmul.mubr.f32.gmra.mrb[0].mxu0 %v2517
    %v2588 = vpop.f32.mrb[0].mxu0
    %v2589 = vadd.f32 %v2515, %v2588
    %v2590 = vpop.f32.mrb[0].mxu0
    %2591 = vmatprep.mubr.f32.mxu0 0.0
    %2592 = vmatmul.mubr.f32.gmra.mrb[0].mxu0 %v2520
    %v2593 = vpop.f32.mrb[0].mxu0
    %v2594 = vadd.f32 %v2515, %v2593
    %v2595 = vpop.f32.mrb[0].mxu0
    %2596 = vdwg.mxu0
    %v2597 = vmax.f32 %v2589, 0.0
    %v2598 = vmax.f32 %v2594, 0.0
    %s2599 = scalar_lea.vmem %s5, 64
    %v2600 = vld [vmem:[%s2599] sm:$0xff]
    %v2601 = vld [vmem:[%s2599 + $0x8] sm:$0xff]
    %v2602 = vld [vmem:[%s2599 + $0x10] sm:$0xff]
    %v2603 = vld [vmem:[%s2599 + $0x18] sm:$0xff]
    %v2604 = vld [vmem:[%s2599 + $0x20] sm:$0xff]
    %v2605 = vld [vmem:[%s2599 + $0x28] sm:$0xff]
    %v2606 = vld [vmem:[%s2599 + $0x30] sm:$0xff]
    %v2607 = vld [vmem:[%s2599 + $0x38] sm:$0xff]
    %v2608 = vlaneseq
    %v2609 = vshrl.u32 %v2608, 7
    %v2610 = vsub.s32 4, %v2609
    %v2611 = vrot.slane %v1436, %v2610
    %v2613 = vsel %vm1308, %v2597, 0
    %v2616 = vsel %vm1308, %v2598, 0
    %2618 = vmatprep.subr.mxu0 0.0
    %2619 = vmatpush1.msra.mxu0 %v2600
    %2620 = vmatprep.subr.mxu0 0.0
    %2621 = vmatpush1.msra.mxu0 %v2601
    %2622 = vmatprep.subr.mxu0 0.0
    %2623 = vmatpush1.msra.mxu0 %v2602
    %2624 = vmatprep.subr.mxu0 0.0
    %2625 = vmatpush1.msra.mxu0 %v2603
    %2626 = vmatprep.subr.mxu0 0.0
    %2627 = vmatpush1.msra.mxu0 %v2604
    %2628 = vmatprep.subr.mxu0 0.0
    %2629 = vmatpush1.msra.mxu0 %v2605
    %2630 = vmatprep.subr.mxu0 0.0
    %2631 = vmatpush1.msra.mxu0 %v2606
    %2632 = vmatprep.subr.mxu0 0.0
    %2633 = vmatpush1.msra.mxu0 %v2607
    %2634 = vmatprep.subr.mxu0 0.0
    %2635 = vmatpush1.msra.mxu0 0.0
    %2636 = vmatprep.subr.mxu0 0.0
    %2637 = vmatpush1.msra.mxu0 0.0
    %2638 = vmatprep.subr.mxu0 0.0
    %2639 = vmatpush1.msra.mxu0 0.0
    %2640 = vmatprep.subr.mxu0 0.0
    %2641 = vmatpush1.msra.mxu0 0.0
    %2642 = vmatprep.subr.mxu0 0.0
    %2643 = vmatpush1.msra.mxu0 0.0
    %2644 = vmatprep.subr.mxu0 0.0
    %2645 = vmatpush1.msra.mxu0 0.0
    %2646 = vmatprep.subr.mxu0 0.0
    %2647 = vmatpush1.msra.mxu0 0.0
    %2648 = vmatprep.subr.mxu0 0.0
    %2649 = vmatpush1.msra.mxu0 0.0
    %2650 = vmatprep.subr.mxu0 0.0
    %2651 = vmatpush1.msra.mxu0 0.0
    %2652 = vmatprep.subr.mxu0 0.0
    %2653 = vmatpush1.msra.mxu0 0.0
    %2654 = vmatprep.subr.mxu0 0.0
    %2655 = vmatpush1.msra.mxu0 0.0
    %2656 = vmatprep.subr.mxu0 0.0
    %2657 = vmatpush1.msra.mxu0 0.0
    %2658 = vmatprep.subr.mxu0 0.0
    %2659 = vmatpush1.msra.mxu0 0.0
    %2660 = vmatprep.subr.mxu0 0.0
    %2661 = vmatpush1.msra.mxu0 0.0
    %2662 = vmatprep.subr.mxu0 0.0
    %2663 = vmatpush1.msra.mxu0 0.0
    %2664 = vmatprep.subr.mxu0 0.0
    %2665 = vmatpush1.msra.mxu0 0.0
    %2666 = vmatprep.subr.mxu0 0.0
    %2667 = vmatpush1.msra.mxu0 0.0
    %2668 = vmatprep.subr.mxu0 0.0
    %2669 = vmatpush1.msra.mxu0 0.0
    %2670 = vmatprep.subr.mxu0 0.0
    %2671 = vmatpush1.msra.mxu0 0.0
    %2672 = vmatprep.subr.mxu0 0.0
    %2673 = vmatpush1.msra.mxu0 0.0
    %2674 = vmatprep.subr.mxu0 0.0
    %2675 = vmatpush1.msra.mxu0 0.0
    %2676 = vmatprep.subr.mxu0 0.0
    %2677 = vmatpush1.msra.mxu0 0.0
    %2678 = vmatprep.subr.mxu0 0.0
    %2679 = vmatpush1.msra.mxu0 0.0
    %2680 = vmatprep.subr.mxu0 0.0
    %2681 = vmatpush1.msra.mxu0 0.0
    %2682 = vmatprep.mubr.f32.mxu0 0.0
    %2683 = vmatmul.mubr.f32.gmra.mrb[0].mxu0 %v2613
    %v2684 = vpop.f32.mrb[0].mxu0
    %v2685 = vadd.f32 %v2611, %v2684
    %v2686 = vpop.f32.mrb[0].mxu0
    %2687 = vmatprep.mubr.f32.mxu0 0.0
    %2688 = vmatmul.mubr.f32.gmra.mrb[0].mxu0 %v2616
    %v2689 = vpop.f32.mrb[0].mxu0
    %v2690 = vadd.f32 %v2611, %v2689
    %v2691 = vpop.f32.mrb[0].mxu0
    %2692 = vdwg.mxu0
    %v2693 = vadd.f32 %v2505, %v2685
    %v2694 = vadd.f32 %v2506, %v2690
    %v2695 = vsel %vm135, %v2693, 0.0
    %2696 = vadd.xlane.f32.xlu0 %v2695
    %v2697 = vpop.xlane.xlu0 %2696
    %v2698 = vsel %vm135, %v2694, 0.0
    %2699 = vadd.xlane.f32.xlu0 %v2698
    %v2700 = vpop.xlane.xlu0 %2699
    %v2701 = vmul.f32 %v2697, %v1172
    %v2702 = vmul.f32 %v2700, %v1172
    %v2703 = vsub.f32 %v2693, %v2701
    %v2704 = vsub.f32 %v2694, %v2702
    %v2705 = vmul.f32 %v2703, %v2703
    %v2706 = vmul.f32 %v2704, %v2704
    %v2707 = vsel %vm135, %v2705, 0.0
    %2708 = vadd.xlane.f32.xlu0 %v2707
    %v2709 = vpop.xlane.xlu0 %2708
    %v2710 = vsel %vm135, %v2706, 0.0
    %2711 = vadd.xlane.f32.xlu0 %v2710
    %v2712 = vpop.xlane.xlu0 %2711
    %v2713 = vmul.f32 %v2709, %v1172
    %v2714 = vmul.f32 %v2712, %v1172
    %v2715 = vadd.f32 %v2713, 1e-05
    %v2716 = vadd.f32 %v2714, 1e-05
    %v2717 = vrsqrt.pop %v2715
    %v2718 = vrsqrt.pop %v2716
    %v2719 = vmul.f32 %v2703, %v2717
    %v2720 = vmul.f32 %v2704, %v2718
    %v2721 = vlaneseq
    %v2722 = vshrl.u32 %v2721, 7
    %v2723 = vsub.s32 5, %v2722
    %v2724 = vrot.slane %v1436, %v2723
    %v2725 = vmul.f32 %v2719, %v2724
    %v2726 = vmul.f32 %v2720, %v2724
    %v2727 = vlaneseq
    %v2728 = vshrl.u32 %v2727, 7
    %v2729 = vsub.s32 6, %v2728
    %v2730 = vrot.slane %v1436, %v2729
    %v2731 = vadd.f32 %v2725, %v2730
    %v2732 = vadd.f32 %v2726, %v2730
    %2733 = vst.msk [vmem:[#allocation2] sm:$0xff] %vm135, %v2731
    %2734 = vst.msk [vmem:[#allocation2 + $0x8] sm:$0xff] %vm135, %v2732
    // Predicated region
    $region26: #{forward.1} parent=1 // pred_check
      _
    $region27: #{forward.1} parent=1 // pred_check_branch
      %2736 = sbr.rel (0) target = $region29
    $region28: #{forward.1} parent=1 // pred_region
      %s2738 = ssub.s32 256, 256
      %2739 = vsyncadd [#allocation3], %s2738
      %s2740 = sshll.u32 [#allocation2], 4
      %s2741 = int_to_ptr.vmem [resolvable:$true] %s2740
      %2746 = dma.vmem_to_hbm [thread:$0]  %s2741, 256, %s6, [#allocation3], 128, 128, 8
    $region29: #{forward.1} parent=1 // pred_fallthru
      _
    // Predicated region
    $region30: #{forward.1} parent=1 // pred_check
      _
    $region31: #{forward.1} parent=1 // pred_check_branch
      %2748 = sbr.rel (0) target = $region33
    $region32: #{forward.1} parent=1 // pred_region
      %2749 = dma.done [#allocation3], 256
    $region33: #{forward.1} parent=1 // pred_fallthru
      _
    %2750 = vsyncpa [#allocation3], 1

</llo_original>
